<compile_context>
chip_gen: v6e
topology: v6e:2x2x1
jax: 0.10.0
libtpu: 0.0.40
codegen_flags: <defaults>
</compile_context>

<pallas_src>
import functools

import jax
import jax.numpy as jnp
from jax import lax
from jax.experimental import pallas as pl
from jax.experimental.pallas import tpu as pltpu


# ---------------------------------------------------------------------------
# helpers
# ---------------------------------------------------------------------------
def _pick_tile(n, max_tile):
    """Largest tile <= max_tile that divides n (multiple of 8), else full n."""
    if n <= max_tile:
        return n
    start = max_tile - (max_tile % 8)
    for t in range(start, 7, -8):
        if n % t == 0:
            return t
    return n


def _vmem_budget():
    """~75% of this chip's physical VMEM (leaves compiler headroom)."""
    try:
        cap = getattr(pltpu.get_tpu_info(), "vmem_capacity_bytes", None)
        if cap:
            return int(0.75 * cap)
    except Exception:
        pass
    return 48 << 20          # conservative fallback: 0.75 * 64 MiB (v7x per-TC)


# ---------------------------------------------------------------------------
# Stage 1: shared LayerNorm + linear projection, bf16 output (runs once/token)
# ---------------------------------------------------------------------------
def _ln_proj_kernel(x_ref, gamma_ref, beta_ref, w_ref, out_ref, *, eps):
    x = x_ref[0].astype(jnp.float32)                          # (tn, C)
    mean = jnp.mean(x, axis=-1, keepdims=True)
    xc = x - mean
    var = jnp.mean(xc * xc, axis=-1, keepdims=True)
    xn = xc * lax.rsqrt(var + eps) * gamma_ref[...] + beta_ref[...]
    y = jnp.dot(xn.astype(jnp.bfloat16), w_ref[...],
                preferred_element_type=jnp.float32)           # MXU, f32 acc
    out_ref[0] = y.astype(out_ref.dtype)


def _ln_project(x, gamma, beta, w_t, *, eps, max_tile=256):
    B, N, C = x.shape
    Cout = w_t.shape[1]
    budget = _vmem_budget()

    mt = max_tile
    while True:
        tn = _pick_tile(N, mt)
        need = (2 * tn * C * x.dtype.itemsize    # x blocks (double-buffered)
                + 2 * tn * Cout * 2              # out blocks (bf16)
                + 2 * C * Cout * 2               # weight (double-buffered)
                + 4 * C * 4                      # gamma / beta
                + 2 * tn * Cout * 4)             # f32 LN / matmul temporaries
        if need <= budget or mt <= 8:
            break
        mt //= 2

    grid = (B, N // tn)
    vmem_limit = int(max(32 << 20, min(budget, need + (4 << 20))))

    cost = pl.CostEstimate(
        flops=2 * B * N * C * Cout,
        transcendentals=B * N,
        bytes_accessed=(B * N * C * x.dtype.itemsize + C * Cout * 2
                        + 2 * C * 4 + B * N * Cout * 2))

    return pl.pallas_call(
        functools.partial(_ln_proj_kernel, eps=eps),
        out_shape=jax.ShapeDtypeStruct((B, N, Cout), jnp.bfloat16),
        grid_spec=pltpu.PrefetchScalarGridSpec(
            num_scalar_prefetch=0,
            grid=grid,
            in_specs=[
                pl.BlockSpec((1, tn, C), lambda b, i: (b, i, 0)),    # x
                pl.BlockSpec((1, C), lambda b, i: (0, 0)),           # gamma
                pl.BlockSpec((1, C), lambda b, i: (0, 0)),           # beta
                pl.BlockSpec((C, Cout), lambda b, i: (0, 0)),        # W^T
            ],
            out_specs=pl.BlockSpec((1, tn, Cout), lambda b, i: (b, i, 0))),
        compiler_params=pltpu.CompilerParams(
            dimension_semantics=("parallel", "parallel"),
            vmem_limit_bytes=vmem_limit),
        cost_estimate=cost,
    )(x, gamma, beta, w_t)


# ---------------------------------------------------------------------------
# Stage 2: flash attention over kv tiles + fused output projection
# ---------------------------------------------------------------------------
def _flash_attention_kernel(
    q_ref, k_ref, v_ref,              # (1, tq, C) bf16, (1, tkv, C) bf16 x2
    wp_ref, bp_ref,                   # (C, C) bf16 pre-transposed, (1, C) f32
    out_ref,                          # (1, tq, C)
    q_scr,                            # (tq, H, hd) bf16   (head-split q)
    m_scr, l_scr,                     # (H, tq, 1) f32     (online-softmax state)
    acc_scr,                          # (H, tq, hd) f32    (context accumulator)
    *, num_heads,
):
    C = q_ref.shape[-1]
    H = num_heads
    hd = C // H
    tq = q_ref.shape[1]
    tkv = k_ref.shape[1]
    kv = pl.program_id(2)

    # ---- once per (batch, q-tile): head-split q, init flash state ----------
    @pl.when(kv == 0)
    def _init():
        q_scr[...] = q_ref[0].reshape(tq, H, hd)       # already scaled (bf16)
        m_scr[...] = jnp.full(m_scr.shape, -jnp.inf, jnp.float32)
        l_scr[...] = jnp.zeros(l_scr.shape, jnp.float32)
        acc_scr[...] = jnp.zeros(acc_scr.shape, jnp.float32)

    kh = k_ref[0].reshape(tkv, H, hd)                  # (tkv, H, hd) bf16
    vh = v_ref[0].reshape(tkv, H, hd)

    # scores: batched over H, contracting hd -> (H, tq, tkv), f32 accumulate
    s = lax.dot_general(
        q_scr[...], kh,
        dimension_numbers=(((2,), (2,)), ((1,), (1,))),
        preferred_element_type=jnp.float32)

    # ---- online softmax update ---------------------------------------------
    m_prev = m_scr[...]
    m_new = jnp.maximum(m_prev, jnp.max(s, axis=-1, keepdims=True))
    alpha = jnp.exp(m_prev - m_new)
    p = jnp.exp(s - m_new)                                            # (H, tq, tkv)
    l_scr[...] = alpha * l_scr[...] + jnp.sum(p, axis=-1, keepdims=True)
    pv = lax.dot_general(
        p.astype(jnp.bfloat16), vh,
        dimension_numbers=(((2,), (0,)), ((0,), (1,))),
        preferred_element_type=jnp.float32)                           # (H, tq, hd)
    acc_scr[...] = alpha * acc_scr[...] + pv
    m_scr[...] = m_new

    # ---- finalize on last kv tile: normalize, merge heads, output proj -----
    @pl.when(kv == pl.num_programs(2) - 1)
    def _finalize():
        ctx = acc_scr[...] * pl.reciprocal(l_scr[...], approx=True)   # (H, tq, hd)
        ctx = jnp.transpose(ctx, (1, 0, 2)).reshape(tq, C)            # (tq, C)
        out = jnp.dot(ctx.astype(jnp.bfloat16), wp_ref[...],
                      preferred_element_type=jnp.float32) + bp_ref[...]
        out_ref[0] = out.astype(out_ref.dtype)


def _attn_vmem_bytes(tq, tkv, C, H):
    hd = C // H
    pad_hd = -(-hd // 128) * 128
    return (2 * tq * C * 2                 # q blocks (bf16, double-buffered)
            + 2 * 2 * tkv * C * 2          # k + v blocks (bf16)
            + 2 * tq * C * 4               # out blocks (f32)
            + 2 * C * C * 2 + 4 * C * 4    # wp (double-buffered) + bias
            + tq * H * pad_hd * 2          # q scratch (lane-padded hd)
            + 2 * H * tq * 128 * 4         # m, l scratch (lane-padded)
            + H * tq * pad_hd * 4          # acc scratch
            + 4 * H * tq * max(tkv, 128) * 4)   # s / p / exp temporaries


def _flash_attention(q, k, v, wp_t, bp, *, num_heads, out_dtype,
                     max_q_tile=256, max_kv_tile=1024):
    B, Nq, C = q.shape
    _, Nkv, _ = k.shape
    H = num_heads
    budget = _vmem_budget()

    mq, mkv = max_q_tile, max_kv_tile
    while True:
        tq = _pick_tile(Nq, mq)
        tkv = _pick_tile(Nkv, mkv)
        need = _attn_vmem_bytes(tq, tkv, C, H)
        if need <= budget:
            break
        if tkv > 128 and mkv > 128:
            mkv //= 2
        elif tq > 64 and mq > 64:
            mq //= 2
        else:
            raise ValueError(
                f"attention tile ({tq}, {tkv}) needs ~{need >> 20} MiB VMEM, "
                f"budget is {budget >> 20} MiB")

    grid = (B, Nq // tq, Nkv // tkv)
    vmem_limit = int(max(32 << 20, min(budget, need + (4 << 20))))

    q_spec = pl.BlockSpec((1, tq, C), lambda b, qi, ki: (b, qi, 0))
    kv_spec = pl.BlockSpec((1, tkv, C), lambda b, qi, ki: (b, ki, 0))
    w_spec = pl.BlockSpec((C, C), lambda b, qi, ki: (0, 0))
    vec_spec = pl.BlockSpec((1, C), lambda b, qi, ki: (0, 0))

    cost = pl.CostEstimate(
        flops=4 * B * Nq * Nkv * C + 2 * B * Nq * C * C,
        transcendentals=B * H * Nq * Nkv,
        bytes_accessed=(B * Nq * C * 2
                        + 2 * B * Nkv * C * 2 * (Nq // tq)
                        + C * C * 2 + C * 4
                        + B * Nq * C * 4))

    kernel = functools.partial(_flash_attention_kernel, num_heads=H)
    return pl.pallas_call(
        kernel,
        out_shape=jax.ShapeDtypeStruct((B, Nq, C), out_dtype),
        grid_spec=pltpu.PrefetchScalarGridSpec(
            num_scalar_prefetch=0,
            grid=grid,
            in_specs=[q_spec, kv_spec, kv_spec, w_spec, vec_spec],
            out_specs=q_spec,
            scratch_shapes=[
                pltpu.VMEM((tq, H, C // H), jnp.bfloat16),   # q (head-split)
                pltpu.VMEM((H, tq, 1), jnp.float32),         # m
                pltpu.VMEM((H, tq, 1), jnp.float32),         # l
                pltpu.VMEM((H, tq, C // H), jnp.float32),    # acc
            ]),
        compiler_params=pltpu.CompilerParams(
            dimension_semantics=("parallel", "parallel", "arbitrary"),
            vmem_limit_bytes=vmem_limit),
        cost_estimate=cost,
    )(q, k, v, wp_t, bp)


# ---------------------------------------------------------------------------
# public API
# ---------------------------------------------------------------------------
def prepare_params(params, *, num_heads):
    """One-time weight prep (hoisted out of the call path): transpose Linear
    weights to (C_in, C_out), cast matmul weights to bf16, fold the attention
    scale into the Q weight."""
    C = params["wq"].shape[0]
    scale = (C // num_heads) ** (-0.5)
    return dict(
        gamma=params["ln_gamma"].reshape(1, C).astype(jnp.float32),
        beta=params["ln_beta"].reshape(1, C).astype(jnp.float32),
        wq_t=(params["wq"].T * scale).astype(jnp.bfloat16),   # scale folded in
        wk_t=params["wk"].T.astype(jnp.bfloat16),
        wv_t=params["wv"].T.astype(jnp.bfloat16),
        wp_t=params["wp"].T.astype(jnp.bfloat16),
        bp=params["bp"].reshape(1, C).astype(jnp.float32),
    )


def cross_attention(x_q, x_k, x_v, prep, *, num_heads, eps=1e-5,
                    max_q_tile=256, max_kv_tile=1024, max_proj_tile=256):
    B, Nq, C = x_q.shape
    assert C % num_heads == 0, "dim should be divisible by num_heads"

    # Stage 1: LayerNorm + Q/K/V projections, computed once per token.
    q_p = _ln_project(x_q, prep["gamma"], prep["beta"], prep["wq_t"],
                      eps=eps, max_tile=max_proj_tile)
    k_p = _ln_project(x_k, prep["gamma"], prep["beta"], prep["wk_t"],
                      eps=eps, max_tile=max_proj_tile)
    v_p = _ln_project(x_v, prep["gamma"], prep["beta"], prep["wv_t"],
                      eps=eps, max_tile=max_proj_tile)

    # Stage 2: flash attention + fused output projection.
    return _flash_attention(q_p, k_p, v_p, prep["wp_t"], prep["bp"],
                            num_heads=num_heads, out_dtype=x_q.dtype,
                            max_q_tile=max_q_tile, max_kv_tile=max_kv_tile)


# ---------------------------------------------------------------------------
# reference + test
# ---------------------------------------------------------------------------
def reference(x_q, x_k, x_v, params, *, num_heads):
    """Plain-JAX f32 reference matching the PyTorch forward."""
    B, Nq, C = x_q.shape
    _, Nkv, _ = x_k.shape
    hd = C // num_heads
    scale = hd ** (-0.5)

    def ln(x):
        mean = jnp.mean(x, axis=-1, keepdims=True)
        var = jnp.mean((x - mean) ** 2, axis=-1, keepdims=True)
        return (x - mean) / jnp.sqrt(var + 1e-5) * params["ln_gamma"] + params["ln_beta"]

    q = ln(x_q) @ params["wq"].T
    k = ln(x_k) @ params["wk"].T
    v = ln(x_v) @ params["wv"].T
    q = q.reshape(B, Nq, num_heads, hd).transpose(0, 2, 1, 3)
    k = k.reshape(B, Nkv, num_heads, hd).transpose(0, 2, 1, 3)
    v = v.reshape(B, Nkv, num_heads, hd).transpose(0, 2, 1, 3)
    attn = jnp.einsum('bhqd,bhkd->bhqk', q, k) * scale
    attn = jax.nn.softmax(attn, axis=-1)
    x = jnp.einsum('bhqk,bhkd->bhqd', attn, v).transpose(0, 2, 1, 3).reshape(B, Nq, C)
    return x @ params["wp"].T + params["bp"]


def xavier_uniform(key, shape):
    fan_in, fan_out = shape[1], shape[0]
    limit = (6.0 / (fan_in + fan_out)) ** 0.5
    return jax.random.uniform(key, shape, jnp.float32, -limit, limit)


if __name__ == "__main__":
    # Small shapes consistent with the module: dim divisible by num_heads.
    B, Nq, Nkv = 2, 16, 8
    dim, num_heads = 128, 8

    key = jax.random.PRNGKey(0)
    ks = jax.random.split(key, 8)

    params = {
        "ln_gamma": jnp.ones((dim,), jnp.float32),
        "ln_beta": jnp.zeros((dim,), jnp.float32),
        "wq": xavier_uniform(ks[0], (dim, dim)),
        "wk": xavier_uniform(ks[1], (dim, dim)),
        "wv": xavier_uniform(ks[2], (dim, dim)),
        "wp": xavier_uniform(ks[3], (dim, dim)),
        "bp": jnp.zeros((dim,), jnp.float32),   # proj bias init to 0.0
    }

    x_q = jax.random.normal(ks[4], (B, Nq, dim), jnp.float32)
    x_k = jax.random.normal(ks[5], (B, Nkv, dim), jnp.float32)
    x_v = jax.random.normal(ks[6], (B, Nkv, dim), jnp.float32)

    prep = prepare_params(params, num_heads=num_heads)   # one-time weight prep

    fn = jax.jit(functools.partial(cross_attention, num_heads=num_heads))
    out = jax.block_until_ready(fn(x_q, x_k, x_v, prep))

    ref = reference(x_q, x_k, x_v, params, num_heads=num_heads)
    # bf16 MXU operands + approx reciprocal => looser tolerance than pure f32.
    assert jnp.allclose(out, ref, atol=5e-2, rtol=5e-2), "mismatch vs reference"

    print("KERNEL_OK")
</pallas_src>

<mosaic_0001>
module attributes {stable_mosaic.version = 11 : i64} {
  func.func @_ln_proj_kernel(%arg0: i32, %arg1: i32, %arg2: memref<1x16x128xf32, #tpu.memory_space<vmem>>, %arg3: memref<1x128xf32, #tpu.memory_space<vmem>>, %arg4: memref<1x128xf32, #tpu.memory_space<vmem>>, %arg5: memref<128x128xbf16, #tpu.memory_space<vmem>>, %arg6: memref<1x16x128xbf16, #tpu.memory_space<vmem>>) attributes {dimension_semantics = [#tpu.dimension_semantics<parallel>, #tpu.dimension_semantics<parallel>], iteration_bounds = array<i64: 2, 1>, scalar_prefetch = 0 : i64, scratch_operands = 0 : i64, tpu.core_type = #tpu.core_type<tc>, window_params = [{transform_indices = @transform_0, window_bounds = array<i64: 1, 16, 128>}, {pipeline_mode = #tpu.pipeline_mode<synchronous>, transform_indices = @transform_1, window_bounds = array<i64: 1, 128>}, {pipeline_mode = #tpu.pipeline_mode<synchronous>, transform_indices = @transform_2, window_bounds = array<i64: 1, 128>}, {pipeline_mode = #tpu.pipeline_mode<synchronous>, transform_indices = @transform_3, window_bounds = array<i64: 128, 128>}, {transform_indices = @transform_4, window_bounds = array<i64: 1, 16, 128>}]} {
    %c0 = arith.constant 0 : index
    %c0_0 = arith.constant 0 : index
    %c0_1 = arith.constant 0 : index
    %0 = vector.load %arg2[%c0, %c0_0, %c0_1] : memref<1x16x128xf32, #tpu.memory_space<vmem>>, vector<1x16x128xf32>
    %1 = vector.shape_cast %0 : vector<1x16x128xf32> to vector<16x128xf32>
    %cst = arith.constant dense<0.000000e+00> : vector<16xf32>
    %2 = vector.multi_reduction <add>, %1, %cst [1] : vector<16x128xf32> to vector<16xf32>
    %3 = vector.shape_cast %2 : vector<16xf32> to vector<16x1xf32>
    %cst_2 = arith.constant 1.280000e+02 : f32
    %4 = vector.broadcast %cst_2 : f32 to vector<16x1xf32>
    %5 = arith.divf %3, %4 : vector<16x1xf32>
    %6 = vector.broadcast %5 : vector<16x1xf32> to vector<16x128xf32>
    %7 = arith.subf %1, %6 : vector<16x128xf32>
    %8 = arith.mulf %7, %7 : vector<16x128xf32>
    %cst_3 = arith.constant dense<0.000000e+00> : vector<16xf32>
    %9 = vector.multi_reduction <add>, %8, %cst_3 [1] : vector<16x128xf32> to vector<16xf32>
    %10 = vector.shape_cast %9 : vector<16xf32> to vector<16x1xf32>
    %cst_4 = arith.constant 1.280000e+02 : f32
    %11 = vector.broadcast %cst_4 : f32 to vector<16x1xf32>
    %12 = arith.divf %10, %11 : vector<16x1xf32>
    %cst_5 = arith.constant 9.99999974E-6 : f32
    %13 = vector.broadcast %cst_5 : f32 to vector<16x1xf32>
    %14 = arith.addf %12, %13 : vector<16x1xf32>
    %15 = math.rsqrt %14 : vector<16x1xf32>
    %16 = vector.broadcast %15 : vector<16x1xf32> to vector<16x128xf32>
    %17 = arith.mulf %7, %16 : vector<16x128xf32>
    %c0_6 = arith.constant 0 : index
    %c0_7 = arith.constant 0 : index
    %18 = vector.load %arg3[%c0_6, %c0_7] : memref<1x128xf32, #tpu.memory_space<vmem>>, vector<1x128xf32>
    %19 = vector.broadcast %18 : vector<1x128xf32> to vector<16x128xf32>
    %20 = arith.mulf %17, %19 : vector<16x128xf32>
    %c0_8 = arith.constant 0 : index
    %c0_9 = arith.constant 0 : index
    %21 = vector.load %arg4[%c0_8, %c0_9] : memref<1x128xf32, #tpu.memory_space<vmem>>, vector<1x128xf32>
    %22 = vector.broadcast %21 : vector<1x128xf32> to vector<16x128xf32>
    %23 = arith.addf %20, %22 : vector<16x128xf32>
    %24 = arith.truncf %23 : vector<16x128xf32> to vector<16x128xbf16>
    %c0_10 = arith.constant 0 : index
    %c0_11 = arith.constant 0 : index
    %25 = vector.load %arg5[%c0_10, %c0_11] : memref<128x128xbf16, #tpu.memory_space<vmem>>, vector<128x128xbf16>
    %cst_12 = arith.constant dense<0.000000e+00> : vector<16x128xf32>
    %26 = tpu.matmul %24, %25, %cst_12 {dimension_numbers = #tpu.dot_dimension_numbers<[1], [0], [0], [1], [0, 0, 1, 1], [], []>} : vector<16x128xbf16>, vector<128x128xbf16>, vector<16x128xf32> -> vector<16x128xf32>
    %27 = arith.truncf %26 : vector<16x128xf32> to vector<16x128xbf16>
    %c0_13 = arith.constant 0 : index
    %c0_14 = arith.constant 0 : index
    %c0_15 = arith.constant 0 : index
    %28 = vector.load %arg6[%c0_13, %c0_14, %c0_15] : memref<1x16x128xbf16, #tpu.memory_space<vmem>>, vector<1x16x128xbf16>
    %29 = vector.shape_cast %28 : vector<1x16x128xbf16> to vector<16x128xbf16>
    %30 = vector.shape_cast %27 : vector<16x128xbf16> to vector<1x16x128xbf16>
    tpu.vector_store %arg6[%c0_13, %c0_14, %c0_15], %30 {strides = array<i32>} : memref<1x16x128xbf16, #tpu.memory_space<vmem>>, vector<1x16x128xbf16>,
    return
  }
  func.func @transform_0(%arg0: i32, %arg1: i32) -> (i32, i32, i32) {
    %c0_i32 = arith.constant 0 : i32
    %c0_i32_0 = arith.constant 0 : i32
    return %arg0, %arg1, %c0_i32 : i32, i32, i32
  }
  func.func @transform_1(%arg0: i32, %arg1: i32) -> (i32, i32) {
    %c0_i32 = arith.constant 0 : i32
    %c0_i32_0 = arith.constant 0 : i32
    %c0_i32_1 = arith.constant 0 : i32
    return %c0_i32, %c0_i32_0 : i32, i32
  }
  func.func @transform_2(%arg0: i32, %arg1: i32) -> (i32, i32) {
    %c0_i32 = arith.constant 0 : i32
    %c0_i32_0 = arith.constant 0 : i32
    %c0_i32_1 = arith.constant 0 : i32
    return %c0_i32, %c0_i32_0 : i32, i32
  }
  func.func @transform_3(%arg0: i32, %arg1: i32) -> (i32, i32) {
    %c0_i32 = arith.constant 0 : i32
    %c0_i32_0 = arith.constant 0 : i32
    %c0_i32_1 = arith.constant 0 : i32
    return %c0_i32, %c0_i32_0 : i32, i32
  }
  func.func @transform_4(%arg0: i32, %arg1: i32) -> (i32, i32, i32) {
    %c0_i32 = arith.constant 0 : i32
    %c0_i32_0 = arith.constant 0 : i32
    return %arg0, %arg1, %c0_i32 : i32, i32, i32
  }
}

module attributes {stable_mosaic.version = 11 : i64} {
  func.func @_flash_attention_kernel(%arg0: i32, %arg1: i32, %arg2: i32, %arg3: memref<1x16x128xbf16, #tpu.memory_space<vmem>>, %arg4: memref<1x8x128xbf16, #tpu.memory_space<vmem>>, %arg5: memref<1x8x128xbf16, #tpu.memory_space<vmem>>, %arg6: memref<128x128xbf16, #tpu.memory_space<vmem>>, %arg7: memref<1x128xf32, #tpu.memory_space<vmem>>, %arg8: memref<1x16x128xf32, #tpu.memory_space<vmem>>, %arg9: memref<16x8x16xbf16, #tpu.memory_space<vmem>>, %arg10: memref<8x16x1xf32, #tpu.memory_space<vmem>>, %arg11: memref<8x16x1xf32, #tpu.memory_space<vmem>>, %arg12: memref<8x16x16xf32, #tpu.memory_space<vmem>>) attributes {dimension_semantics = [#tpu.dimension_semantics<parallel>, #tpu.dimension_semantics<parallel>, #tpu.dimension_semantics<arbitrary>], iteration_bounds = array<i64: 2, 1, 1>, scalar_prefetch = 0 : i64, scratch_operands = 4 : i64, tpu.core_type = #tpu.core_type<tc>, window_params = [{transform_indices = @transform_0, window_bounds = array<i64: 1, 16, 128>}, {transform_indices = @transform_1, window_bounds = array<i64: 1, 8, 128>}, {transform_indices = @transform_2, window_bounds = array<i64: 1, 8, 128>}, {pipeline_mode = #tpu.pipeline_mode<synchronous>, transform_indices = @transform_3, window_bounds = array<i64: 128, 128>}, {pipeline_mode = #tpu.pipeline_mode<synchronous>, transform_indices = @transform_4, window_bounds = array<i64: 1, 128>}, {transform_indices = @transform_5, window_bounds = array<i64: 1, 16, 128>}]} {
    %c0_i32 = arith.constant 0 : i32
    %0 = arith.cmpi eq, %arg2, %c0_i32 : i32
    %1 = arith.extui %0 : i1 to i32
    %c0_i32_0 = arith.constant 0 : i32
    %2 = arith.cmpi ne, %1, %c0_i32_0 : i32
    scf.if %2 {
      %c0_32 = arith.constant 0 : index
      %c0_33 = arith.constant 0 : index
      %c0_34 = arith.constant 0 : index
      %37 = vector.load %arg3[%c0_32, %c0_33, %c0_34] : memref<1x16x128xbf16, #tpu.memory_space<vmem>>, vector<1x16x128xbf16>
      %38 = vector.shape_cast %37 : vector<1x16x128xbf16> to vector<16x128xbf16>
      %39 = vector.shape_cast %38 : vector<16x128xbf16> to vector<16x8x16xbf16>
      %c0_35 = arith.constant 0 : index
      %c0_36 = arith.constant 0 : index
      %c0_37 = arith.constant 0 : index
      %40 = vector.load %arg9[%c0_35, %c0_36, %c0_37] : memref<16x8x16xbf16, #tpu.memory_space<vmem>>, vector<16x8x16xbf16>
      tpu.vector_store %arg9[%c0_35, %c0_36, %c0_37], %39 {strides = array<i32>} : memref<16x8x16xbf16, #tpu.memory_space<vmem>>, vector<16x8x16xbf16>,
      %cst_38 = arith.constant 0xFF800000 : f32
      %41 = vector.broadcast %cst_38 : f32 to vector<8x16x1xf32>
      %c0_39 = arith.constant 0 : index
      %c0_40 = arith.constant 0 : index
      %c0_41 = arith.constant 0 : index
      %42 = vector.load %arg10[%c0_39, %c0_40, %c0_41] : memref<8x16x1xf32, #tpu.memory_space<vmem>>, vector<8x16x1xf32>
      tpu.vector_store %arg10[%c0_39, %c0_40, %c0_41], %41 {strides = array<i32>} : memref<8x16x1xf32, #tpu.memory_space<vmem>>, vector<8x16x1xf32>,
      %cst_42 = arith.constant 0.000000e+00 : f32
      %43 = vector.broadcast %cst_42 : f32 to vector<8x16x1xf32>
      %c0_43 = arith.constant 0 : index
      %c0_44 = arith.constant 0 : index
      %c0_45 = arith.constant 0 : index
      %44 = vector.load %arg11[%c0_43, %c0_44, %c0_45] : memref<8x16x1xf32, #tpu.memory_space<vmem>>, vector<8x16x1xf32>
      tpu.vector_store %arg11[%c0_43, %c0_44, %c0_45], %43 {strides = array<i32>} : memref<8x16x1xf32, #tpu.memory_space<vmem>>, vector<8x16x1xf32>,
      %cst_46 = arith.constant 0.000000e+00 : f32
      %45 = vector.broadcast %cst_46 : f32 to vector<8x16x16xf32>
      %c0_47 = arith.constant 0 : index
      %c0_48 = arith.constant 0 : index
      %c0_49 = arith.constant 0 : index
      %46 = vector.load %arg12[%c0_47, %c0_48, %c0_49] : memref<8x16x16xf32, #tpu.memory_space<vmem>>, vector<8x16x16xf32>
      tpu.vector_store %arg12[%c0_47, %c0_48, %c0_49], %45 {strides = array<i32>} : memref<8x16x16xf32, #tpu.memory_space<vmem>>, vector<8x16x16xf32>,
    } else {
    }
    %c0 = arith.constant 0 : index
    %c0_1 = arith.constant 0 : index
    %c0_2 = arith.constant 0 : index
    %3 = vector.load %arg4[%c0, %c0_1, %c0_2] : memref<1x8x128xbf16, #tpu.memory_space<vmem>>, vector<1x8x128xbf16>
    %4 = vector.shape_cast %3 : vector<1x8x128xbf16> to vector<8x128xbf16>
    %5 = vector.shape_cast %4 : vector<8x128xbf16> to vector<8x8x16xbf16>
    %c0_3 = arith.constant 0 : index
    %c0_4 = arith.constant 0 : index
    %c0_5 = arith.constant 0 : index
    %6 = vector.load %arg5[%c0_3, %c0_4, %c0_5] : memref<1x8x128xbf16, #tpu.memory_space<vmem>>, vector<1x8x128xbf16>
    %7 = vector.shape_cast %6 : vector<1x8x128xbf16> to vector<8x128xbf16>
    %8 = vector.shape_cast %7 : vector<8x128xbf16> to vector<8x8x16xbf16>
    %c0_6 = arith.constant 0 : index
    %c0_7 = arith.constant 0 : index
    %c0_8 = arith.constant 0 : index
    %9 = vector.load %arg9[%c0_6, %c0_7, %c0_8] : memref<16x8x16xbf16, #tpu.memory_space<vmem>>, vector<16x8x16xbf16>
    %cst = arith.constant dense<0.000000e+00> : vector<8x16x8xf32>
    %10 = tpu.matmul %9, %5, %cst {dimension_numbers = #tpu.dot_dimension_numbers<[2], [2], [0], [0], [0, 1, 0, 0, 1, 0], [1], [1]>} : vector<16x8x16xbf16>, vector<8x8x16xbf16>, vector<8x16x8xf32> -> vector<8x16x8xf32>
    %c0_9 = arith.constant 0 : index
    %c0_10 = arith.constant 0 : index
    %c0_11 = arith.constant 0 : index
    %11 = vector.load %arg10[%c0_9, %c0_10, %c0_11] : memref<8x16x1xf32, #tpu.memory_space<vmem>>, vector<8x16x1xf32>
    %cst_12 = arith.constant dense<0xFF800000> : vector<8x16xf32>
    %12 = vector.multi_reduction <maximumf>, %10, %cst_12 [2] : vector<8x16x8xf32> to vector<8x16xf32>
    %13 = vector.shape_cast %12 : vector<8x16xf32> to vector<8x16x1xf32>
    %14 = arith.maximumf %11, %13 : vector<8x16x1xf32>
    %15 = arith.subf %11, %14 : vector<8x16x1xf32>
    %16 = math.exp %15 : vector<8x16x1xf32>
    %17 = vector.broadcast %14 : vector<8x16x1xf32> to vector<8x16x8xf32>
    %18 = arith.subf %10, %17 : vector<8x16x8xf32>
    %19 = math.exp %18 : vector<8x16x8xf32>
    %c0_13 = arith.constant 0 : index
    %c0_14 = arith.constant 0 : index
    %c0_15 = arith.constant 0 : index
    %20 = vector.load %arg11[%c0_13, %c0_14, %c0_15] : memref<8x16x1xf32, #tpu.memory_space<vmem>>, vector<8x16x1xf32>
    %21 = arith.mulf %16, %20 : vector<8x16x1xf32>
    %cst_16 = arith.constant dense<0.000000e+00> : vector<8x16xf32>
    %22 = vector.multi_reduction <add>, %19, %cst_16 [2] : vector<8x16x8xf32> to vector<8x16xf32>
    %23 = vector.shape_cast %22 : vector<8x16xf32> to vector<8x16x1xf32>
    %24 = arith.addf %21, %23 : vector<8x16x1xf32>
    %c0_17 = arith.constant 0 : index
    %c0_18 = arith.constant 0 : index
    %c0_19 = arith.constant 0 : index
    %25 = vector.load %arg11[%c0_17, %c0_18, %c0_19] : memref<8x16x1xf32, #tpu.memory_space<vmem>>, vector<8x16x1xf32>
    tpu.vector_store %arg11[%c0_17, %c0_18, %c0_19], %24 {strides = array<i32>} : memref<8x16x1xf32, #tpu.memory_space<vmem>>, vector<8x16x1xf32>,
    %26 = arith.truncf %19 : vector<8x16x8xf32> to vector<8x16x8xbf16>
    %cst_20 = arith.constant dense<0.000000e+00> : vector<8x16x16xf32>
    %27 = tpu.matmul %26, %8, %cst_20 {dimension_numbers = #tpu.dot_dimension_numbers<[2], [0], [1], [2], [0, 0, 0, 1, 1, 2], [0], [1]>} : vector<8x16x8xbf16>, vector<8x8x16xbf16>, vector<8x16x16xf32> -> vector<8x16x16xf32>
    %c0_21 = arith.constant 0 : index
    %c0_22 = arith.constant 0 : index
    %c0_23 = arith.constant 0 : index
    %28 = vector.load %arg12[%c0_21, %c0_22, %c0_23] : memref<8x16x16xf32, #tpu.memory_space<vmem>>, vector<8x16x16xf32>
    %29 = vector.broadcast %16 : vector<8x16x1xf32> to vector<8x16x16xf32>
    %30 = arith.mulf %29, %28 : vector<8x16x16xf32>
    %31 = arith.addf %30, %27 : vector<8x16x16xf32>
    %c0_24 = arith.constant 0 : index
    %c0_25 = arith.constant 0 : index
    %c0_26 = arith.constant 0 : index
    %32 = vector.load %arg12[%c0_24, %c0_25, %c0_26] : memref<8x16x16xf32, #tpu.memory_space<vmem>>, vector<8x16x16xf32>
    tpu.vector_store %arg12[%c0_24, %c0_25, %c0_26], %31 {strides = array<i32>} : memref<8x16x16xf32, #tpu.memory_space<vmem>>, vector<8x16x16xf32>,
    %c0_27 = arith.constant 0 : index
    %c0_28 = arith.constant 0 : index
    %c0_29 = arith.constant 0 : index
    %33 = vector.load %arg10[%c0_27, %c0_28, %c0_29] : memref<8x16x1xf32, #tpu.memory_space<vmem>>, vector<8x16x1xf32>
    tpu.vector_store %arg10[%c0_27, %c0_28, %c0_29], %14 {strides = array<i32>} : memref<8x16x1xf32, #tpu.memory_space<vmem>>, vector<8x16x1xf32>,
    %c0_i32_30 = arith.constant 0 : i32
    %34 = arith.cmpi eq, %arg2, %c0_i32_30 : i32
    %35 = arith.extui %34 : i1 to i32
    %c0_i32_31 = arith.constant 0 : i32
    %36 = arith.cmpi ne, %35, %c0_i32_31 : i32
    scf.if %36 {
      %c0_32 = arith.constant 0 : index
      %c0_33 = arith.constant 0 : index
      %c0_34 = arith.constant 0 : index
      %37 = vector.load %arg12[%c0_32, %c0_33, %c0_34] : memref<8x16x16xf32, #tpu.memory_space<vmem>>, vector<8x16x16xf32>
      %c0_35 = arith.constant 0 : index
      %c0_36 = arith.constant 0 : index
      %c0_37 = arith.constant 0 : index
      %38 = vector.load %arg11[%c0_35, %c0_36, %c0_37] : memref<8x16x1xf32, #tpu.memory_space<vmem>>, vector<8x16x1xf32>
      %39 = tpu.reciprocal %38 {approx = true} : vector<8x16x1xf32> -> vector<8x16x1xf32>
      %40 = vector.broadcast %39 : vector<8x16x1xf32> to vector<8x16x16xf32>
      %41 = arith.mulf %37, %40 : vector<8x16x16xf32>
      %42 = tpu.transpose %41, [1, 0, 2] : vector<8x16x16xf32> -> vector<16x8x16xf32>
      %43 = vector.shape_cast %42 : vector<16x8x16xf32> to vector<16x128xf32>
      %44 = arith.truncf %43 : vector<16x128xf32> to vector<16x128xbf16>
      %c0_38 = arith.constant 0 : index
      %c0_39 = arith.constant 0 : index
      %45 = vector.load %arg6[%c0_38, %c0_39] : memref<128x128xbf16, #tpu.memory_space<vmem>>, vector<128x128xbf16>
      %cst_40 = arith.constant dense<0.000000e+00> : vector<16x128xf32>
      %46 = tpu.matmul %44, %45, %cst_40 {dimension_numbers = #tpu.dot_dimension_numbers<[1], [0], [0], [1], [0, 0, 1, 1], [], []>} : vector<16x128xbf16>, vector<128x128xbf16>, vector<16x128xf32> -> vector<16x128xf32>
      %c0_41 = arith.constant 0 : index
      %c0_42 = arith.constant 0 : index
      %47 = vector.load %arg7[%c0_41, %c0_42] : memref<1x128xf32, #tpu.memory_space<vmem>>, vector<1x128xf32>
      %48 = vector.broadcast %47 : vector<1x128xf32> to vector<16x128xf32>
      %49 = arith.addf %46, %48 : vector<16x128xf32>
      %c0_43 = arith.constant 0 : index
      %c0_44 = arith.constant 0 : index
      %c0_45 = arith.constant 0 : index
      %50 = vector.load %arg8[%c0_43, %c0_44, %c0_45] : memref<1x16x128xf32, #tpu.memory_space<vmem>>, vector<1x16x128xf32>
      %51 = vector.shape_cast %50 : vector<1x16x128xf32> to vector<16x128xf32>
      %52 = vector.shape_cast %49 : vector<16x128xf32> to vector<1x16x128xf32>
      tpu.vector_store %arg8[%c0_43, %c0_44, %c0_45], %52 {strides = array<i32>} : memref<1x16x128xf32, #tpu.memory_space<vmem>>, vector<1x16x128xf32>,
    } else {
    }
    return
  }
  func.func @transform_0(%arg0: i32, %arg1: i32, %arg2: i32) -> (i32, i32, i32) {
    %c0_i32 = arith.constant 0 : i32
    %c0_i32_0 = arith.constant 0 : i32
    return %arg0, %arg1, %c0_i32 : i32, i32, i32
  }
  func.func @transform_1(%arg0: i32, %arg1: i32, %arg2: i32) -> (i32, i32, i32) {
    %c0_i32 = arith.constant 0 : i32
    %c0_i32_0 = arith.constant 0 : i32
    return %arg0, %arg2, %c0_i32 : i32, i32, i32
  }
  func.func @transform_2(%arg0: i32, %arg1: i32, %arg2: i32) -> (i32, i32, i32) {
    %c0_i32 = arith.constant 0 : i32
    %c0_i32_0 = arith.constant 0 : i32
    return %arg0, %arg2, %c0_i32 : i32, i32, i32
  }
  func.func @transform_3(%arg0: i32, %arg1: i32, %arg2: i32) -> (i32, i32) {
    %c0_i32 = arith.constant 0 : i32
    %c0_i32_0 = arith.constant 0 : i32
    %c0_i32_1 = arith.constant 0 : i32
    return %c0_i32, %c0_i32_0 : i32, i32
  }
  func.func @transform_4(%arg0: i32, %arg1: i32, %arg2: i32) -> (i32, i32) {
    %c0_i32 = arith.constant 0 : i32
    %c0_i32_0 = arith.constant 0 : i32
    %c0_i32_1 = arith.constant 0 : i32
    return %c0_i32, %c0_i32_0 : i32, i32
  }
  func.func @transform_5(%arg0: i32, %arg1: i32, %arg2: i32) -> (i32, i32, i32) {
    %c0_i32 = arith.constant 0 : i32
    %c0_i32_0 = arith.constant 0 : i32
    return %arg0, %arg1, %c0_i32 : i32, i32, i32
  }
}

module attributes {stable_mosaic.version = 11 : i64} {
  func.func @_ln_proj_kernel(%arg0: i32, %arg1: i32, %arg2: memref<1x8x128xf32, #tpu.memory_space<vmem>>, %arg3: memref<1x128xf32, #tpu.memory_space<vmem>>, %arg4: memref<1x128xf32, #tpu.memory_space<vmem>>, %arg5: memref<128x128xbf16, #tpu.memory_space<vmem>>, %arg6: memref<1x8x128xbf16, #tpu.memory_space<vmem>>) attributes {dimension_semantics = [#tpu.dimension_semantics<parallel>, #tpu.dimension_semantics<parallel>], iteration_bounds = array<i64: 2, 1>, scalar_prefetch = 0 : i64, scratch_operands = 0 : i64, tpu.core_type = #tpu.core_type<tc>, window_params = [{transform_indices = @transform_0, window_bounds = array<i64: 1, 8, 128>}, {pipeline_mode = #tpu.pipeline_mode<synchronous>, transform_indices = @transform_1, window_bounds = array<i64: 1, 128>}, {pipeline_mode = #tpu.pipeline_mode<synchronous>, transform_indices = @transform_2, window_bounds = array<i64: 1, 128>}, {pipeline_mode = #tpu.pipeline_mode<synchronous>, transform_indices = @transform_3, window_bounds = array<i64: 128, 128>}, {transform_indices = @transform_4, window_bounds = array<i64: 1, 8, 128>}]} {
    %c0 = arith.constant 0 : index
    %c0_0 = arith.constant 0 : index
    %c0_1 = arith.constant 0 : index
    %0 = vector.load %arg2[%c0, %c0_0, %c0_1] : memref<1x8x128xf32, #tpu.memory_space<vmem>>, vector<1x8x128xf32>
    %1 = vector.shape_cast %0 : vector<1x8x128xf32> to vector<8x128xf32>
    %cst = arith.constant dense<0.000000e+00> : vector<8xf32>
    %2 = vector.multi_reduction <add>, %1, %cst [1] : vector<8x128xf32> to vector<8xf32>
    %3 = vector.shape_cast %2 : vector<8xf32> to vector<8x1xf32>
    %cst_2 = arith.constant 1.280000e+02 : f32
    %4 = vector.broadcast %cst_2 : f32 to vector<8x1xf32>
    %5 = arith.divf %3, %4 : vector<8x1xf32>
    %6 = vector.broadcast %5 : vector<8x1xf32> to vector<8x128xf32>
    %7 = arith.subf %1, %6 : vector<8x128xf32>
    %8 = arith.mulf %7, %7 : vector<8x128xf32>
    %cst_3 = arith.constant dense<0.000000e+00> : vector<8xf32>
    %9 = vector.multi_reduction <add>, %8, %cst_3 [1] : vector<8x128xf32> to vector<8xf32>
    %10 = vector.shape_cast %9 : vector<8xf32> to vector<8x1xf32>
    %cst_4 = arith.constant 1.280000e+02 : f32
    %11 = vector.broadcast %cst_4 : f32 to vector<8x1xf32>
    %12 = arith.divf %10, %11 : vector<8x1xf32>
    %cst_5 = arith.constant 9.99999974E-6 : f32
    %13 = vector.broadcast %cst_5 : f32 to vector<8x1xf32>
    %14 = arith.addf %12, %13 : vector<8x1xf32>
    %15 = math.rsqrt %14 : vector<8x1xf32>
    %16 = vector.broadcast %15 : vector<8x1xf32> to vector<8x128xf32>
    %17 = arith.mulf %7, %16 : vector<8x128xf32>
    %c0_6 = arith.constant 0 : index
    %c0_7 = arith.constant 0 : index
    %18 = vector.load %arg3[%c0_6, %c0_7] : memref<1x128xf32, #tpu.memory_space<vmem>>, vector<1x128xf32>
    %19 = vector.broadcast %18 : vector<1x128xf32> to vector<8x128xf32>
    %20 = arith.mulf %17, %19 : vector<8x128xf32>
    %c0_8 = arith.constant 0 : index
    %c0_9 = arith.constant 0 : index
    %21 = vector.load %arg4[%c0_8, %c0_9] : memref<1x128xf32, #tpu.memory_space<vmem>>, vector<1x128xf32>
    %22 = vector.broadcast %21 : vector<1x128xf32> to vector<8x128xf32>
    %23 = arith.addf %20, %22 : vector<8x128xf32>
    %24 = arith.truncf %23 : vector<8x128xf32> to vector<8x128xbf16>
    %c0_10 = arith.constant 0 : index
    %c0_11 = arith.constant 0 : index
    %25 = vector.load %arg5[%c0_10, %c0_11] : memref<128x128xbf16, #tpu.memory_space<vmem>>, vector<128x128xbf16>
    %cst_12 = arith.constant dense<0.000000e+00> : vector<8x128xf32>
    %26 = tpu.matmul %24, %25, %cst_12 {dimension_numbers = #tpu.dot_dimension_numbers<[1], [0], [0], [1], [0, 0, 1, 1], [], []>} : vector<8x128xbf16>, vector<128x128xbf16>, vector<8x128xf32> -> vector<8x128xf32>
    %27 = arith.truncf %26 : vector<8x128xf32> to vector<8x128xbf16>
    %c0_13 = arith.constant 0 : index
    %c0_14 = arith.constant 0 : index
    %c0_15 = arith.constant 0 : index
    %28 = vector.load %arg6[%c0_13, %c0_14, %c0_15] : memref<1x8x128xbf16, #tpu.memory_space<vmem>>, vector<1x8x128xbf16>
    %29 = vector.shape_cast %28 : vector<1x8x128xbf16> to vector<8x128xbf16>
    %30 = vector.shape_cast %27 : vector<8x128xbf16> to vector<1x8x128xbf16>
    tpu.vector_store %arg6[%c0_13, %c0_14, %c0_15], %30 {strides = array<i32>} : memref<1x8x128xbf16, #tpu.memory_space<vmem>>, vector<1x8x128xbf16>,
    return
  }
  func.func @transform_0(%arg0: i32, %arg1: i32) -> (i32, i32, i32) {
    %c0_i32 = arith.constant 0 : i32
    %c0_i32_0 = arith.constant 0 : i32
    return %arg0, %arg1, %c0_i32 : i32, i32, i32
  }
  func.func @transform_1(%arg0: i32, %arg1: i32) -> (i32, i32) {
    %c0_i32 = arith.constant 0 : i32
    %c0_i32_0 = arith.constant 0 : i32
    %c0_i32_1 = arith.constant 0 : i32
    return %c0_i32, %c0_i32_0 : i32, i32
  }
  func.func @transform_2(%arg0: i32, %arg1: i32) -> (i32, i32) {
    %c0_i32 = arith.constant 0 : i32
    %c0_i32_0 = arith.constant 0 : i32
    %c0_i32_1 = arith.constant 0 : i32
    return %c0_i32, %c0_i32_0 : i32, i32
  }
  func.func @transform_3(%arg0: i32, %arg1: i32) -> (i32, i32) {
    %c0_i32 = arith.constant 0 : i32
    %c0_i32_0 = arith.constant 0 : i32
    %c0_i32_1 = arith.constant 0 : i32
    return %c0_i32, %c0_i32_0 : i32, i32
  }
  func.func @transform_4(%arg0: i32, %arg1: i32) -> (i32, i32, i32) {
    %c0_i32 = arith.constant 0 : i32
    %c0_i32_0 = arith.constant 0 : i32
    return %arg0, %arg1, %c0_i32 : i32, i32, i32
  }
}

module attributes {stable_mosaic.version = 11 : i64} {
  func.func @_ln_proj_kernel(%arg0: i32, %arg1: i32, %arg2: memref<1x8x128xf32, #tpu.memory_space<vmem>>, %arg3: memref<1x128xf32, #tpu.memory_space<vmem>>, %arg4: memref<1x128xf32, #tpu.memory_space<vmem>>, %arg5: memref<128x128xbf16, #tpu.memory_space<vmem>>, %arg6: memref<1x8x128xbf16, #tpu.memory_space<vmem>>) attributes {dimension_semantics = [#tpu.dimension_semantics<parallel>, #tpu.dimension_semantics<parallel>], iteration_bounds = array<i64: 2, 1>, scalar_prefetch = 0 : i64, scratch_operands = 0 : i64, tpu.core_type = #tpu.core_type<tc>, window_params = [{transform_indices = @transform_0, window_bounds = array<i64: 1, 8, 128>}, {pipeline_mode = #tpu.pipeline_mode<synchronous>, transform_indices = @transform_1, window_bounds = array<i64: 1, 128>}, {pipeline_mode = #tpu.pipeline_mode<synchronous>, transform_indices = @transform_2, window_bounds = array<i64: 1, 128>}, {pipeline_mode = #tpu.pipeline_mode<synchronous>, transform_indices = @transform_3, window_bounds = array<i64: 128, 128>}, {transform_indices = @transform_4, window_bounds = array<i64: 1, 8, 128>}]} {
    %c0 = arith.constant 0 : index
    %c0_0 = arith.constant 0 : index
    %c0_1 = arith.constant 0 : index
    %0 = vector.load %arg2[%c0, %c0_0, %c0_1] : memref<1x8x128xf32, #tpu.memory_space<vmem>>, vector<1x8x128xf32>
    %1 = vector.shape_cast %0 : vector<1x8x128xf32> to vector<8x128xf32>
    %cst = arith.constant dense<0.000000e+00> : vector<8xf32>
    %2 = vector.multi_reduction <add>, %1, %cst [1] : vector<8x128xf32> to vector<8xf32>
    %3 = vector.shape_cast %2 : vector<8xf32> to vector<8x1xf32>
    %cst_2 = arith.constant 1.280000e+02 : f32
    %4 = vector.broadcast %cst_2 : f32 to vector<8x1xf32>
    %5 = arith.divf %3, %4 : vector<8x1xf32>
    %6 = vector.broadcast %5 : vector<8x1xf32> to vector<8x128xf32>
    %7 = arith.subf %1, %6 : vector<8x128xf32>
    %8 = arith.mulf %7, %7 : vector<8x128xf32>
    %cst_3 = arith.constant dense<0.000000e+00> : vector<8xf32>
    %9 = vector.multi_reduction <add>, %8, %cst_3 [1] : vector<8x128xf32> to vector<8xf32>
    %10 = vector.shape_cast %9 : vector<8xf32> to vector<8x1xf32>
    %cst_4 = arith.constant 1.280000e+02 : f32
    %11 = vector.broadcast %cst_4 : f32 to vector<8x1xf32>
    %12 = arith.divf %10, %11 : vector<8x1xf32>
    %cst_5 = arith.constant 9.99999974E-6 : f32
    %13 = vector.broadcast %cst_5 : f32 to vector<8x1xf32>
    %14 = arith.addf %12, %13 : vector<8x1xf32>
    %15 = math.rsqrt %14 : vector<8x1xf32>
    %16 = vector.broadcast %15 : vector<8x1xf32> to vector<8x128xf32>
    %17 = arith.mulf %7, %16 : vector<8x128xf32>
    %c0_6 = arith.constant 0 : index
    %c0_7 = arith.constant 0 : index
    %18 = vector.load %arg3[%c0_6, %c0_7] : memref<1x128xf32, #tpu.memory_space<vmem>>, vector<1x128xf32>
    %19 = vector.broadcast %18 : vector<1x128xf32> to vector<8x128xf32>
    %20 = arith.mulf %17, %19 : vector<8x128xf32>
    %c0_8 = arith.constant 0 : index
    %c0_9 = arith.constant 0 : index
    %21 = vector.load %arg4[%c0_8, %c0_9] : memref<1x128xf32, #tpu.memory_space<vmem>>, vector<1x128xf32>
    %22 = vector.broadcast %21 : vector<1x128xf32> to vector<8x128xf32>
    %23 = arith.addf %20, %22 : vector<8x128xf32>
    %24 = arith.truncf %23 : vector<8x128xf32> to vector<8x128xbf16>
    %c0_10 = arith.constant 0 : index
    %c0_11 = arith.constant 0 : index
    %25 = vector.load %arg5[%c0_10, %c0_11] : memref<128x128xbf16, #tpu.memory_space<vmem>>, vector<128x128xbf16>
    %cst_12 = arith.constant dense<0.000000e+00> : vector<8x128xf32>
    %26 = tpu.matmul %24, %25, %cst_12 {dimension_numbers = #tpu.dot_dimension_numbers<[1], [0], [0], [1], [0, 0, 1, 1], [], []>} : vector<8x128xbf16>, vector<128x128xbf16>, vector<8x128xf32> -> vector<8x128xf32>
    %27 = arith.truncf %26 : vector<8x128xf32> to vector<8x128xbf16>
    %c0_13 = arith.constant 0 : index
    %c0_14 = arith.constant 0 : index
    %c0_15 = arith.constant 0 : index
    %28 = vector.load %arg6[%c0_13, %c0_14, %c0_15] : memref<1x8x128xbf16, #tpu.memory_space<vmem>>, vector<1x8x128xbf16>
    %29 = vector.shape_cast %28 : vector<1x8x128xbf16> to vector<8x128xbf16>
    %30 = vector.shape_cast %27 : vector<8x128xbf16> to vector<1x8x128xbf16>
    tpu.vector_store %arg6[%c0_13, %c0_14, %c0_15], %30 {strides = array<i32>} : memref<1x8x128xbf16, #tpu.memory_space<vmem>>, vector<1x8x128xbf16>,
    return
  }
  func.func @transform_0(%arg0: i32, %arg1: i32) -> (i32, i32, i32) {
    %c0_i32 = arith.constant 0 : i32
    %c0_i32_0 = arith.constant 0 : i32
    return %arg0, %arg1, %c0_i32 : i32, i32, i32
  }
  func.func @transform_1(%arg0: i32, %arg1: i32) -> (i32, i32) {
    %c0_i32 = arith.constant 0 : i32
    %c0_i32_0 = arith.constant 0 : i32
    %c0_i32_1 = arith.constant 0 : i32
    return %c0_i32, %c0_i32_0 : i32, i32
  }
  func.func @transform_2(%arg0: i32, %arg1: i32) -> (i32, i32) {
    %c0_i32 = arith.constant 0 : i32
    %c0_i32_0 = arith.constant 0 : i32
    %c0_i32_1 = arith.constant 0 : i32
    return %c0_i32, %c0_i32_0 : i32, i32
  }
  func.func @transform_3(%arg0: i32, %arg1: i32) -> (i32, i32) {
    %c0_i32 = arith.constant 0 : i32
    %c0_i32_0 = arith.constant 0 : i32
    %c0_i32_1 = arith.constant 0 : i32
    return %c0_i32, %c0_i32_0 : i32, i32
  }
  func.func @transform_4(%arg0: i32, %arg1: i32) -> (i32, i32, i32) {
    %c0_i32 = arith.constant 0 : i32
    %c0_i32_0 = arith.constant 0 : i32
    return %arg0, %arg1, %c0_i32 : i32, i32, i32
  }
}

</mosaic_0001>

<llo_original>
// kernel: cross_attention.5
$region0: #{cross_attention.5}
  #allocation0 [shape = 'u32[]', space=smem, size = 0x4, offset = 0x4, fixed_abs, tag = 'smem constant byte address 0x4 - core index']
  #allocation1 [shape = 'u32[144,128]{1,0:T(1,128)}', space=vmem, size = 0x12000, scoped, tag = 'internal scratch']
  %s0 = inlined_call_operand.hbm [shape: f32[2,8,128], index: 0, kind: input, shape index: {}]
  %s1 = inlined_call_operand.vmem [shape: f32[1,128], index: 1, kind: input, shape index: {}]
  %s2 = inlined_call_operand.vmem [shape: f32[1,128], index: 2, kind: input, shape index: {}]
  %s3 = inlined_call_operand.hbm [shape: bf16[128,128], index: 3, kind: input, shape index: {}]
  %s4 = inlined_call_operand.vmem [shape: bf16[2,8,128], index: 4, kind: output, shape index: {}]
  %s5 = sld [smem:[#allocation0]]
  $region57: #{cross_attention.5} parent=0
    _
  %s7 = ssub.s32 1, %s5
  %s8 = scalar_select 0, %s7, %s5
  $region1: #{cross_attention.5} parent=0
    #allocation2 [shape = 'u8[8192]{0}', space=vmem, size = 0x2000, scoped, tag = 'input window, operand 0']
    #allocation3 [shape = 's32[2]{0}', space=sflag, size = 0x8, scoped, tag = 'scoped memory for cross_attention.5']
    #allocation4 [shape = 'u8[32768]{0}', space=vmem, size = 0x8000, scoped, tag = 'input window, operand 3, single buffered']
    #allocation5 [shape = 's32[1]{0}', space=sflag, size = 0x4, scoped, tag = 'scoped memory for cross_attention.5']
    %9 = vsyncpa [#allocation3], 0
    %s10 = scalar_lea.sflag [#allocation3], 1
    %11 = vsyncpa %s10, 0
    %12 = vsyncpa [#allocation5], 0
    loop: start=0, step=1, limit=4
    $region2: #{cross_attention.5} parent=1 // loop_pre_header
      _
    $region3: #{cross_attention.5} parent=1 // loop_header
      %s14 = sphi 0, %s18
      %p15 = scmp.ge.s32.totalorder %s14, 4
      %s21 = sphi 0, %s33
      %s22 = sphi 0, %s29
      %s23 = sphi 0, %s21
      %s24 = sphi 0, %s22
      %s25 = sphi 0, %s23
      %s26 = sphi 0, %s24
      %s38 = sphi 0, %s40
      %s41 = sphi 0, %s38
      %s42 = sphi 0, %s41
      %s58 = sphi 0, %s42
      %s62 = sphi 0, %s62
      %s64 = sphi 0, %s62
      %s65 = sphi 0, %s64
      %s79 = sphi 0, %s65
      %s83 = sphi 0, %s83
      %s85 = sphi 0, %s83
      %s86 = sphi 0, %s85
      %s100 = sphi 0, %s86
      %s104 = sphi 0, %s104
      %s106 = sphi 0, %s104
      %s107 = sphi 0, %s106
      %s121 = sphi 0, %s107
      %s129 = sphi 0, %s131
      %s132 = sphi 0, %s129
      %s133 = sphi 0, %s132
      %s149 = sphi 0, %s133
    $region4: #{cross_attention.5} parent=1 // loop_header_branch
      %17 = sbr.rel (%p15) target = $region8
    $region5: #{cross_attention.5} parent=1 // loop_body
      %s19 = ssub.s32 %s14, 1
      %s20 = ssub.s32 %s14, 2
      %s27 = sadd.s32 1, %s22
      %p28 = scmp.ge.s32.totalorder %s27, 1
      %s29 = scalar_select %p28, 0, %s27
      %s30 = sadd.s32 1, %s21
      %s31 = scalar_select %p28, %s30, %s21
      %p32 = scmp.ge.s32.totalorder %s31, 2
      %s33 = scalar_select %p32, 0, %s31
      %s34 = ssub.s32 %s21, %s33
      %s35 = ssub.s32 %s22, %s29
      %s36 = sor.u32 %s34, %s35
      %p37 = scmp.eq.s32.totalorder %s36, 0
      %s39 = sadd.s32 %s38, 1
      %s40 = scalar_select %p37, %s38, %s39
      %p43 = pneg %p37
      %p44 = scmp.eq.s32.totalorder %s14, 1
      %p45 = por %p43, %p44
      %p46 = scmp.ne.s32.totalorder %s38, %s41
      %p47 = scmp.eq.s32.totalorder %s14, 0
      %p48 = por %p46, %p47
      %p49 = scmp.ne.s32.totalorder %s38, %s41
      %p50 = scmp.eq.s32.totalorder %s19, 1
      %p51 = por %p49, %p50
      %p52 = scmp.ne.s32.totalorder %s41, %s42
      %p53 = scmp.eq.s32.totalorder %s19, 0
      %p54 = por %p52, %p53
      %p55 = scmp.ne.s32.totalorder %s41, %s42
      %p56 = scmp.eq.s32.totalorder %s20, 1
      %p57 = por %p55, %p56
      %p59 = scmp.ne.s32.totalorder %s42, %s58
      %p60 = scmp.eq.s32.totalorder %s20, 0
      %p61 = por %p59, %p60
      %s63 = sadd.s32 %s62, 1
      %p66 = scmp.eq.s32.totalorder %s14, 1
      %p67 = scmp.ne.s32.totalorder %s62, %s64
      %p68 = scmp.eq.s32.totalorder %s14, 0
      %p69 = por %p67, %p68
      %p70 = scmp.ne.s32.totalorder %s62, %s64
      %p71 = scmp.eq.s32.totalorder %s19, 1
      %p72 = por %p70, %p71
      %p73 = scmp.ne.s32.totalorder %s64, %s65
      %p74 = scmp.eq.s32.totalorder %s19, 0
      %p75 = por %p73, %p74
      %p76 = scmp.ne.s32.totalorder %s64, %s65
      %p77 = scmp.eq.s32.totalorder %s20, 1
      %p78 = por %p76, %p77
      %p80 = scmp.ne.s32.totalorder %s65, %s79
      %p81 = scmp.eq.s32.totalorder %s20, 0
      %p82 = por %p80, %p81
      %s84 = sadd.s32 %s83, 1
      %p87 = scmp.eq.s32.totalorder %s14, 1
      %p88 = scmp.ne.s32.totalorder %s83, %s85
      %p89 = scmp.eq.s32.totalorder %s14, 0
      %p90 = por %p88, %p89
      %p91 = scmp.ne.s32.totalorder %s83, %s85
      %p92 = scmp.eq.s32.totalorder %s19, 1
      %p93 = por %p91, %p92
      %p94 = scmp.ne.s32.totalorder %s85, %s86
      %p95 = scmp.eq.s32.totalorder %s19, 0
      %p96 = por %p94, %p95
      %p97 = scmp.ne.s32.totalorder %s85, %s86
      %p98 = scmp.eq.s32.totalorder %s20, 1
      %p99 = por %p97, %p98
      %p101 = scmp.ne.s32.totalorder %s86, %s100
      %p102 = scmp.eq.s32.totalorder %s20, 0
      %p103 = por %p101, %p102
      %s105 = sadd.s32 %s104, 1
      %p108 = scmp.eq.s32.totalorder %s14, 1
      %p109 = scmp.ne.s32.totalorder %s104, %s106
      %p110 = scmp.eq.s32.totalorder %s14, 0
      %p111 = por %p109, %p110
      %p112 = scmp.ne.s32.totalorder %s104, %s106
      %p113 = scmp.eq.s32.totalorder %s19, 1
      %p114 = por %p112, %p113
      %p115 = scmp.ne.s32.totalorder %s106, %s107
      %p116 = scmp.eq.s32.totalorder %s19, 0
      %p117 = por %p115, %p116
      %p118 = scmp.ne.s32.totalorder %s106, %s107
      %p119 = scmp.eq.s32.totalorder %s20, 1
      %p120 = por %p118, %p119
      %p122 = scmp.ne.s32.totalorder %s107, %s121
      %p123 = scmp.eq.s32.totalorder %s20, 0
      %p124 = por %p122, %p123
      %s125 = ssub.s32 %s21, %s33
      %s126 = ssub.s32 %s22, %s29
      %s127 = sor.u32 %s125, %s126
      %p128 = scmp.eq.s32.totalorder %s127, 0
      %s130 = sadd.s32 %s129, 1
      %s131 = scalar_select %p128, %s129, %s130
      %p134 = pneg %p128
      %p135 = scmp.eq.s32.totalorder %s14, 1
      %p136 = por %p134, %p135
      %p137 = scmp.ne.s32.totalorder %s129, %s132
      %p138 = scmp.eq.s32.totalorder %s14, 0
      %p139 = por %p137, %p138
      %p140 = scmp.ne.s32.totalorder %s129, %s132
      %p141 = scmp.eq.s32.totalorder %s19, 1
      %p142 = por %p140, %p141
      %p143 = scmp.ne.s32.totalorder %s132, %s133
      %p144 = scmp.eq.s32.totalorder %s19, 0
      %p145 = por %p143, %p144
      %p146 = scmp.ne.s32.totalorder %s132, %s133
      %p147 = scmp.eq.s32.totalorder %s20, 1
      %p148 = por %p146, %p147
      %p150 = scmp.ne.s32.totalorder %s133, %s149
      %p151 = scmp.eq.s32.totalorder %s20, 0
      %p152 = por %p150, %p151
      %p153 = scmp.le.s32.totalorder 1, %s14
      %p154 = scmp.lt.s32.totalorder %s14, 3
      %p155 = pnand %p153, %p154
      %p156 = pneg %p155
      // Predicated region
      $region9: #{cross_attention.5} parent=5 // pred_check
        _
      $region10: #{cross_attention.5} parent=5 // pred_check_branch
        %158 = sbr.rel (%p155) target = $region12
      $region11: #{cross_attention.5} parent=5 // pred_region
        %s159 = ssub.s32 %s14, 1
        // Predicated region
        $region13: #{cross_attention.5} parent=11 // pred_check
          %p160 = pneg %p75
        $region14: #{cross_attention.5} parent=11 // pred_check_branch
          %162 = sbr.rel (%p160) target = $region16
        $region15: #{cross_attention.5} parent=11 // pred_region
          _
        $region16: #{cross_attention.5} parent=11 // pred_fallthru
          _
        // Predicated region
        $region17: #{cross_attention.5} parent=11 // pred_check
          %p163 = pneg %p96
        $region18: #{cross_attention.5} parent=11 // pred_check_branch
          %165 = sbr.rel (%p163) target = $region20
        $region19: #{cross_attention.5} parent=11 // pred_region
          _
        $region20: #{cross_attention.5} parent=11 // pred_fallthru
          _
        // Predicated region
        $region21: #{cross_attention.5} parent=11 // pred_check
          %p166 = pneg %p117
        $region22: #{cross_attention.5} parent=11 // pred_check_branch
          %168 = sbr.rel (%p166) target = $region24
        $region23: #{cross_attention.5} parent=11 // pred_region
          %s170 = ssub.s32 1024, 1024
          %171 = vsyncadd [#allocation5], %s170
          %s172 = sshll.u32 [#allocation4], 4
          %s173 = int_to_ptr.vmem [resolvable:$true] %s172
          %178 = dma.hbm_to_vmem [thread:$0]  %s3, 1024, %s173, [#allocation5], 64, 64, 4
        $region24: #{cross_attention.5} parent=11 // pred_fallthru
          _
      $region12: #{cross_attention.5} parent=5 // pred_fallthru
        _
      %p179 = scmp.lt.s32.totalorder %s14, 2
      // Predicated region
      $region25: #{cross_attention.5} parent=5 // pred_check
        %p180 = pneg %p179
      $region26: #{cross_attention.5} parent=5 // pred_check_branch
        %182 = sbr.rel (%p180) target = $region28
      $region27: #{cross_attention.5} parent=5 // pred_region
        // Predicated region
        $region29: #{cross_attention.5} parent=27 // pred_check
          %p183 = pneg %p48
        $region30: #{cross_attention.5} parent=27 // pred_check_branch
          %185 = sbr.rel (%p183) target = $region32
        $region31: #{cross_attention.5} parent=27 // pred_region
          %s186 = sand.u32 %s38, 1
          %s187 = scalar_lea.sflag [#allocation3], %s186
          %s188 = sand.u32 %s38, 1
          %s189 = smul.addr %s188, 8
          %s190 = scalar_lea.vmem [#allocation2], %s189
          %s192 = ssub.s32 128, 128
          %193 = vsyncadd %s187, %s192
          %s194 = sadd.s32 %s22, %s21
          %s195 = smul.addr %s194, 128
          %s196 = scalar_lea.hbm %s0, %s195
          %s198 = sshll.u32 %s190, 4
          %s199 = int_to_ptr.vmem [resolvable:$true] %s198
          %201 = dma.hbm_to_vmem [thread:$0]  %s196, 128, %s199, %s187
        $region32: #{cross_attention.5} parent=27 // pred_fallthru
          _
      $region28: #{cross_attention.5} parent=5 // pred_fallthru
        _
      %p202 = scmp.le.s32.totalorder 1, %s14
      %p203 = scmp.lt.s32.totalorder %s14, 3
      %p204 = pnand %p202, %p203
      %p205 = pneg %p204
      // Predicated region
      $region33: #{cross_attention.5} parent=5 // pred_check
        _
      $region34: #{cross_attention.5} parent=5 // pred_check_branch
        %207 = sbr.rel (%p204) target = $region36
      $region35: #{cross_attention.5} parent=5 // pred_region
        %s208 = ssub.s32 %s14, 1
        %s209 = sand.u32 %s41, 1
        %s210 = scalar_lea.sflag [#allocation3], %s209
        %s211 = sand.u32 %s41, 1
        %s212 = smul.addr %s211, 8
        %s213 = scalar_lea.vmem [#allocation2], %s212
        // Predicated region
        $region37: #{cross_attention.5} parent=35 // pred_check
          %p214 = pneg %p54
        $region38: #{cross_attention.5} parent=35 // pred_check_branch
          %216 = sbr.rel (%p214) target = $region40
        $region39: #{cross_attention.5} parent=35 // pred_region
          %217 = dma.done %s210, 128
        $region40: #{cross_attention.5} parent=35 // pred_fallthru
          _
        // Predicated region
        $region41: #{cross_attention.5} parent=35 // pred_check
          %p218 = pneg %p117
        $region42: #{cross_attention.5} parent=35 // pred_check_branch
          %220 = sbr.rel (%p218) target = $region44
        $region43: #{cross_attention.5} parent=35 // pred_region
          %221 = dma.done [#allocation5], 1024
        $region44: #{cross_attention.5} parent=35 // pred_fallthru
          _
        %s222 = sand.u32 %s41, 1
        %s223 = scalar_lea.sflag [#allocation3], %s222
        %s224 = sand.u32 %s41, 1
        %s225 = smul.addr %s224, 8
        %s226 = scalar_lea.vmem [#allocation2], %s225
        %p227 = pneg %p54
        %p228 = pneg %p51
        %p229 = pneg %p75
        %p230 = pneg %p72
        %p231 = pneg %p96
        %p232 = pneg %p93
        %p233 = pneg %p117
        %p234 = pneg %p114
        %p235 = pneg %p145
        %p236 = pneg %p142
        %p237 = scmp.lt.s32.totalorder %s23, 1
        %s238 = scalar_select %p237, %s23, 1
        %p239 = scmp.lt.s32.totalorder %s24, 0
        %s240 = scalar_select %p239, %s24, 0
        %s241 = sadd.s32 %s240, %s238
        %s242 = smul.addr %s241, 4
        %s243 = scalar_lea.vmem %s4, %s242
        %p244 = scmp.lt.s32.totalorder %s23, 1
        %s245 = scalar_select %p244, %s23, 1
        %p246 = scmp.lt.s32.totalorder %s24, 0
        %s247 = scalar_select %p246, %s24, 0
        %s248 = sadd.s32 %s247, %s245
        %s249 = smul.addr %s248, 4
        %s250 = scalar_lea.vmem %s4, %s249
        %v252 = vld [vmem:[%s213] sm:$0xff]
        %253 = vadd.xlane.f32.xlu0 %v252
        %v254 = vpop.xlane.xlu0 %253
        %v255 = vrcp.pop 128.0
        %v256 = vmul.f32 %v254, %v255
        %v257 = vsub.f32 %v252, %v256
        %v258 = vmul.f32 %v257, %v257
        %259 = vadd.xlane.f32.xlu0 %v258
        %v260 = vpop.xlane.xlu0 %259
        %v261 = vmul.f32 %v260, %v255
        %v262 = vadd.f32 %v261, 1e-05
        %v263 = vrsqrt.pop %v262
        %v264 = vmul.f32 %v257, %v263
        %v265 = vld [vmem:[%s1] sm:$0x1]
        %v267 = vlaneseq
        %v268 = vshrl.u32 %v267, 7
        %v269 = vsub.s32 0, %v268
        %v270 = vrot.slane %v265, %v269
        %v272 = vmul.f32 %v264, %v270
        %v273 = vld [vmem:[%s2] sm:$0x1]
        %v275 = vlaneseq
        %v276 = vshrl.u32 %v275, 7
        %v277 = vsub.s32 0, %v276
        %v278 = vrot.slane %v273, %v277
        %v280 = vadd.f32 %v272, %v278
        %v281 = vpack.c.bf16 %v280, %v280
        %v282 = vld [vmem:[#allocation4] sm:$0xf]
        %v283 = vld [vmem:[#allocation4 + $0x4] sm:$0xf]
        %v284 = vld [vmem:[#allocation4 + $0x8] sm:$0xf]
        %v285 = vld [vmem:[#allocation4 + $0xc] sm:$0xf]
        %v286 = vld [vmem:[#allocation4 + $0x10] sm:$0xf]
        %v287 = vld [vmem:[#allocation4 + $0x14] sm:$0xf]
        %v288 = vld [vmem:[#allocation4 + $0x18] sm:$0xf]
        %v289 = vld [vmem:[#allocation4 + $0x1c] sm:$0xf]
        %v290 = vld [vmem:[#allocation4 + $0x20] sm:$0xf]
        %v291 = vld [vmem:[#allocation4 + $0x24] sm:$0xf]
        %v292 = vld [vmem:[#allocation4 + $0x28] sm:$0xf]
        %v293 = vld [vmem:[#allocation4 + $0x2c] sm:$0xf]
        %v294 = vld [vmem:[#allocation4 + $0x30] sm:$0xf]
        %v295 = vld [vmem:[#allocation4 + $0x34] sm:$0xf]
        %v296 = vld [vmem:[#allocation4 + $0x38] sm:$0xf]
        %v297 = vld [vmem:[#allocation4 + $0x3c] sm:$0xf]
        %v314 = vunpack.c.l.b16 %v282
        %v315 = vunpack.c.l.b16 %v283
        %v316 = vunpack.c.l.b16 %v284
        %v317 = vunpack.c.l.b16 %v285
        %v318 = vunpack.c.l.b16 %v286
        %v319 = vunpack.c.l.b16 %v287
        %v320 = vunpack.c.l.b16 %v288
        %v321 = vunpack.c.l.b16 %v289
        %v322 = vunpack.c.l.b16 %v290
        %v323 = vunpack.c.l.b16 %v291
        %v324 = vunpack.c.l.b16 %v292
        %v325 = vunpack.c.l.b16 %v293
        %v326 = vunpack.c.l.b16 %v294
        %v327 = vunpack.c.l.b16 %v295
        %v328 = vunpack.c.l.b16 %v296
        %v329 = vunpack.c.l.b16 %v297
        %v330 = vpack.c.b16 %v315, %v314
        %v331 = vpack.c.b16 %v317, %v316
        %v332 = vpack.c.b16 %v319, %v318
        %v333 = vpack.c.b16 %v321, %v320
        %v334 = vpack.c.b16 %v323, %v322
        %v335 = vpack.c.b16 %v325, %v324
        %v336 = vpack.c.b16 %v327, %v326
        %v337 = vpack.c.b16 %v329, %v328
        %346 = vmatprep.subr.bf16.mxu0 0
        %347 = vmatpush1.bf16.msra.mxu0 %v337
        %348 = vmatprep.subr.bf16.mxu0 0
        %349 = vmatpush1.bf16.msra.mxu0 %v336
        %350 = vmatprep.subr.bf16.mxu0 0
        %351 = vmatpush1.bf16.msra.mxu0 %v335
        %352 = vmatprep.subr.bf16.mxu0 0
        %353 = vmatpush1.bf16.msra.mxu0 %v334
        %354 = vmatprep.subr.bf16.mxu0 0
        %355 = vmatpush1.bf16.msra.mxu0 %v333
        %356 = vmatprep.subr.bf16.mxu0 0
        %357 = vmatpush1.bf16.msra.mxu0 %v332
        %358 = vmatprep.subr.bf16.mxu0 0
        %359 = vmatpush1.bf16.msra.mxu0 %v331
        %360 = vmatprep.subr.bf16.mxu0 0
        %361 = vmatpush1.bf16.msra.mxu0 %v330
        %362 = vmatprep.subr.bf16.mxu0 0
        %363 = vmatpush2.bf16.msra.mxu0 0
        %364 = vmatprep.subr.bf16.mxu0 0
        %365 = vmatpush2.bf16.msra.mxu0 0
        %366 = vmatprep.subr.bf16.mxu0 0
        %367 = vmatpush2.bf16.msra.mxu0 0
        %368 = vmatprep.subr.bf16.mxu0 0
        %369 = vmatpush2.bf16.msra.mxu0 0
        %370 = vmatprep.subr.bf16.mxu0 0
        %371 = vmatpush2.bf16.msra.mxu0 0
        %372 = vmatprep.subr.bf16.mxu0 0
        %373 = vmatpush2.bf16.msra.mxu0 0
        %374 = vmatprep.subr.bf16.mxu0 0
        %375 = vmatpush2.bf16.msra.mxu0 0
        %376 = vmatprep.subr.bf16.mxu0 0
        %377 = vmatpush2.bf16.msra.mxu0 0
        %378 = vmatprep.mubr.bf16.mxu0 0
        %379 = vmatmul.mubr.bf16.gmra.mxu0 %v281
        %v380 = vpop.f32.mrf.mxu0
        %v381 = vadd.f32 0.0, %v380
        %v382 = vpop.f32.mrf.mxu0
        %v383 = vpop.f32.mrf.mxu0
        %v384 = vpop.f32.mrf.mxu0
        %385 = vdwg.mxu0
        %v386 = vpack.c.bf16 %v381, %v381
        %387 = vst [vmem:[%s250] sm:$0xf] %v386
        %p388 = scmp.lt.s32.totalorder %s23, 1
        %s389 = scalar_select %p388, %s23, 1
        %p390 = scmp.lt.s32.totalorder %s24, 0
        %s391 = scalar_select %p390, %s24, 0
        %s392 = sadd.s32 %s391, %s389
        %s393 = smul.addr %s392, 4
        %s394 = scalar_lea.vmem %s4, %s393
        // Predicated region
        $region45: #{cross_attention.5} parent=35 // pred_check
          %p395 = pneg %p142
        $region46: #{cross_attention.5} parent=35 // pred_check_branch
          %397 = sbr.rel (%p395) target = $region48
        $region47: #{cross_attention.5} parent=35 // pred_region
          _
        $region48: #{cross_attention.5} parent=35 // pred_fallthru
          _
      $region36: #{cross_attention.5} parent=5 // pred_fallthru
        _
      %p398 = scmp.le.s32.totalorder 2, %s14
      // Predicated region
      $region49: #{cross_attention.5} parent=5 // pred_check
        %p399 = pneg %p398
      $region50: #{cross_attention.5} parent=5 // pred_check_branch
        %401 = sbr.rel (%p399) target = $region52
      $region51: #{cross_attention.5} parent=5 // pred_region
        %s402 = ssub.s32 %s14, 2
        // Predicated region
        $region53: #{cross_attention.5} parent=51 // pred_check
          %p403 = pneg %p148
        $region54: #{cross_attention.5} parent=51 // pred_check_branch
          %405 = sbr.rel (%p403) target = $region56
        $region55: #{cross_attention.5} parent=51 // pred_region
          %p406 = scmp.lt.s32.totalorder %s25, 1
          %s407 = scalar_select %p406, %s25, 1
          %p408 = scmp.lt.s32.totalorder %s26, 0
          %s409 = scalar_select %p408, %s26, 0
          %s410 = sadd.s32 %s409, %s407
          %s411 = smul.addr %s410, 4
          %s412 = scalar_lea.vmem %s4, %s411
        $region56: #{cross_attention.5} parent=51 // pred_fallthru
          _
      $region52: #{cross_attention.5} parent=5 // pred_fallthru
        _
    $region6: #{cross_attention.5} parent=1 // loop_footer
      %s18 = sadd.s32 1, %s14
    $region7: #{cross_attention.5} parent=1 // loop_footer_branch
      %13 = sbr.rel target = $region3
    $region8: #{cross_attention.5} parent=1 // loop_exit
      _
    %413 = vsyncpa [#allocation3], 1
    %s414 = scalar_lea.sflag [#allocation3], 1
    %415 = vsyncpa %s414, 1
    %416 = vsyncpa [#allocation5], 1

// kernel: cross_attention.4
$region0: #{cross_attention.4}
  #allocation0 [shape = 'u32[]', space=smem, size = 0x4, offset = 0x4, fixed_abs, tag = 'smem constant byte address 0x4 - core index']
  #allocation1 [shape = 'u32[144,128]{1,0:T(1,128)}', space=vmem, size = 0x12000, scoped, tag = 'internal scratch']
  %s0 = inlined_call_operand.vmem [shape: f32[2,16,128], index: 0, kind: input, shape index: {}]
  %s1 = inlined_call_operand.vmem [shape: f32[1,128], index: 1, kind: input, shape index: {}]
  %s2 = inlined_call_operand.vmem [shape: f32[1,128], index: 2, kind: input, shape index: {}]
  %s3 = inlined_call_operand.vmem [shape: bf16[128,128], index: 3, kind: input, shape index: {}]
  %s4 = inlined_call_operand.vmem [shape: bf16[2,16,128], index: 4, kind: output, shape index: {}]
  %s5 = sld [smem:[#allocation0]]
  $region49: #{cross_attention.4} parent=0
    _
  %s7 = ssub.s32 1, %s5
  %s8 = scalar_select 0, %s7, %s5
  loop: start=0, step=1, limit=4
  $region2: #{cross_attention.4} parent=0 // loop_pre_header
    _
  $region3: #{cross_attention.4} parent=0 // loop_header
    %s10 = sphi 0, %s14
    %p11 = scmp.ge.s32.totalorder %s10, 4
    %s17 = sphi 0, %s29
    %s18 = sphi 0, %s25
    %s19 = sphi 0, %s17
    %s20 = sphi 0, %s18
    %s21 = sphi 0, %s19
    %s22 = sphi 0, %s20
    %s34 = sphi 0, %s36
    %s37 = sphi 0, %s34
    %s38 = sphi 0, %s37
    %s54 = sphi 0, %s38
    %s58 = sphi 0, %s58
    %s60 = sphi 0, %s58
    %s61 = sphi 0, %s60
    %s75 = sphi 0, %s61
    %s79 = sphi 0, %s79
    %s81 = sphi 0, %s79
    %s82 = sphi 0, %s81
    %s96 = sphi 0, %s82
    %s100 = sphi 0, %s100
    %s102 = sphi 0, %s100
    %s103 = sphi 0, %s102
    %s117 = sphi 0, %s103
    %s125 = sphi 0, %s127
    %s128 = sphi 0, %s125
    %s129 = sphi 0, %s128
    %s145 = sphi 0, %s129
  $region4: #{cross_attention.4} parent=0 // loop_header_branch
    %13 = sbr.rel (%p11) target = $region8
  $region5: #{cross_attention.4} parent=0 // loop_body
    %s15 = ssub.s32 %s10, 1
    %s16 = ssub.s32 %s10, 2
    %s23 = sadd.s32 1, %s18
    %p24 = scmp.ge.s32.totalorder %s23, 1
    %s25 = scalar_select %p24, 0, %s23
    %s26 = sadd.s32 1, %s17
    %s27 = scalar_select %p24, %s26, %s17
    %p28 = scmp.ge.s32.totalorder %s27, 2
    %s29 = scalar_select %p28, 0, %s27
    %s30 = ssub.s32 %s17, %s29
    %s31 = ssub.s32 %s18, %s25
    %s32 = sor.u32 %s30, %s31
    %p33 = scmp.eq.s32.totalorder %s32, 0
    %s35 = sadd.s32 %s34, 1
    %s36 = scalar_select %p33, %s34, %s35
    %p39 = pneg %p33
    %p40 = scmp.eq.s32.totalorder %s10, 1
    %p41 = por %p39, %p40
    %p42 = scmp.ne.s32.totalorder %s34, %s37
    %p43 = scmp.eq.s32.totalorder %s10, 0
    %p44 = por %p42, %p43
    %p45 = scmp.ne.s32.totalorder %s34, %s37
    %p46 = scmp.eq.s32.totalorder %s15, 1
    %p47 = por %p45, %p46
    %p48 = scmp.ne.s32.totalorder %s37, %s38
    %p49 = scmp.eq.s32.totalorder %s15, 0
    %p50 = por %p48, %p49
    %p51 = scmp.ne.s32.totalorder %s37, %s38
    %p52 = scmp.eq.s32.totalorder %s16, 1
    %p53 = por %p51, %p52
    %p55 = scmp.ne.s32.totalorder %s38, %s54
    %p56 = scmp.eq.s32.totalorder %s16, 0
    %p57 = por %p55, %p56
    %s59 = sadd.s32 %s58, 1
    %p62 = scmp.eq.s32.totalorder %s10, 1
    %p63 = scmp.ne.s32.totalorder %s58, %s60
    %p64 = scmp.eq.s32.totalorder %s10, 0
    %p65 = por %p63, %p64
    %p66 = scmp.ne.s32.totalorder %s58, %s60
    %p67 = scmp.eq.s32.totalorder %s15, 1
    %p68 = por %p66, %p67
    %p69 = scmp.ne.s32.totalorder %s60, %s61
    %p70 = scmp.eq.s32.totalorder %s15, 0
    %p71 = por %p69, %p70
    %p72 = scmp.ne.s32.totalorder %s60, %s61
    %p73 = scmp.eq.s32.totalorder %s16, 1
    %p74 = por %p72, %p73
    %p76 = scmp.ne.s32.totalorder %s61, %s75
    %p77 = scmp.eq.s32.totalorder %s16, 0
    %p78 = por %p76, %p77
    %s80 = sadd.s32 %s79, 1
    %p83 = scmp.eq.s32.totalorder %s10, 1
    %p84 = scmp.ne.s32.totalorder %s79, %s81
    %p85 = scmp.eq.s32.totalorder %s10, 0
    %p86 = por %p84, %p85
    %p87 = scmp.ne.s32.totalorder %s79, %s81
    %p88 = scmp.eq.s32.totalorder %s15, 1
    %p89 = por %p87, %p88
    %p90 = scmp.ne.s32.totalorder %s81, %s82
    %p91 = scmp.eq.s32.totalorder %s15, 0
    %p92 = por %p90, %p91
    %p93 = scmp.ne.s32.totalorder %s81, %s82
    %p94 = scmp.eq.s32.totalorder %s16, 1
    %p95 = por %p93, %p94
    %p97 = scmp.ne.s32.totalorder %s82, %s96
    %p98 = scmp.eq.s32.totalorder %s16, 0
    %p99 = por %p97, %p98
    %s101 = sadd.s32 %s100, 1
    %p104 = scmp.eq.s32.totalorder %s10, 1
    %p105 = scmp.ne.s32.totalorder %s100, %s102
    %p106 = scmp.eq.s32.totalorder %s10, 0
    %p107 = por %p105, %p106
    %p108 = scmp.ne.s32.totalorder %s100, %s102
    %p109 = scmp.eq.s32.totalorder %s15, 1
    %p110 = por %p108, %p109
    %p111 = scmp.ne.s32.totalorder %s102, %s103
    %p112 = scmp.eq.s32.totalorder %s15, 0
    %p113 = por %p111, %p112
    %p114 = scmp.ne.s32.totalorder %s102, %s103
    %p115 = scmp.eq.s32.totalorder %s16, 1
    %p116 = por %p114, %p115
    %p118 = scmp.ne.s32.totalorder %s103, %s117
    %p119 = scmp.eq.s32.totalorder %s16, 0
    %p120 = por %p118, %p119
    %s121 = ssub.s32 %s17, %s29
    %s122 = ssub.s32 %s18, %s25
    %s123 = sor.u32 %s121, %s122
    %p124 = scmp.eq.s32.totalorder %s123, 0
    %s126 = sadd.s32 %s125, 1
    %s127 = scalar_select %p124, %s125, %s126
    %p130 = pneg %p124
    %p131 = scmp.eq.s32.totalorder %s10, 1
    %p132 = por %p130, %p131
    %p133 = scmp.ne.s32.totalorder %s125, %s128
    %p134 = scmp.eq.s32.totalorder %s10, 0
    %p135 = por %p133, %p134
    %p136 = scmp.ne.s32.totalorder %s125, %s128
    %p137 = scmp.eq.s32.totalorder %s15, 1
    %p138 = por %p136, %p137
    %p139 = scmp.ne.s32.totalorder %s128, %s129
    %p140 = scmp.eq.s32.totalorder %s15, 0
    %p141 = por %p139, %p140
    %p142 = scmp.ne.s32.totalorder %s128, %s129
    %p143 = scmp.eq.s32.totalorder %s16, 1
    %p144 = por %p142, %p143
    %p146 = scmp.ne.s32.totalorder %s129, %s145
    %p147 = scmp.eq.s32.totalorder %s16, 0
    %p148 = por %p146, %p147
    %p149 = scmp.le.s32.totalorder 1, %s10
    %p150 = scmp.lt.s32.totalorder %s10, 3
    %p151 = pnand %p149, %p150
    %p152 = pneg %p151
    // Predicated region
    $region9: #{cross_attention.4} parent=5 // pred_check
      _
    $region10: #{cross_attention.4} parent=5 // pred_check_branch
      %154 = sbr.rel (%p151) target = $region12
    $region11: #{cross_attention.4} parent=5 // pred_region
      %s155 = ssub.s32 %s10, 1
      // Predicated region
      $region13: #{cross_attention.4} parent=11 // pred_check
        %p156 = pneg %p71
      $region14: #{cross_attention.4} parent=11 // pred_check_branch
        %158 = sbr.rel (%p156) target = $region16
      $region15: #{cross_attention.4} parent=11 // pred_region
        _
      $region16: #{cross_attention.4} parent=11 // pred_fallthru
        _
      // Predicated region
      $region17: #{cross_attention.4} parent=11 // pred_check
        %p159 = pneg %p92
      $region18: #{cross_attention.4} parent=11 // pred_check_branch
        %161 = sbr.rel (%p159) target = $region20
      $region19: #{cross_attention.4} parent=11 // pred_region
        _
      $region20: #{cross_attention.4} parent=11 // pred_fallthru
        _
      // Predicated region
      $region21: #{cross_attention.4} parent=11 // pred_check
        %p162 = pneg %p113
      $region22: #{cross_attention.4} parent=11 // pred_check_branch
        %164 = sbr.rel (%p162) target = $region24
      $region23: #{cross_attention.4} parent=11 // pred_region
        _
      $region24: #{cross_attention.4} parent=11 // pred_fallthru
        _
    $region12: #{cross_attention.4} parent=5 // pred_fallthru
      _
    %p165 = scmp.lt.s32.totalorder %s10, 2
    // Predicated region
    $region25: #{cross_attention.4} parent=5 // pred_check
      %p166 = pneg %p165
    $region26: #{cross_attention.4} parent=5 // pred_check_branch
      %168 = sbr.rel (%p166) target = $region28
    $region27: #{cross_attention.4} parent=5 // pred_region
      // Predicated region
      $region29: #{cross_attention.4} parent=27 // pred_check
        %p169 = pneg %p44
      $region30: #{cross_attention.4} parent=27 // pred_check_branch
        %171 = sbr.rel (%p169) target = $region32
      $region31: #{cross_attention.4} parent=27 // pred_region
        %s172 = smul.u32 2, %s18
        %p173 = scmp.lt.s32.totalorder %s17, 1
        %s174 = scalar_select %p173, %s17, 1
        %p175 = scmp.lt.s32.totalorder %s172, 1
        %s176 = scalar_select %p175, %s172, 1
        %s177 = smul.addr %s174, 2
        %s178 = sadd.s32 %s176, %s177
        %s179 = smul.addr %s178, 8
        %s180 = scalar_lea.vmem %s0, %s179
        %s181 = smul.u32 2, %s18
      $region32: #{cross_attention.4} parent=27 // pred_fallthru
        _
    $region28: #{cross_attention.4} parent=5 // pred_fallthru
      _
    %p182 = scmp.le.s32.totalorder 1, %s10
    %p183 = scmp.lt.s32.totalorder %s10, 3
    %p184 = pnand %p182, %p183
    %p185 = pneg %p184
    // Predicated region
    $region33: #{cross_attention.4} parent=5 // pred_check
      _
    $region34: #{cross_attention.4} parent=5 // pred_check_branch
      %187 = sbr.rel (%p184) target = $region36
    $region35: #{cross_attention.4} parent=5 // pred_region
      %s188 = ssub.s32 %s10, 1
      %s189 = smul.u32 2, %s20
      %p190 = scmp.lt.s32.totalorder %s19, 1
      %s191 = scalar_select %p190, %s19, 1
      %p192 = scmp.lt.s32.totalorder %s189, 1
      %s193 = scalar_select %p192, %s189, 1
      %s194 = smul.addr %s191, 2
      %s195 = sadd.s32 %s193, %s194
      %s196 = smul.addr %s195, 8
      %s197 = scalar_lea.vmem %s0, %s196
      %p198 = pneg %p50
      %p199 = pneg %p47
      %p200 = pneg %p71
      %p201 = pneg %p68
      %p202 = pneg %p92
      %p203 = pneg %p89
      %p204 = pneg %p113
      %p205 = pneg %p110
      %p206 = pneg %p141
      %p207 = pneg %p138
      %s208 = smul.u32 2, %s20
      %p209 = scmp.lt.s32.totalorder %s19, 1
      %s210 = scalar_select %p209, %s19, 1
      %p211 = scmp.lt.s32.totalorder %s208, 1
      %s212 = scalar_select %p211, %s208, 1
      %s213 = smul.addr %s210, 2
      %s214 = sadd.s32 %s212, %s213
      %s215 = smul.addr %s214, 4
      %s216 = scalar_lea.vmem %s4, %s215
      %s217 = smul.u32 2, %s20
      %p218 = scmp.lt.s32.totalorder %s19, 1
      %s219 = scalar_select %p218, %s19, 1
      %p220 = scmp.lt.s32.totalorder %s217, 1
      %s221 = scalar_select %p220, %s217, 1
      %s222 = smul.addr %s219, 2
      %s223 = sadd.s32 %s221, %s222
      %s224 = smul.addr %s223, 8
      %s225 = scalar_lea.vmem %s0, %s224
      %s226 = smul.u32 2, %s20
      %s227 = smul.u32 2, %s20
      %p228 = scmp.lt.s32.totalorder %s19, 1
      %s229 = scalar_select %p228, %s19, 1
      %p230 = scmp.lt.s32.totalorder %s227, 1
      %s231 = scalar_select %p230, %s227, 1
      %s232 = smul.addr %s229, 2
      %s233 = sadd.s32 %s231, %s232
      %s234 = smul.addr %s233, 4
      %s235 = scalar_lea.vmem %s4, %s234
      %s236 = smul.u32 2, %s20
      %v238 = vld [vmem:[%s225] sm:$0xff]
      %v239 = vld [vmem:[%s225 + $0x8] sm:$0xff]
      %240 = vadd.xlane.f32.xlu0 %v238
      %v241 = vpop.xlane.xlu0 %240
      %242 = vadd.xlane.f32.xlu0 %v239
      %v243 = vpop.xlane.xlu0 %242
      %v244 = vrcp.pop 128.0
      %v245 = vmul.f32 %v241, %v244
      %v246 = vmul.f32 %v243, %v244
      %v247 = vsub.f32 %v238, %v245
      %v248 = vsub.f32 %v239, %v246
      %v249 = vmul.f32 %v247, %v247
      %v250 = vmul.f32 %v248, %v248
      %251 = vadd.xlane.f32.xlu0 %v249
      %v252 = vpop.xlane.xlu0 %251
      %253 = vadd.xlane.f32.xlu0 %v250
      %v254 = vpop.xlane.xlu0 %253
      %v255 = vmul.f32 %v252, %v244
      %v256 = vmul.f32 %v254, %v244
      %v257 = vadd.f32 %v255, 1e-05
      %v258 = vadd.f32 %v256, 1e-05
      %v259 = vrsqrt.pop %v257
      %v260 = vrsqrt.pop %v258
      %v261 = vmul.f32 %v247, %v259
      %v262 = vmul.f32 %v248, %v260
      %v263 = vld [vmem:[%s1] sm:$0x1]
      %v265 = vlaneseq
      %v266 = vshrl.u32 %v265, 7
      %v267 = vsub.s32 0, %v266
      %v268 = vrot.slane %v263, %v267
      %v270 = vmul.f32 %v261, %v268
      %v271 = vmul.f32 %v262, %v268
      %v272 = vld [vmem:[%s2] sm:$0x1]
      %v274 = vlaneseq
      %v275 = vshrl.u32 %v274, 7
      %v276 = vsub.s32 0, %v275
      %v277 = vrot.slane %v272, %v276
      %v279 = vadd.f32 %v270, %v277
      %v280 = vadd.f32 %v271, %v277
      %v281 = vpack.c.bf16 %v280, %v279
      %v282 = vld [vmem:[%s3] sm:$0xf]
      %v283 = vld [vmem:[%s3 + $0x4] sm:$0xf]
      %v284 = vld [vmem:[%s3 + $0x8] sm:$0xf]
      %v285 = vld [vmem:[%s3 + $0xc] sm:$0xf]
      %v286 = vld [vmem:[%s3 + $0x10] sm:$0xf]
      %v287 = vld [vmem:[%s3 + $0x14] sm:$0xf]
      %v288 = vld [vmem:[%s3 + $0x18] sm:$0xf]
      %v289 = vld [vmem:[%s3 + $0x1c] sm:$0xf]
      %v290 = vld [vmem:[%s3 + $0x20] sm:$0xf]
      %v291 = vld [vmem:[%s3 + $0x24] sm:$0xf]
      %v292 = vld [vmem:[%s3 + $0x28] sm:$0xf]
      %v293 = vld [vmem:[%s3 + $0x2c] sm:$0xf]
      %v294 = vld [vmem:[%s3 + $0x30] sm:$0xf]
      %v295 = vld [vmem:[%s3 + $0x34] sm:$0xf]
      %v296 = vld [vmem:[%s3 + $0x38] sm:$0xf]
      %v297 = vld [vmem:[%s3 + $0x3c] sm:$0xf]
      %v314 = vunpack.c.l.b16 %v282
      %v315 = vunpack.c.l.b16 %v283
      %v316 = vunpack.c.l.b16 %v284
      %v317 = vunpack.c.l.b16 %v285
      %v318 = vunpack.c.l.b16 %v286
      %v319 = vunpack.c.l.b16 %v287
      %v320 = vunpack.c.l.b16 %v288
      %v321 = vunpack.c.l.b16 %v289
      %v322 = vunpack.c.l.b16 %v290
      %v323 = vunpack.c.l.b16 %v291
      %v324 = vunpack.c.l.b16 %v292
      %v325 = vunpack.c.l.b16 %v293
      %v326 = vunpack.c.l.b16 %v294
      %v327 = vunpack.c.l.b16 %v295
      %v328 = vunpack.c.l.b16 %v296
      %v329 = vunpack.c.l.b16 %v297
      %v330 = vpack.c.b16 %v315, %v314
      %v331 = vpack.c.b16 %v317, %v316
      %v332 = vpack.c.b16 %v319, %v318
      %v333 = vpack.c.b16 %v321, %v320
      %v334 = vpack.c.b16 %v323, %v322
      %v335 = vpack.c.b16 %v325, %v324
      %v336 = vpack.c.b16 %v327, %v326
      %v337 = vpack.c.b16 %v329, %v328
      %346 = vmatprep.subr.bf16.mxu0 0
      %347 = vmatpush1.bf16.msra.mxu0 %v337
      %348 = vmatprep.subr.bf16.mxu0 0
      %349 = vmatpush1.bf16.msra.mxu0 %v336
      %350 = vmatprep.subr.bf16.mxu0 0
      %351 = vmatpush1.bf16.msra.mxu0 %v335
      %352 = vmatprep.subr.bf16.mxu0 0
      %353 = vmatpush1.bf16.msra.mxu0 %v334
      %354 = vmatprep.subr.bf16.mxu0 0
      %355 = vmatpush1.bf16.msra.mxu0 %v333
      %356 = vmatprep.subr.bf16.mxu0 0
      %357 = vmatpush1.bf16.msra.mxu0 %v332
      %358 = vmatprep.subr.bf16.mxu0 0
      %359 = vmatpush1.bf16.msra.mxu0 %v331
      %360 = vmatprep.subr.bf16.mxu0 0
      %361 = vmatpush1.bf16.msra.mxu0 %v330
      %362 = vmatprep.subr.bf16.mxu0 0
      %363 = vmatpush2.bf16.msra.mxu0 0
      %364 = vmatprep.subr.bf16.mxu0 0
      %365 = vmatpush2.bf16.msra.mxu0 0
      %366 = vmatprep.subr.bf16.mxu0 0
      %367 = vmatpush2.bf16.msra.mxu0 0
      %368 = vmatprep.subr.bf16.mxu0 0
      %369 = vmatpush2.bf16.msra.mxu0 0
      %370 = vmatprep.subr.bf16.mxu0 0
      %371 = vmatpush2.bf16.msra.mxu0 0
      %372 = vmatprep.subr.bf16.mxu0 0
      %373 = vmatpush2.bf16.msra.mxu0 0
      %374 = vmatprep.subr.bf16.mxu0 0
      %375 = vmatpush2.bf16.msra.mxu0 0
      %376 = vmatprep.subr.bf16.mxu0 0
      %377 = vmatpush2.bf16.msra.mxu0 0
      %378 = vmatprep.mubr.bf16.mxu0 0
      %379 = vmatmul.mubr.bf16.gmra.mxu0 %v281
      %v380 = vpop.f32.mrf.mxu0
      %v381 = vadd.f32 0.0, %v380
      %v382 = vpop.f32.mrf.mxu0
      %v383 = vpop.f32.mrf.mxu0
      %v384 = vadd.f32 0.0, %v383
      %v385 = vpop.f32.mrf.mxu0
      %386 = vdwg.mxu0
      %v387 = vpack.c.bf16 %v384, %v381
      %v389 = vunpack.c.l.b16 %v387
      %v390 = vunpack.c.h.b16 %v387
      %v391 = vpack.c.b16 %v389, %v389
      %v392 = vpack.c.b16 %v390, %v390
      %395 = vst [vmem:[%s235] sm:$0xf] %v391
      %396 = vst [vmem:[%s235 + $0x4] sm:$0xf] %v392
      %s397 = smul.u32 2, %s20
      %p398 = scmp.lt.s32.totalorder %s19, 1
      %s399 = scalar_select %p398, %s19, 1
      %p400 = scmp.lt.s32.totalorder %s397, 1
      %s401 = scalar_select %p400, %s397, 1
      %s402 = smul.addr %s399, 2
      %s403 = sadd.s32 %s401, %s402
      %s404 = smul.addr %s403, 4
      %s405 = scalar_lea.vmem %s4, %s404
      // Predicated region
      $region37: #{cross_attention.4} parent=35 // pred_check
        %p406 = pneg %p138
      $region38: #{cross_attention.4} parent=35 // pred_check_branch
        %408 = sbr.rel (%p406) target = $region40
      $region39: #{cross_attention.4} parent=35 // pred_region
        %s409 = smul.u32 2, %s20
      $region40: #{cross_attention.4} parent=35 // pred_fallthru
        _
    $region36: #{cross_attention.4} parent=5 // pred_fallthru
      _
    %p410 = scmp.le.s32.totalorder 2, %s10
    // Predicated region
    $region41: #{cross_attention.4} parent=5 // pred_check
      %p411 = pneg %p410
    $region42: #{cross_attention.4} parent=5 // pred_check_branch
      %413 = sbr.rel (%p411) target = $region44
    $region43: #{cross_attention.4} parent=5 // pred_region
      %s414 = ssub.s32 %s10, 2
      // Predicated region
      $region45: #{cross_attention.4} parent=43 // pred_check
        %p415 = pneg %p144
      $region46: #{cross_attention.4} parent=43 // pred_check_branch
        %417 = sbr.rel (%p415) target = $region48
      $region47: #{cross_attention.4} parent=43 // pred_region
        %s418 = smul.u32 2, %s22
        %p419 = scmp.lt.s32.totalorder %s21, 1
        %s420 = scalar_select %p419, %s21, 1
        %p421 = scmp.lt.s32.totalorder %s418, 1
        %s422 = scalar_select %p421, %s418, 1
        %s423 = smul.addr %s420, 2
        %s424 = sadd.s32 %s422, %s423
        %s425 = smul.addr %s424, 4
        %s426 = scalar_lea.vmem %s4, %s425
      $region48: #{cross_attention.4} parent=43 // pred_fallthru
        _
    $region44: #{cross_attention.4} parent=5 // pred_fallthru
      _
  $region6: #{cross_attention.4} parent=0 // loop_footer
    %s14 = sadd.s32 1, %s10
  $region7: #{cross_attention.4} parent=0 // loop_footer_branch
    %9 = sbr.rel target = $region3
  $region8: #{cross_attention.4} parent=0 // loop_exit
    _

// kernel: cross_attention.6
$region0: #{cross_attention.6}
  #allocation0 [shape = 'u32[]', space=smem, size = 0x4, offset = 0x4, fixed_abs, tag = 'smem constant byte address 0x4 - core index']
  #allocation1 [shape = 'u32[144,128]{1,0:T(1,128)}', space=vmem, size = 0x12000, scoped, tag = 'internal scratch']
  %s0 = inlined_call_operand.vmem [shape: f32[2,8,128], index: 0, kind: input, shape index: {}]
  %s1 = inlined_call_operand.vmem [shape: f32[1,128], index: 1, kind: input, shape index: {}]
  %s2 = inlined_call_operand.vmem [shape: f32[1,128], index: 2, kind: input, shape index: {}]
  %s3 = inlined_call_operand.vmem [shape: bf16[128,128], index: 3, kind: input, shape index: {}]
  %s4 = inlined_call_operand.vmem [shape: bf16[2,8,128], index: 4, kind: output, shape index: {}]
  %s5 = sld [smem:[#allocation0]]
  $region49: #{cross_attention.6} parent=0
    _
  %s7 = ssub.s32 1, %s5
  %s8 = scalar_select 0, %s7, %s5
  loop: start=0, step=1, limit=4
  $region2: #{cross_attention.6} parent=0 // loop_pre_header
    _
  $region3: #{cross_attention.6} parent=0 // loop_header
    %s10 = sphi 0, %s14
    %p11 = scmp.ge.s32.totalorder %s10, 4
    %s17 = sphi 0, %s29
    %s18 = sphi 0, %s25
    %s19 = sphi 0, %s17
    %s20 = sphi 0, %s18
    %s21 = sphi 0, %s19
    %s22 = sphi 0, %s20
    %s34 = sphi 0, %s36
    %s37 = sphi 0, %s34
    %s38 = sphi 0, %s37
    %s54 = sphi 0, %s38
    %s58 = sphi 0, %s58
    %s60 = sphi 0, %s58
    %s61 = sphi 0, %s60
    %s75 = sphi 0, %s61
    %s79 = sphi 0, %s79
    %s81 = sphi 0, %s79
    %s82 = sphi 0, %s81
    %s96 = sphi 0, %s82
    %s100 = sphi 0, %s100
    %s102 = sphi 0, %s100
    %s103 = sphi 0, %s102
    %s117 = sphi 0, %s103
    %s125 = sphi 0, %s127
    %s128 = sphi 0, %s125
    %s129 = sphi 0, %s128
    %s145 = sphi 0, %s129
  $region4: #{cross_attention.6} parent=0 // loop_header_branch
    %13 = sbr.rel (%p11) target = $region8
  $region5: #{cross_attention.6} parent=0 // loop_body
    %s15 = ssub.s32 %s10, 1
    %s16 = ssub.s32 %s10, 2
    %s23 = sadd.s32 1, %s18
    %p24 = scmp.ge.s32.totalorder %s23, 1
    %s25 = scalar_select %p24, 0, %s23
    %s26 = sadd.s32 1, %s17
    %s27 = scalar_select %p24, %s26, %s17
    %p28 = scmp.ge.s32.totalorder %s27, 2
    %s29 = scalar_select %p28, 0, %s27
    %s30 = ssub.s32 %s17, %s29
    %s31 = ssub.s32 %s18, %s25
    %s32 = sor.u32 %s30, %s31
    %p33 = scmp.eq.s32.totalorder %s32, 0
    %s35 = sadd.s32 %s34, 1
    %s36 = scalar_select %p33, %s34, %s35
    %p39 = pneg %p33
    %p40 = scmp.eq.s32.totalorder %s10, 1
    %p41 = por %p39, %p40
    %p42 = scmp.ne.s32.totalorder %s34, %s37
    %p43 = scmp.eq.s32.totalorder %s10, 0
    %p44 = por %p42, %p43
    %p45 = scmp.ne.s32.totalorder %s34, %s37
    %p46 = scmp.eq.s32.totalorder %s15, 1
    %p47 = por %p45, %p46
    %p48 = scmp.ne.s32.totalorder %s37, %s38
    %p49 = scmp.eq.s32.totalorder %s15, 0
    %p50 = por %p48, %p49
    %p51 = scmp.ne.s32.totalorder %s37, %s38
    %p52 = scmp.eq.s32.totalorder %s16, 1
    %p53 = por %p51, %p52
    %p55 = scmp.ne.s32.totalorder %s38, %s54
    %p56 = scmp.eq.s32.totalorder %s16, 0
    %p57 = por %p55, %p56
    %s59 = sadd.s32 %s58, 1
    %p62 = scmp.eq.s32.totalorder %s10, 1
    %p63 = scmp.ne.s32.totalorder %s58, %s60
    %p64 = scmp.eq.s32.totalorder %s10, 0
    %p65 = por %p63, %p64
    %p66 = scmp.ne.s32.totalorder %s58, %s60
    %p67 = scmp.eq.s32.totalorder %s15, 1
    %p68 = por %p66, %p67
    %p69 = scmp.ne.s32.totalorder %s60, %s61
    %p70 = scmp.eq.s32.totalorder %s15, 0
    %p71 = por %p69, %p70
    %p72 = scmp.ne.s32.totalorder %s60, %s61
    %p73 = scmp.eq.s32.totalorder %s16, 1
    %p74 = por %p72, %p73
    %p76 = scmp.ne.s32.totalorder %s61, %s75
    %p77 = scmp.eq.s32.totalorder %s16, 0
    %p78 = por %p76, %p77
    %s80 = sadd.s32 %s79, 1
    %p83 = scmp.eq.s32.totalorder %s10, 1
    %p84 = scmp.ne.s32.totalorder %s79, %s81
    %p85 = scmp.eq.s32.totalorder %s10, 0
    %p86 = por %p84, %p85
    %p87 = scmp.ne.s32.totalorder %s79, %s81
    %p88 = scmp.eq.s32.totalorder %s15, 1
    %p89 = por %p87, %p88
    %p90 = scmp.ne.s32.totalorder %s81, %s82
    %p91 = scmp.eq.s32.totalorder %s15, 0
    %p92 = por %p90, %p91
    %p93 = scmp.ne.s32.totalorder %s81, %s82
    %p94 = scmp.eq.s32.totalorder %s16, 1
    %p95 = por %p93, %p94
    %p97 = scmp.ne.s32.totalorder %s82, %s96
    %p98 = scmp.eq.s32.totalorder %s16, 0
    %p99 = por %p97, %p98
    %s101 = sadd.s32 %s100, 1
    %p104 = scmp.eq.s32.totalorder %s10, 1
    %p105 = scmp.ne.s32.totalorder %s100, %s102
    %p106 = scmp.eq.s32.totalorder %s10, 0
    %p107 = por %p105, %p106
    %p108 = scmp.ne.s32.totalorder %s100, %s102
    %p109 = scmp.eq.s32.totalorder %s15, 1
    %p110 = por %p108, %p109
    %p111 = scmp.ne.s32.totalorder %s102, %s103
    %p112 = scmp.eq.s32.totalorder %s15, 0
    %p113 = por %p111, %p112
    %p114 = scmp.ne.s32.totalorder %s102, %s103
    %p115 = scmp.eq.s32.totalorder %s16, 1
    %p116 = por %p114, %p115
    %p118 = scmp.ne.s32.totalorder %s103, %s117
    %p119 = scmp.eq.s32.totalorder %s16, 0
    %p120 = por %p118, %p119
    %s121 = ssub.s32 %s17, %s29
    %s122 = ssub.s32 %s18, %s25
    %s123 = sor.u32 %s121, %s122
    %p124 = scmp.eq.s32.totalorder %s123, 0
    %s126 = sadd.s32 %s125, 1
    %s127 = scalar_select %p124, %s125, %s126
    %p130 = pneg %p124
    %p131 = scmp.eq.s32.totalorder %s10, 1
    %p132 = por %p130, %p131
    %p133 = scmp.ne.s32.totalorder %s125, %s128
    %p134 = scmp.eq.s32.totalorder %s10, 0
    %p135 = por %p133, %p134
    %p136 = scmp.ne.s32.totalorder %s125, %s128
    %p137 = scmp.eq.s32.totalorder %s15, 1
    %p138 = por %p136, %p137
    %p139 = scmp.ne.s32.totalorder %s128, %s129
    %p140 = scmp.eq.s32.totalorder %s15, 0
    %p141 = por %p139, %p140
    %p142 = scmp.ne.s32.totalorder %s128, %s129
    %p143 = scmp.eq.s32.totalorder %s16, 1
    %p144 = por %p142, %p143
    %p146 = scmp.ne.s32.totalorder %s129, %s145
    %p147 = scmp.eq.s32.totalorder %s16, 0
    %p148 = por %p146, %p147
    %p149 = scmp.le.s32.totalorder 1, %s10
    %p150 = scmp.lt.s32.totalorder %s10, 3
    %p151 = pnand %p149, %p150
    %p152 = pneg %p151
    // Predicated region
    $region9: #{cross_attention.6} parent=5 // pred_check
      _
    $region10: #{cross_attention.6} parent=5 // pred_check_branch
      %154 = sbr.rel (%p151) target = $region12
    $region11: #{cross_attention.6} parent=5 // pred_region
      %s155 = ssub.s32 %s10, 1
      // Predicated region
      $region13: #{cross_attention.6} parent=11 // pred_check
        %p156 = pneg %p71
      $region14: #{cross_attention.6} parent=11 // pred_check_branch
        %158 = sbr.rel (%p156) target = $region16
      $region15: #{cross_attention.6} parent=11 // pred_region
        _
      $region16: #{cross_attention.6} parent=11 // pred_fallthru
        _
      // Predicated region
      $region17: #{cross_attention.6} parent=11 // pred_check
        %p159 = pneg %p92
      $region18: #{cross_attention.6} parent=11 // pred_check_branch
        %161 = sbr.rel (%p159) target = $region20
      $region19: #{cross_attention.6} parent=11 // pred_region
        _
      $region20: #{cross_attention.6} parent=11 // pred_fallthru
        _
      // Predicated region
      $region21: #{cross_attention.6} parent=11 // pred_check
        %p162 = pneg %p113
      $region22: #{cross_attention.6} parent=11 // pred_check_branch
        %164 = sbr.rel (%p162) target = $region24
      $region23: #{cross_attention.6} parent=11 // pred_region
        _
      $region24: #{cross_attention.6} parent=11 // pred_fallthru
        _
    $region12: #{cross_attention.6} parent=5 // pred_fallthru
      _
    %p165 = scmp.lt.s32.totalorder %s10, 2
    // Predicated region
    $region25: #{cross_attention.6} parent=5 // pred_check
      %p166 = pneg %p165
    $region26: #{cross_attention.6} parent=5 // pred_check_branch
      %168 = sbr.rel (%p166) target = $region28
    $region27: #{cross_attention.6} parent=5 // pred_region
      // Predicated region
      $region29: #{cross_attention.6} parent=27 // pred_check
        %p169 = pneg %p44
      $region30: #{cross_attention.6} parent=27 // pred_check_branch
        %171 = sbr.rel (%p169) target = $region32
      $region31: #{cross_attention.6} parent=27 // pred_region
        %p172 = scmp.lt.s32.totalorder %s17, 1
        %s173 = scalar_select %p172, %s17, 1
        %p174 = scmp.lt.s32.totalorder %s18, 0
        %s175 = scalar_select %p174, %s18, 0
        %s176 = sadd.s32 %s175, %s173
        %s177 = smul.addr %s176, 8
        %s178 = scalar_lea.vmem %s0, %s177
      $region32: #{cross_attention.6} parent=27 // pred_fallthru
        _
    $region28: #{cross_attention.6} parent=5 // pred_fallthru
      _
    %p179 = scmp.le.s32.totalorder 1, %s10
    %p180 = scmp.lt.s32.totalorder %s10, 3
    %p181 = pnand %p179, %p180
    %p182 = pneg %p181
    // Predicated region
    $region33: #{cross_attention.6} parent=5 // pred_check
      _
    $region34: #{cross_attention.6} parent=5 // pred_check_branch
      %184 = sbr.rel (%p181) target = $region36
    $region35: #{cross_attention.6} parent=5 // pred_region
      %s185 = ssub.s32 %s10, 1
      %p186 = scmp.lt.s32.totalorder %s19, 1
      %s187 = scalar_select %p186, %s19, 1
      %p188 = scmp.lt.s32.totalorder %s20, 0
      %s189 = scalar_select %p188, %s20, 0
      %s190 = sadd.s32 %s189, %s187
      %s191 = smul.addr %s190, 8
      %s192 = scalar_lea.vmem %s0, %s191
      %p193 = pneg %p50
      %p194 = pneg %p47
      %p195 = pneg %p71
      %p196 = pneg %p68
      %p197 = pneg %p92
      %p198 = pneg %p89
      %p199 = pneg %p113
      %p200 = pneg %p110
      %p201 = pneg %p141
      %p202 = pneg %p138
      %p203 = scmp.lt.s32.totalorder %s19, 1
      %s204 = scalar_select %p203, %s19, 1
      %p205 = scmp.lt.s32.totalorder %s20, 0
      %s206 = scalar_select %p205, %s20, 0
      %s207 = sadd.s32 %s206, %s204
      %s208 = smul.addr %s207, 4
      %s209 = scalar_lea.vmem %s4, %s208
      %p210 = scmp.lt.s32.totalorder %s19, 1
      %s211 = scalar_select %p210, %s19, 1
      %p212 = scmp.lt.s32.totalorder %s20, 0
      %s213 = scalar_select %p212, %s20, 0
      %s214 = sadd.s32 %s213, %s211
      %s215 = smul.addr %s214, 8
      %s216 = scalar_lea.vmem %s0, %s215
      %p217 = scmp.lt.s32.totalorder %s19, 1
      %s218 = scalar_select %p217, %s19, 1
      %p219 = scmp.lt.s32.totalorder %s20, 0
      %s220 = scalar_select %p219, %s20, 0
      %s221 = sadd.s32 %s220, %s218
      %s222 = smul.addr %s221, 4
      %s223 = scalar_lea.vmem %s4, %s222
      %v225 = vld [vmem:[%s216] sm:$0xff]
      %226 = vadd.xlane.f32.xlu0 %v225
      %v227 = vpop.xlane.xlu0 %226
      %v228 = vrcp.pop 128.0
      %v229 = vmul.f32 %v227, %v228
      %v230 = vsub.f32 %v225, %v229
      %v231 = vmul.f32 %v230, %v230
      %232 = vadd.xlane.f32.xlu0 %v231
      %v233 = vpop.xlane.xlu0 %232
      %v234 = vmul.f32 %v233, %v228
      %v235 = vadd.f32 %v234, 1e-05
      %v236 = vrsqrt.pop %v235
      %v237 = vmul.f32 %v230, %v236
      %v238 = vld [vmem:[%s1] sm:$0x1]
      %v240 = vlaneseq
      %v241 = vshrl.u32 %v240, 7
      %v242 = vsub.s32 0, %v241
      %v243 = vrot.slane %v238, %v242
      %v245 = vmul.f32 %v237, %v243
      %v246 = vld [vmem:[%s2] sm:$0x1]
      %v248 = vlaneseq
      %v249 = vshrl.u32 %v248, 7
      %v250 = vsub.s32 0, %v249
      %v251 = vrot.slane %v246, %v250
      %v253 = vadd.f32 %v245, %v251
      %v254 = vpack.c.bf16 %v253, %v253
      %v255 = vld [vmem:[%s3] sm:$0xf]
      %v256 = vld [vmem:[%s3 + $0x4] sm:$0xf]
      %v257 = vld [vmem:[%s3 + $0x8] sm:$0xf]
      %v258 = vld [vmem:[%s3 + $0xc] sm:$0xf]
      %v259 = vld [vmem:[%s3 + $0x10] sm:$0xf]
      %v260 = vld [vmem:[%s3 + $0x14] sm:$0xf]
      %v261 = vld [vmem:[%s3 + $0x18] sm:$0xf]
      %v262 = vld [vmem:[%s3 + $0x1c] sm:$0xf]
      %v263 = vld [vmem:[%s3 + $0x20] sm:$0xf]
      %v264 = vld [vmem:[%s3 + $0x24] sm:$0xf]
      %v265 = vld [vmem:[%s3 + $0x28] sm:$0xf]
      %v266 = vld [vmem:[%s3 + $0x2c] sm:$0xf]
      %v267 = vld [vmem:[%s3 + $0x30] sm:$0xf]
      %v268 = vld [vmem:[%s3 + $0x34] sm:$0xf]
      %v269 = vld [vmem:[%s3 + $0x38] sm:$0xf]
      %v270 = vld [vmem:[%s3 + $0x3c] sm:$0xf]
      %v287 = vunpack.c.l.b16 %v255
      %v288 = vunpack.c.l.b16 %v256
      %v289 = vunpack.c.l.b16 %v257
      %v290 = vunpack.c.l.b16 %v258
      %v291 = vunpack.c.l.b16 %v259
      %v292 = vunpack.c.l.b16 %v260
      %v293 = vunpack.c.l.b16 %v261
      %v294 = vunpack.c.l.b16 %v262
      %v295 = vunpack.c.l.b16 %v263
      %v296 = vunpack.c.l.b16 %v264
      %v297 = vunpack.c.l.b16 %v265
      %v298 = vunpack.c.l.b16 %v266
      %v299 = vunpack.c.l.b16 %v267
      %v300 = vunpack.c.l.b16 %v268
      %v301 = vunpack.c.l.b16 %v269
      %v302 = vunpack.c.l.b16 %v270
      %v303 = vpack.c.b16 %v288, %v287
      %v304 = vpack.c.b16 %v290, %v289
      %v305 = vpack.c.b16 %v292, %v291
      %v306 = vpack.c.b16 %v294, %v293
      %v307 = vpack.c.b16 %v296, %v295
      %v308 = vpack.c.b16 %v298, %v297
      %v309 = vpack.c.b16 %v300, %v299
      %v310 = vpack.c.b16 %v302, %v301
      %319 = vmatprep.subr.bf16.mxu0 0
      %320 = vmatpush1.bf16.msra.mxu0 %v310
      %321 = vmatprep.subr.bf16.mxu0 0
      %322 = vmatpush1.bf16.msra.mxu0 %v309
      %323 = vmatprep.subr.bf16.mxu0 0
      %324 = vmatpush1.bf16.msra.mxu0 %v308
      %325 = vmatprep.subr.bf16.mxu0 0
      %326 = vmatpush1.bf16.msra.mxu0 %v307
      %327 = vmatprep.subr.bf16.mxu0 0
      %328 = vmatpush1.bf16.msra.mxu0 %v306
      %329 = vmatprep.subr.bf16.mxu0 0
      %330 = vmatpush1.bf16.msra.mxu0 %v305
      %331 = vmatprep.subr.bf16.mxu0 0
      %332 = vmatpush1.bf16.msra.mxu0 %v304
      %333 = vmatprep.subr.bf16.mxu0 0
      %334 = vmatpush1.bf16.msra.mxu0 %v303
      %335 = vmatprep.subr.bf16.mxu0 0
      %336 = vmatpush2.bf16.msra.mxu0 0
      %337 = vmatprep.subr.bf16.mxu0 0
      %338 = vmatpush2.bf16.msra.mxu0 0
      %339 = vmatprep.subr.bf16.mxu0 0
      %340 = vmatpush2.bf16.msra.mxu0 0
      %341 = vmatprep.subr.bf16.mxu0 0
      %342 = vmatpush2.bf16.msra.mxu0 0
      %343 = vmatprep.subr.bf16.mxu0 0
      %344 = vmatpush2.bf16.msra.mxu0 0
      %345 = vmatprep.subr.bf16.mxu0 0
      %346 = vmatpush2.bf16.msra.mxu0 0
      %347 = vmatprep.subr.bf16.mxu0 0
      %348 = vmatpush2.bf16.msra.mxu0 0
      %349 = vmatprep.subr.bf16.mxu0 0
      %350 = vmatpush2.bf16.msra.mxu0 0
      %351 = vmatprep.mubr.bf16.mxu0 0
      %352 = vmatmul.mubr.bf16.gmra.mxu0 %v254
      %v353 = vpop.f32.mrf.mxu0
      %v354 = vadd.f32 0.0, %v353
      %v355 = vpop.f32.mrf.mxu0
      %v356 = vpop.f32.mrf.mxu0
      %v357 = vpop.f32.mrf.mxu0
      %358 = vdwg.mxu0
      %v359 = vpack.c.bf16 %v354, %v354
      %360 = vst [vmem:[%s223] sm:$0xf] %v359
      %p361 = scmp.lt.s32.totalorder %s19, 1
      %s362 = scalar_select %p361, %s19, 1
      %p363 = scmp.lt.s32.totalorder %s20, 0
      %s364 = scalar_select %p363, %s20, 0
      %s365 = sadd.s32 %s364, %s362
      %s366 = smul.addr %s365, 4
      %s367 = scalar_lea.vmem %s4, %s366
      // Predicated region
      $region37: #{cross_attention.6} parent=35 // pred_check
        %p368 = pneg %p138
      $region38: #{cross_attention.6} parent=35 // pred_check_branch
        %370 = sbr.rel (%p368) target = $region40
      $region39: #{cross_attention.6} parent=35 // pred_region
        _
      $region40: #{cross_attention.6} parent=35 // pred_fallthru
        _
    $region36: #{cross_attention.6} parent=5 // pred_fallthru
      _
    %p371 = scmp.le.s32.totalorder 2, %s10
    // Predicated region
    $region41: #{cross_attention.6} parent=5 // pred_check
      %p372 = pneg %p371
    $region42: #{cross_attention.6} parent=5 // pred_check_branch
      %374 = sbr.rel (%p372) target = $region44
    $region43: #{cross_attention.6} parent=5 // pred_region
      %s375 = ssub.s32 %s10, 2
      // Predicated region
      $region45: #{cross_attention.6} parent=43 // pred_check
        %p376 = pneg %p144
      $region46: #{cross_attention.6} parent=43 // pred_check_branch
        %378 = sbr.rel (%p376) target = $region48
      $region47: #{cross_attention.6} parent=43 // pred_region
        %p379 = scmp.lt.s32.totalorder %s21, 1
        %s380 = scalar_select %p379, %s21, 1
        %p381 = scmp.lt.s32.totalorder %s22, 0
        %s382 = scalar_select %p381, %s22, 0
        %s383 = sadd.s32 %s382, %s380
        %s384 = smul.addr %s383, 4
        %s385 = scalar_lea.vmem %s4, %s384
      $region48: #{cross_attention.6} parent=43 // pred_fallthru
        _
    $region44: #{cross_attention.6} parent=5 // pred_fallthru
      _
  $region6: #{cross_attention.6} parent=0 // loop_footer
    %s14 = sadd.s32 1, %s10
  $region7: #{cross_attention.6} parent=0 // loop_footer_branch
    %9 = sbr.rel target = $region3
  $region8: #{cross_attention.6} parent=0 // loop_exit
    _

// kernel: cross_attention.7
$region0: #{cross_attention.7}
  #allocation0 [shape = 'u32[]', space=smem, size = 0x4, offset = 0x4, fixed_abs, tag = 'smem constant byte address 0x4 - core index']
  #allocation1 [shape = 'u32[144,128]{1,0:T(1,128)}', space=vmem, size = 0x12000, scoped, tag = 'internal scratch']
  #allocation2 [shape = 'bf16[16,8,16]{2,1,0:T(8,128)(2,1)}', space=vmem, size = 0x8000, scoped, tag = 'scratch operand']
  #allocation3 [shape = 'f32[8,16,1]{2,1,0:T(8,128)}', space=vmem, size = 0x10000, scoped, tag = 'scratch operand']
  #allocation4 [shape = 'f32[8,16,1]{2,1,0:T(8,128)}', space=vmem, size = 0x10000, scoped, tag = 'scratch operand']
  #allocation5 [shape = 'f32[8,16,16]{2,1,0:T(8,128)}', space=vmem, size = 0x10000, scoped, tag = 'scratch operand']
  %s0 = inlined_call_operand.vmem [shape: bf16[2,16,128], index: 0, kind: input, shape index: {}]
  %s1 = inlined_call_operand.vmem [shape: bf16[2,8,128], index: 1, kind: input, shape index: {}]
  %s2 = inlined_call_operand.vmem [shape: bf16[2,8,128], index: 2, kind: input, shape index: {}]
  %s3 = inlined_call_operand.vmem [shape: bf16[128,128], index: 3, kind: input, shape index: {}]
  %s4 = inlined_call_operand.vmem [shape: f32[1,128], index: 4, kind: input, shape index: {}]
  %s5 = inlined_call_operand.hbm [shape: f32[2,16,128], index: 5, kind: output, shape index: {}]
  %s6 = sld [smem:[#allocation0]]
  $region61: #{cross_attention.7} parent=0
    _
  %s8 = ssub.s32 1, %s6
  %s9 = scalar_select 0, %s8, %s6
  $region1: #{cross_attention.7} parent=0
    #allocation6 [shape = 'u8[16384]{0}', space=vmem, size = 0x4000, scoped, tag = 'output window, operand 0']
    #allocation7 [shape = 's32[2]{0}', space=sflag, size = 0x8, scoped, tag = 'scoped memory for cross_attention.7']
    %10 = vsyncpa [#allocation7], 0
    %s11 = scalar_lea.sflag [#allocation7], 1
    %12 = vsyncpa %s11, 0
    loop: start=0, step=1, limit=4
    $region2: #{cross_attention.7} parent=1 // loop_pre_header
      _
    $region3: #{cross_attention.7} parent=1 // loop_header
      %s14 = sphi 0, %s18
      %p15 = scmp.ge.s32.totalorder %s14, 4
      %s21 = sphi 0, %s40
      %s22 = sphi 0, %s36
      %s23 = sphi 0, %s32
      %s24 = sphi 0, %s21
      %s25 = sphi 0, %s22
      %s26 = sphi 0, %s23
      %s27 = sphi 0, %s24
      %s28 = sphi 0, %s25
      %s29 = sphi 0, %s26
      %s45 = sphi 0, %s47
      %s48 = sphi 0, %s45
      %s49 = sphi 0, %s48
      %s65 = sphi 0, %s49
      %s73 = sphi 0, %s75
      %s76 = sphi 0, %s73
      %s77 = sphi 0, %s76
      %s93 = sphi 0, %s77
      %s101 = sphi 0, %s103
      %s104 = sphi 0, %s101
      %s105 = sphi 0, %s104
      %s121 = sphi 0, %s105
      %s125 = sphi 0, %s125
      %s127 = sphi 0, %s125
      %s128 = sphi 0, %s127
      %s142 = sphi 0, %s128
      %s146 = sphi 0, %s146
      %s148 = sphi 0, %s146
      %s149 = sphi 0, %s148
      %s163 = sphi 0, %s149
      %s171 = sphi 0, %s173
      %s174 = sphi 0, %s171
      %s175 = sphi 0, %s174
      %s191 = sphi 0, %s175
    $region4: #{cross_attention.7} parent=1 // loop_header_branch
      %17 = sbr.rel (%p15) target = $region8
    $region5: #{cross_attention.7} parent=1 // loop_body
      %s19 = ssub.s32 %s14, 1
      %s20 = ssub.s32 %s14, 2
      %s30 = sadd.s32 1, %s23
      %p31 = scmp.ge.s32.totalorder %s30, 1
      %s32 = scalar_select %p31, 0, %s30
      %s33 = sadd.s32 1, %s22
      %s34 = scalar_select %p31, %s33, %s22
      %p35 = scmp.ge.s32.totalorder %s34, 1
      %s36 = scalar_select %p35, 0, %s34
      %s37 = sadd.s32 1, %s21
      %s38 = scalar_select %p35, %s37, %s21
      %p39 = scmp.ge.s32.totalorder %s38, 2
      %s40 = scalar_select %p39, 0, %s38
      %s41 = ssub.s32 %s21, %s40
      %s42 = ssub.s32 %s22, %s36
      %s43 = sor.u32 %s41, %s42
      %p44 = scmp.eq.s32.totalorder %s43, 0
      %s46 = sadd.s32 %s45, 1
      %s47 = scalar_select %p44, %s45, %s46
      %p50 = pneg %p44
      %p51 = scmp.eq.s32.totalorder %s14, 1
      %p52 = por %p50, %p51
      %p53 = scmp.ne.s32.totalorder %s45, %s48
      %p54 = scmp.eq.s32.totalorder %s14, 0
      %p55 = por %p53, %p54
      %p56 = scmp.ne.s32.totalorder %s45, %s48
      %p57 = scmp.eq.s32.totalorder %s19, 1
      %p58 = por %p56, %p57
      %p59 = scmp.ne.s32.totalorder %s48, %s49
      %p60 = scmp.eq.s32.totalorder %s19, 0
      %p61 = por %p59, %p60
      %p62 = scmp.ne.s32.totalorder %s48, %s49
      %p63 = scmp.eq.s32.totalorder %s20, 1
      %p64 = por %p62, %p63
      %p66 = scmp.ne.s32.totalorder %s49, %s65
      %p67 = scmp.eq.s32.totalorder %s20, 0
      %p68 = por %p66, %p67
      %s69 = ssub.s32 %s21, %s40
      %s70 = ssub.s32 %s23, %s32
      %s71 = sor.u32 %s69, %s70
      %p72 = scmp.eq.s32.totalorder %s71, 0
      %s74 = sadd.s32 %s73, 1
      %s75 = scalar_select %p72, %s73, %s74
      %p78 = pneg %p72
      %p79 = scmp.eq.s32.totalorder %s14, 1
      %p80 = por %p78, %p79
      %p81 = scmp.ne.s32.totalorder %s73, %s76
      %p82 = scmp.eq.s32.totalorder %s14, 0
      %p83 = por %p81, %p82
      %p84 = scmp.ne.s32.totalorder %s73, %s76
      %p85 = scmp.eq.s32.totalorder %s19, 1
      %p86 = por %p84, %p85
      %p87 = scmp.ne.s32.totalorder %s76, %s77
      %p88 = scmp.eq.s32.totalorder %s19, 0
      %p89 = por %p87, %p88
      %p90 = scmp.ne.s32.totalorder %s76, %s77
      %p91 = scmp.eq.s32.totalorder %s20, 1
      %p92 = por %p90, %p91
      %p94 = scmp.ne.s32.totalorder %s77, %s93
      %p95 = scmp.eq.s32.totalorder %s20, 0
      %p96 = por %p94, %p95
      %s97 = ssub.s32 %s21, %s40
      %s98 = ssub.s32 %s23, %s32
      %s99 = sor.u32 %s97, %s98
      %p100 = scmp.eq.s32.totalorder %s99, 0
      %s102 = sadd.s32 %s101, 1
      %s103 = scalar_select %p100, %s101, %s102
      %p106 = pneg %p100
      %p107 = scmp.eq.s32.totalorder %s14, 1
      %p108 = por %p106, %p107
      %p109 = scmp.ne.s32.totalorder %s101, %s104
      %p110 = scmp.eq.s32.totalorder %s14, 0
      %p111 = por %p109, %p110
      %p112 = scmp.ne.s32.totalorder %s101, %s104
      %p113 = scmp.eq.s32.totalorder %s19, 1
      %p114 = por %p112, %p113
      %p115 = scmp.ne.s32.totalorder %s104, %s105
      %p116 = scmp.eq.s32.totalorder %s19, 0
      %p117 = por %p115, %p116
      %p118 = scmp.ne.s32.totalorder %s104, %s105
      %p119 = scmp.eq.s32.totalorder %s20, 1
      %p120 = por %p118, %p119
      %p122 = scmp.ne.s32.totalorder %s105, %s121
      %p123 = scmp.eq.s32.totalorder %s20, 0
      %p124 = por %p122, %p123
      %s126 = sadd.s32 %s125, 1
      %p129 = scmp.eq.s32.totalorder %s14, 1
      %p130 = scmp.ne.s32.totalorder %s125, %s127
      %p131 = scmp.eq.s32.totalorder %s14, 0
      %p132 = por %p130, %p131
      %p133 = scmp.ne.s32.totalorder %s125, %s127
      %p134 = scmp.eq.s32.totalorder %s19, 1
      %p135 = por %p133, %p134
      %p136 = scmp.ne.s32.totalorder %s127, %s128
      %p137 = scmp.eq.s32.totalorder %s19, 0
      %p138 = por %p136, %p137
      %p139 = scmp.ne.s32.totalorder %s127, %s128
      %p140 = scmp.eq.s32.totalorder %s20, 1
      %p141 = por %p139, %p140
      %p143 = scmp.ne.s32.totalorder %s128, %s142
      %p144 = scmp.eq.s32.totalorder %s20, 0
      %p145 = por %p143, %p144
      %s147 = sadd.s32 %s146, 1
      %p150 = scmp.eq.s32.totalorder %s14, 1
      %p151 = scmp.ne.s32.totalorder %s146, %s148
      %p152 = scmp.eq.s32.totalorder %s14, 0
      %p153 = por %p151, %p152
      %p154 = scmp.ne.s32.totalorder %s146, %s148
      %p155 = scmp.eq.s32.totalorder %s19, 1
      %p156 = por %p154, %p155
      %p157 = scmp.ne.s32.totalorder %s148, %s149
      %p158 = scmp.eq.s32.totalorder %s19, 0
      %p159 = por %p157, %p158
      %p160 = scmp.ne.s32.totalorder %s148, %s149
      %p161 = scmp.eq.s32.totalorder %s20, 1
      %p162 = por %p160, %p161
      %p164 = scmp.ne.s32.totalorder %s149, %s163
      %p165 = scmp.eq.s32.totalorder %s20, 0
      %p166 = por %p164, %p165
      %s167 = ssub.s32 %s21, %s40
      %s168 = ssub.s32 %s22, %s36
      %s169 = sor.u32 %s167, %s168
      %p170 = scmp.eq.s32.totalorder %s169, 0
      %s172 = sadd.s32 %s171, 1
      %s173 = scalar_select %p170, %s171, %s172
      %p176 = pneg %p170
      %p177 = scmp.eq.s32.totalorder %s14, 1
      %p178 = por %p176, %p177
      %p179 = scmp.ne.s32.totalorder %s171, %s174
      %p180 = scmp.eq.s32.totalorder %s14, 0
      %p181 = por %p179, %p180
      %p182 = scmp.ne.s32.totalorder %s171, %s174
      %p183 = scmp.eq.s32.totalorder %s19, 1
      %p184 = por %p182, %p183
      %p185 = scmp.ne.s32.totalorder %s174, %s175
      %p186 = scmp.eq.s32.totalorder %s19, 0
      %p187 = por %p185, %p186
      %p188 = scmp.ne.s32.totalorder %s174, %s175
      %p189 = scmp.eq.s32.totalorder %s20, 1
      %p190 = por %p188, %p189
      %p192 = scmp.ne.s32.totalorder %s175, %s191
      %p193 = scmp.eq.s32.totalorder %s20, 0
      %p194 = por %p192, %p193
      %p195 = scmp.le.s32.totalorder 1, %s14
      %p196 = scmp.lt.s32.totalorder %s14, 3
      %p197 = pnand %p195, %p196
      %p198 = pneg %p197
      // Predicated region
      $region9: #{cross_attention.7} parent=5 // pred_check
        _
      $region10: #{cross_attention.7} parent=5 // pred_check_branch
        %200 = sbr.rel (%p197) target = $region12
      $region11: #{cross_attention.7} parent=5 // pred_region
        %s201 = ssub.s32 %s14, 1
        // Predicated region
        $region13: #{cross_attention.7} parent=11 // pred_check
          %p202 = pneg %p138
        $region14: #{cross_attention.7} parent=11 // pred_check_branch
          %204 = sbr.rel (%p202) target = $region16
        $region15: #{cross_attention.7} parent=11 // pred_region
          _
        $region16: #{cross_attention.7} parent=11 // pred_fallthru
          _
        // Predicated region
        $region17: #{cross_attention.7} parent=11 // pred_check
          %p205 = pneg %p159
        $region18: #{cross_attention.7} parent=11 // pred_check_branch
          %207 = sbr.rel (%p205) target = $region20
        $region19: #{cross_attention.7} parent=11 // pred_region
          _
        $region20: #{cross_attention.7} parent=11 // pred_fallthru
          _
      $region12: #{cross_attention.7} parent=5 // pred_fallthru
        _
      %p208 = scmp.lt.s32.totalorder %s14, 2
      // Predicated region
      $region21: #{cross_attention.7} parent=5 // pred_check
        %p209 = pneg %p208
      $region22: #{cross_attention.7} parent=5 // pred_check_branch
        %211 = sbr.rel (%p209) target = $region24
      $region23: #{cross_attention.7} parent=5 // pred_region
        // Predicated region
        $region25: #{cross_attention.7} parent=23 // pred_check
          %p212 = pneg %p55
        $region26: #{cross_attention.7} parent=23 // pred_check_branch
          %214 = sbr.rel (%p212) target = $region28
        $region27: #{cross_attention.7} parent=23 // pred_region
          %s215 = smul.u32 2, %s22
          %p216 = scmp.lt.s32.totalorder %s21, 1
          %s217 = scalar_select %p216, %s21, 1
          %p218 = scmp.lt.s32.totalorder %s215, 1
          %s219 = scalar_select %p218, %s215, 1
          %s220 = smul.addr %s217, 2
          %s221 = sadd.s32 %s219, %s220
          %s222 = smul.addr %s221, 4
          %s223 = scalar_lea.vmem %s0, %s222
          %s224 = smul.u32 2, %s22
        $region28: #{cross_attention.7} parent=23 // pred_fallthru
          _
        // Predicated region
        $region29: #{cross_attention.7} parent=23 // pred_check
          %p225 = pneg %p83
        $region30: #{cross_attention.7} parent=23 // pred_check_branch
          %227 = sbr.rel (%p225) target = $region32
        $region31: #{cross_attention.7} parent=23 // pred_region
          %p228 = scmp.lt.s32.totalorder %s21, 1
          %s229 = scalar_select %p228, %s21, 1
          %p230 = scmp.lt.s32.totalorder %s23, 0
          %s231 = scalar_select %p230, %s23, 0
          %s232 = sadd.s32 %s231, %s229
          %s233 = smul.addr %s232, 4
          %s234 = scalar_lea.vmem %s1, %s233
        $region32: #{cross_attention.7} parent=23 // pred_fallthru
          _
        // Predicated region
        $region33: #{cross_attention.7} parent=23 // pred_check
          %p235 = pneg %p111
        $region34: #{cross_attention.7} parent=23 // pred_check_branch
          %237 = sbr.rel (%p235) target = $region36
        $region35: #{cross_attention.7} parent=23 // pred_region
          %p238 = scmp.lt.s32.totalorder %s21, 1
          %s239 = scalar_select %p238, %s21, 1
          %p240 = scmp.lt.s32.totalorder %s23, 0
          %s241 = scalar_select %p240, %s23, 0
          %s242 = sadd.s32 %s241, %s239
          %s243 = smul.addr %s242, 4
          %s244 = scalar_lea.vmem %s2, %s243
        $region36: #{cross_attention.7} parent=23 // pred_fallthru
          _
      $region24: #{cross_attention.7} parent=5 // pred_fallthru
        _
      %p245 = scmp.le.s32.totalorder 1, %s14
      %p246 = scmp.lt.s32.totalorder %s14, 3
      %p247 = pnand %p245, %p246
      %p248 = pneg %p247
      // Predicated region
      $region37: #{cross_attention.7} parent=5 // pred_check
        _
      $region38: #{cross_attention.7} parent=5 // pred_check_branch
        %250 = sbr.rel (%p247) target = $region40
      $region39: #{cross_attention.7} parent=5 // pred_region
        %s251 = ssub.s32 %s14, 1
        %s252 = smul.u32 2, %s25
        %p253 = scmp.lt.s32.totalorder %s24, 1
        %s254 = scalar_select %p253, %s24, 1
        %p255 = scmp.lt.s32.totalorder %s252, 1
        %s256 = scalar_select %p255, %s252, 1
        %s257 = smul.addr %s254, 2
        %s258 = sadd.s32 %s256, %s257
        %s259 = smul.addr %s258, 4
        %s260 = scalar_lea.vmem %s0, %s259
        %p261 = pneg %p61
        %p262 = pneg %p58
        %p263 = scmp.lt.s32.totalorder %s24, 1
        %s264 = scalar_select %p263, %s24, 1
        %p265 = scmp.lt.s32.totalorder %s26, 0
        %s266 = scalar_select %p265, %s26, 0
        %s267 = sadd.s32 %s266, %s264
        %s268 = smul.addr %s267, 4
        %s269 = scalar_lea.vmem %s1, %s268
        %p270 = pneg %p89
        %p271 = pneg %p86
        %p272 = scmp.lt.s32.totalorder %s24, 1
        %s273 = scalar_select %p272, %s24, 1
        %p274 = scmp.lt.s32.totalorder %s26, 0
        %s275 = scalar_select %p274, %s26, 0
        %s276 = sadd.s32 %s275, %s273
        %s277 = smul.addr %s276, 4
        %s278 = scalar_lea.vmem %s2, %s277
        %p279 = pneg %p117
        %p280 = pneg %p114
        %p281 = pneg %p138
        %p282 = pneg %p135
        %p283 = pneg %p159
        %p284 = pneg %p156
        %p285 = pneg %p187
        %p286 = pneg %p184
        %s287 = sand.u32 %s174, 1
        %s288 = scalar_lea.sflag [#allocation7], %s287
        %s289 = sand.u32 %s174, 1
        %s290 = smul.addr %s289, 16
        %s291 = scalar_lea.vmem [#allocation6], %s290
        %s292 = smul.u32 2, %s25
        %p293 = scmp.lt.s32.totalorder %s24, 1
        %s294 = scalar_select %p293, %s24, 1
        %p295 = scmp.lt.s32.totalorder %s292, 1
        %s296 = scalar_select %p295, %s292, 1
        %s297 = smul.addr %s294, 2
        %s298 = sadd.s32 %s296, %s297
        %s299 = smul.addr %s298, 4
        %s300 = scalar_lea.vmem %s0, %s299
        %s301 = smul.u32 2, %s25
        %p302 = scmp.lt.s32.totalorder %s24, 1
        %s303 = scalar_select %p302, %s24, 1
        %p304 = scmp.lt.s32.totalorder %s26, 0
        %s305 = scalar_select %p304, %s26, 0
        %s306 = sadd.s32 %s305, %s303
        %s307 = smul.addr %s306, 4
        %s308 = scalar_lea.vmem %s1, %s307
        %p309 = scmp.lt.s32.totalorder %s24, 1
        %s310 = scalar_select %p309, %s24, 1
        %p311 = scmp.lt.s32.totalorder %s26, 0
        %s312 = scalar_select %p311, %s26, 0
        %s313 = sadd.s32 %s312, %s310
        %s314 = smul.addr %s313, 4
        %s315 = scalar_lea.vmem %s2, %s314
        %s316 = smul.u32 2, %s25
        %p318 = scmp.eq.s32.totalorder %s26, 0
        // Predicated region
        $region41: #{cross_attention.7} parent=39 // pred_check
          %p319 = pneg %p318
        $region42: #{cross_attention.7} parent=39 // pred_check_branch
          %321 = sbr.rel (%p319) target = $region44
        $region43: #{cross_attention.7} parent=39 // pred_region
          %v322 = vld [vmem:[%s300] sm:$0xf]
          %v323 = vld [vmem:[%s300 + $0x4] sm:$0xf]
          %326 = vrot.lane.b32.xlu0 %v322, 112
          %v327 = vpop.permute.xlu0 %326
          %328 = vrot.lane.b32.xlu0 %v323, 112
          %v329 = vpop.permute.xlu0 %328
          %332 = vrot.lane.b32.xlu0 %v322, 96
          %v333 = vpop.permute.xlu0 %332
          %334 = vrot.lane.b32.xlu0 %v323, 96
          %v335 = vpop.permute.xlu0 %334
          %338 = vrot.lane.b32.xlu0 %v322, 80
          %v339 = vpop.permute.xlu0 %338
          %340 = vrot.lane.b32.xlu0 %v323, 80
          %v341 = vpop.permute.xlu0 %340
          %344 = vrot.lane.b32.xlu0 %v322, 64
          %v345 = vpop.permute.xlu0 %344
          %346 = vrot.lane.b32.xlu0 %v323, 64
          %v347 = vpop.permute.xlu0 %346
          %350 = vrot.lane.b32.xlu0 %v322, 48
          %v351 = vpop.permute.xlu0 %350
          %352 = vrot.lane.b32.xlu0 %v323, 48
          %v353 = vpop.permute.xlu0 %352
          %356 = vrot.lane.b32.xlu0 %v322, 32
          %v357 = vpop.permute.xlu0 %356
          %358 = vrot.lane.b32.xlu0 %v323, 32
          %v359 = vpop.permute.xlu0 %358
          %362 = vrot.lane.b32.xlu0 %v322, 16
          %v363 = vpop.permute.xlu0 %362
          %364 = vrot.lane.b32.xlu0 %v323, 16
          %v365 = vpop.permute.xlu0 %364
          %v368 = vcombine.low %v322, %v345
          %v370 = vunpack.c.l.s4 1983009808
          %v371 = vunpack.c.0.s8 %v370
          %v372 = vlaneseq
          %v373 = vshrl.u32 %v372, 7
          %v374 = vsub.s32 %v371, %v373
          %v375 = vrot.slane %v368, %v374
          %v376 = vcombine.low %v333, %v357
          %v378 = vunpack.c.l.s4 1983009808
          %v379 = vunpack.c.0.s8 %v378
          %v380 = vlaneseq
          %v381 = vshrl.u32 %v380, 7
          %v382 = vsub.s32 %v379, %v381
          %v383 = vrot.slane %v376, %v382
          %v384 = vcombine.low %v375, %v383
          %v385 = vcombine.high %v375, %v383
          %v387 = vunpack.c.l.s4 1934713408
          %v388 = vunpack.c.0.s8 %v387
          %v389 = vlaneseq
          %v390 = vshrl.u32 %v389, 7
          %v391 = vsub.s32 %v388, %v390
          %v392 = vrot.slane %v384, %v391
          %v394 = vunpack.c.l.s4 1934713408
          %v395 = vunpack.c.0.s8 %v394
          %v396 = vlaneseq
          %v397 = vshrl.u32 %v396, 7
          %v398 = vsub.s32 %v395, %v397
          %v399 = vrot.slane %v385, %v398
          %v400 = vcombine.high %v392, 0
          %v401 = vcombine.high %v399, 0
          %v402 = vcombine.low %v327, %v351
          %v404 = vunpack.c.l.s4 1983009808
          %v405 = vunpack.c.0.s8 %v404
          %v406 = vlaneseq
          %v407 = vshrl.u32 %v406, 7
          %v408 = vsub.s32 %v405, %v407
          %v409 = vrot.slane %v402, %v408
          %v410 = vcombine.low %v339, %v363
          %v412 = vunpack.c.l.s4 1983009808
          %v413 = vunpack.c.0.s8 %v412
          %v414 = vlaneseq
          %v415 = vshrl.u32 %v414, 7
          %v416 = vsub.s32 %v413, %v415
          %v417 = vrot.slane %v410, %v416
          %v418 = vcombine.low %v409, %v417
          %v419 = vcombine.high %v409, %v417
          %v421 = vunpack.c.l.s4 1934713408
          %v422 = vunpack.c.0.s8 %v421
          %v423 = vlaneseq
          %v424 = vshrl.u32 %v423, 7
          %v425 = vsub.s32 %v422, %v424
          %v426 = vrot.slane %v418, %v425
          %v428 = vunpack.c.l.s4 1934713408
          %v429 = vunpack.c.0.s8 %v428
          %v430 = vlaneseq
          %v431 = vshrl.u32 %v430, 7
          %v432 = vsub.s32 %v429, %v431
          %v433 = vrot.slane %v419, %v432
          %v434 = vcombine.high %v426, 0
          %v435 = vcombine.high %v433, 0
          %v436 = vcombine.low %v323, %v347
          %v438 = vunpack.c.l.s4 1983009808
          %v439 = vunpack.c.0.s8 %v438
          %v440 = vlaneseq
          %v441 = vshrl.u32 %v440, 7
          %v442 = vsub.s32 %v439, %v441
          %v443 = vrot.slane %v436, %v442
          %v444 = vcombine.low %v335, %v359
          %v446 = vunpack.c.l.s4 1983009808
          %v447 = vunpack.c.0.s8 %v446
          %v448 = vlaneseq
          %v449 = vshrl.u32 %v448, 7
          %v450 = vsub.s32 %v447, %v449
          %v451 = vrot.slane %v444, %v450
          %v452 = vcombine.low %v443, %v451
          %v453 = vcombine.high %v443, %v451
          %v455 = vunpack.c.l.s4 1934713408
          %v456 = vunpack.c.0.s8 %v455
          %v457 = vlaneseq
          %v458 = vshrl.u32 %v457, 7
          %v459 = vsub.s32 %v456, %v458
          %v460 = vrot.slane %v452, %v459
          %v462 = vunpack.c.l.s4 1934713408
          %v463 = vunpack.c.0.s8 %v462
          %v464 = vlaneseq
          %v465 = vshrl.u32 %v464, 7
          %v466 = vsub.s32 %v463, %v465
          %v467 = vrot.slane %v453, %v466
          %v468 = vcombine.high %v460, 0
          %v469 = vcombine.high %v467, 0
          %v470 = vcombine.low %v329, %v353
          %v472 = vunpack.c.l.s4 1983009808
          %v473 = vunpack.c.0.s8 %v472
          %v474 = vlaneseq
          %v475 = vshrl.u32 %v474, 7
          %v476 = vsub.s32 %v473, %v475
          %v477 = vrot.slane %v470, %v476
          %v478 = vcombine.low %v341, %v365
          %v480 = vunpack.c.l.s4 1983009808
          %v481 = vunpack.c.0.s8 %v480
          %v482 = vlaneseq
          %v483 = vshrl.u32 %v482, 7
          %v484 = vsub.s32 %v481, %v483
          %v485 = vrot.slane %v478, %v484
          %v486 = vcombine.low %v477, %v485
          %v487 = vcombine.high %v477, %v485
          %v489 = vunpack.c.l.s4 1934713408
          %v490 = vunpack.c.0.s8 %v489
          %v491 = vlaneseq
          %v492 = vshrl.u32 %v491, 7
          %v493 = vsub.s32 %v490, %v492
          %v494 = vrot.slane %v486, %v493
          %v496 = vunpack.c.l.s4 1934713408
          %v497 = vunpack.c.0.s8 %v496
          %v498 = vlaneseq
          %v499 = vshrl.u32 %v498, 7
          %v500 = vsub.s32 %v497, %v499
          %v501 = vrot.slane %v487, %v500
          %v502 = vcombine.high %v494, 0
          %v503 = vcombine.high %v501, 0
          %v506 = vpack.i.b16 %v426, %v392
          %v508 = vshrl.u32 %v392, 16
          %v509 = vshrl.u32 %v426, 16
          %v510 = vpack.i.b16 %v509, %v508
          %v514 = vpack.i.b16 %v434, %v400
          %v516 = vshrl.u32 %v400, 16
          %v517 = vshrl.u32 %v434, 16
          %v518 = vpack.i.b16 %v517, %v516
          %v522 = vpack.i.b16 %v433, %v399
          %v524 = vshrl.u32 %v399, 16
          %v525 = vshrl.u32 %v433, 16
          %v526 = vpack.i.b16 %v525, %v524
          %v530 = vpack.i.b16 %v435, %v401
          %v532 = vshrl.u32 %v401, 16
          %v533 = vshrl.u32 %v435, 16
          %v534 = vpack.i.b16 %v533, %v532
          %v538 = vpack.i.b16 %v494, %v460
          %v540 = vshrl.u32 %v460, 16
          %v541 = vshrl.u32 %v494, 16
          %v542 = vpack.i.b16 %v541, %v540
          %v546 = vpack.i.b16 %v502, %v468
          %v548 = vshrl.u32 %v468, 16
          %v549 = vshrl.u32 %v502, 16
          %v550 = vpack.i.b16 %v549, %v548
          %v554 = vpack.i.b16 %v501, %v467
          %v556 = vshrl.u32 %v467, 16
          %v557 = vshrl.u32 %v501, 16
          %v558 = vpack.i.b16 %v557, %v556
          %v562 = vpack.i.b16 %v503, %v469
          %v564 = vshrl.u32 %v469, 16
          %v565 = vshrl.u32 %v503, 16
          %v566 = vpack.i.b16 %v565, %v564
          %vm568 = vcmask 125952
          %569 = vst.msk [vmem:[#allocation2] sm:$0xf] %vm568, %v506
          %570 = vst.msk [vmem:[#allocation2 + $0x4] sm:$0xf] %vm568, %v510
          %571 = vst.msk [vmem:[#allocation2 + $0x8] sm:$0xf] %vm568, %v514
          %572 = vst.msk [vmem:[#allocation2 + $0xc] sm:$0xf] %vm568, %v518
          %573 = vst.msk [vmem:[#allocation2 + $0x10] sm:$0xf] %vm568, %v522
          %574 = vst.msk [vmem:[#allocation2 + $0x14] sm:$0xf] %vm568, %v526
          %575 = vst.msk [vmem:[#allocation2 + $0x18] sm:$0xf] %vm568, %v530
          %576 = vst.msk [vmem:[#allocation2 + $0x1c] sm:$0xf] %vm568, %v534
          %577 = vst.msk [vmem:[#allocation2 + $0x20] sm:$0xf] %vm568, %v538
          %578 = vst.msk [vmem:[#allocation2 + $0x24] sm:$0xf] %vm568, %v542
          %579 = vst.msk [vmem:[#allocation2 + $0x28] sm:$0xf] %vm568, %v546
          %580 = vst.msk [vmem:[#allocation2 + $0x2c] sm:$0xf] %vm568, %v550
          %581 = vst.msk [vmem:[#allocation2 + $0x30] sm:$0xf] %vm568, %v554
          %582 = vst.msk [vmem:[#allocation2 + $0x34] sm:$0xf] %vm568, %v558
          %583 = vst.msk [vmem:[#allocation2 + $0x38] sm:$0xf] %vm568, %v562
          %584 = vst.msk [vmem:[#allocation2 + $0x3c] sm:$0xf] %vm568, %v566
          %vm585 = vcmask 7168
          %586 = vst.msk [vmem:[#allocation3] sm:$0xff] %vm585, -inf
          %587 = vst.msk [vmem:[#allocation3 + $0x8] sm:$0xff] %vm585, -inf
          %588 = vst.msk [vmem:[#allocation3 + $0x10] sm:$0xff] %vm585, -inf
          %589 = vst.msk [vmem:[#allocation3 + $0x18] sm:$0xff] %vm585, -inf
          %590 = vst.msk [vmem:[#allocation3 + $0x20] sm:$0xff] %vm585, -inf
          %591 = vst.msk [vmem:[#allocation3 + $0x28] sm:$0xff] %vm585, -inf
          %592 = vst.msk [vmem:[#allocation3 + $0x30] sm:$0xff] %vm585, -inf
          %593 = vst.msk [vmem:[#allocation3 + $0x38] sm:$0xff] %vm585, -inf
          %594 = vst.msk [vmem:[#allocation3 + $0x40] sm:$0xff] %vm585, -inf
          %595 = vst.msk [vmem:[#allocation3 + $0x48] sm:$0xff] %vm585, -inf
          %596 = vst.msk [vmem:[#allocation3 + $0x50] sm:$0xff] %vm585, -inf
          %597 = vst.msk [vmem:[#allocation3 + $0x58] sm:$0xff] %vm585, -inf
          %598 = vst.msk [vmem:[#allocation3 + $0x60] sm:$0xff] %vm585, -inf
          %599 = vst.msk [vmem:[#allocation3 + $0x68] sm:$0xff] %vm585, -inf
          %600 = vst.msk [vmem:[#allocation3 + $0x70] sm:$0xff] %vm585, -inf
          %601 = vst.msk [vmem:[#allocation3 + $0x78] sm:$0xff] %vm585, -inf
          %602 = vst.msk [vmem:[#allocation4] sm:$0xff] %vm585, 0.0
          %603 = vst.msk [vmem:[#allocation4 + $0x8] sm:$0xff] %vm585, 0.0
          %604 = vst.msk [vmem:[#allocation4 + $0x10] sm:$0xff] %vm585, 0.0
          %605 = vst.msk [vmem:[#allocation4 + $0x18] sm:$0xff] %vm585, 0.0
          %606 = vst.msk [vmem:[#allocation4 + $0x20] sm:$0xff] %vm585, 0.0
          %607 = vst.msk [vmem:[#allocation4 + $0x28] sm:$0xff] %vm585, 0.0
          %608 = vst.msk [vmem:[#allocation4 + $0x30] sm:$0xff] %vm585, 0.0
          %609 = vst.msk [vmem:[#allocation4 + $0x38] sm:$0xff] %vm585, 0.0
          %610 = vst.msk [vmem:[#allocation4 + $0x40] sm:$0xff] %vm585, 0.0
          %611 = vst.msk [vmem:[#allocation4 + $0x48] sm:$0xff] %vm585, 0.0
          %612 = vst.msk [vmem:[#allocation4 + $0x50] sm:$0xff] %vm585, 0.0
          %613 = vst.msk [vmem:[#allocation4 + $0x58] sm:$0xff] %vm585, 0.0
          %614 = vst.msk [vmem:[#allocation4 + $0x60] sm:$0xff] %vm585, 0.0
          %615 = vst.msk [vmem:[#allocation4 + $0x68] sm:$0xff] %vm585, 0.0
          %616 = vst.msk [vmem:[#allocation4 + $0x70] sm:$0xff] %vm585, 0.0
          %617 = vst.msk [vmem:[#allocation4 + $0x78] sm:$0xff] %vm585, 0.0
          %vm618 = vcmask 130048
          %619 = vst.msk [vmem:[#allocation5] sm:$0xff] %vm618, 0.0
          %620 = vst.msk [vmem:[#allocation5 + $0x8] sm:$0xff] %vm618, 0.0
          %621 = vst.msk [vmem:[#allocation5 + $0x10] sm:$0xff] %vm618, 0.0
          %622 = vst.msk [vmem:[#allocation5 + $0x18] sm:$0xff] %vm618, 0.0
          %623 = vst.msk [vmem:[#allocation5 + $0x20] sm:$0xff] %vm618, 0.0
          %624 = vst.msk [vmem:[#allocation5 + $0x28] sm:$0xff] %vm618, 0.0
          %625 = vst.msk [vmem:[#allocation5 + $0x30] sm:$0xff] %vm618, 0.0
          %626 = vst.msk [vmem:[#allocation5 + $0x38] sm:$0xff] %vm618, 0.0
          %627 = vst.msk [vmem:[#allocation5 + $0x40] sm:$0xff] %vm618, 0.0
          %628 = vst.msk [vmem:[#allocation5 + $0x48] sm:$0xff] %vm618, 0.0
          %629 = vst.msk [vmem:[#allocation5 + $0x50] sm:$0xff] %vm618, 0.0
          %630 = vst.msk [vmem:[#allocation5 + $0x58] sm:$0xff] %vm618, 0.0
          %631 = vst.msk [vmem:[#allocation5 + $0x60] sm:$0xff] %vm618, 0.0
          %632 = vst.msk [vmem:[#allocation5 + $0x68] sm:$0xff] %vm618, 0.0
          %633 = vst.msk [vmem:[#allocation5 + $0x70] sm:$0xff] %vm618, 0.0
          %634 = vst.msk [vmem:[#allocation5 + $0x78] sm:$0xff] %vm618, 0.0
        $region44: #{cross_attention.7} parent=39 // pred_fallthru
          _
        %v635 = vld [vmem:[%s308] sm:$0xf]
        %637 = vrot.lane.b32.xlu0 %v635, 112
        %v638 = vpop.permute.xlu0 %637
        %640 = vrot.lane.b32.xlu0 %v635, 96
        %v641 = vpop.permute.xlu0 %640
        %643 = vrot.lane.b32.xlu0 %v635, 80
        %v644 = vpop.permute.xlu0 %643
        %646 = vrot.lane.b32.xlu0 %v635, 64
        %v647 = vpop.permute.xlu0 %646
        %649 = vrot.lane.b32.xlu0 %v635, 48
        %v650 = vpop.permute.xlu0 %649
        %652 = vrot.lane.b32.xlu0 %v635, 32
        %v653 = vpop.permute.xlu0 %652
        %655 = vrot.lane.b32.xlu0 %v635, 16
        %v656 = vpop.permute.xlu0 %655
        %v658 = vcombine.low %v635, %v647
        %v660 = vunpack.c.l.s4 1983009808
        %v661 = vunpack.c.0.s8 %v660
        %v662 = vlaneseq
        %v663 = vshrl.u32 %v662, 7
        %v664 = vsub.s32 %v661, %v663
        %v665 = vrot.slane %v658, %v664
        %v666 = vcombine.low %v641, %v653
        %v668 = vunpack.c.l.s4 1983009808
        %v669 = vunpack.c.0.s8 %v668
        %v670 = vlaneseq
        %v671 = vshrl.u32 %v670, 7
        %v672 = vsub.s32 %v669, %v671
        %v673 = vrot.slane %v666, %v672
        %v674 = vcombine.low %v665, %v673
        %v675 = vcombine.high %v665, %v673
        %v677 = vunpack.c.l.s4 1934713408
        %v678 = vunpack.c.0.s8 %v677
        %v679 = vlaneseq
        %v680 = vshrl.u32 %v679, 7
        %v681 = vsub.s32 %v678, %v680
        %v682 = vrot.slane %v674, %v681
        %v684 = vunpack.c.l.s4 1934713408
        %v685 = vunpack.c.0.s8 %v684
        %v686 = vlaneseq
        %v687 = vshrl.u32 %v686, 7
        %v688 = vsub.s32 %v685, %v687
        %v689 = vrot.slane %v675, %v688
        %v690 = vcombine.high %v682, 0
        %v691 = vcombine.high %v689, 0
        %v692 = vcombine.low %v638, %v650
        %v694 = vunpack.c.l.s4 1983009808
        %v695 = vunpack.c.0.s8 %v694
        %v696 = vlaneseq
        %v697 = vshrl.u32 %v696, 7
        %v698 = vsub.s32 %v695, %v697
        %v699 = vrot.slane %v692, %v698
        %v700 = vcombine.low %v644, %v656
        %v702 = vunpack.c.l.s4 1983009808
        %v703 = vunpack.c.0.s8 %v702
        %v704 = vlaneseq
        %v705 = vshrl.u32 %v704, 7
        %v706 = vsub.s32 %v703, %v705
        %v707 = vrot.slane %v700, %v706
        %v708 = vcombine.low %v699, %v707
        %v709 = vcombine.high %v699, %v707
        %v711 = vunpack.c.l.s4 1934713408
        %v712 = vunpack.c.0.s8 %v711
        %v713 = vlaneseq
        %v714 = vshrl.u32 %v713, 7
        %v715 = vsub.s32 %v712, %v714
        %v716 = vrot.slane %v708, %v715
        %v718 = vunpack.c.l.s4 1934713408
        %v719 = vunpack.c.0.s8 %v718
        %v720 = vlaneseq
        %v721 = vshrl.u32 %v720, 7
        %v722 = vsub.s32 %v719, %v721
        %v723 = vrot.slane %v709, %v722
        %v724 = vcombine.high %v716, 0
        %v725 = vcombine.high %v723, 0
        %v728 = vpack.i.b16 %v716, %v682
        %v730 = vshrl.u32 %v682, 16
        %v731 = vshrl.u32 %v716, 16
        %v732 = vpack.i.b16 %v731, %v730
        %v736 = vpack.i.b16 %v724, %v690
        %v738 = vshrl.u32 %v690, 16
        %v739 = vshrl.u32 %v724, 16
        %v740 = vpack.i.b16 %v739, %v738
        %v744 = vpack.i.b16 %v723, %v689
        %v746 = vshrl.u32 %v689, 16
        %v747 = vshrl.u32 %v723, 16
        %v748 = vpack.i.b16 %v747, %v746
        %v752 = vpack.i.b16 %v725, %v691
        %v754 = vshrl.u32 %v691, 16
        %v755 = vshrl.u32 %v725, 16
        %v756 = vpack.i.b16 %v755, %v754
        %v758 = vld [vmem:[%s315] sm:$0xf]
        %760 = vrot.lane.b32.xlu0 %v758, 112
        %v761 = vpop.permute.xlu0 %760
        %763 = vrot.lane.b32.xlu0 %v758, 96
        %v764 = vpop.permute.xlu0 %763
        %766 = vrot.lane.b32.xlu0 %v758, 80
        %v767 = vpop.permute.xlu0 %766
        %769 = vrot.lane.b32.xlu0 %v758, 64
        %v770 = vpop.permute.xlu0 %769
        %772 = vrot.lane.b32.xlu0 %v758, 48
        %v773 = vpop.permute.xlu0 %772
        %775 = vrot.lane.b32.xlu0 %v758, 32
        %v776 = vpop.permute.xlu0 %775
        %778 = vrot.lane.b32.xlu0 %v758, 16
        %v779 = vpop.permute.xlu0 %778
        %v781 = vcombine.low %v758, %v770
        %v783 = vunpack.c.l.s4 1983009808
        %v784 = vunpack.c.0.s8 %v783
        %v785 = vlaneseq
        %v786 = vshrl.u32 %v785, 7
        %v787 = vsub.s32 %v784, %v786
        %v788 = vrot.slane %v781, %v787
        %v789 = vcombine.low %v764, %v776
        %v791 = vunpack.c.l.s4 1983009808
        %v792 = vunpack.c.0.s8 %v791
        %v793 = vlaneseq
        %v794 = vshrl.u32 %v793, 7
        %v795 = vsub.s32 %v792, %v794
        %v796 = vrot.slane %v789, %v795
        %v797 = vcombine.low %v788, %v796
        %v798 = vcombine.high %v788, %v796
        %v800 = vunpack.c.l.s4 1934713408
        %v801 = vunpack.c.0.s8 %v800
        %v802 = vlaneseq
        %v803 = vshrl.u32 %v802, 7
        %v804 = vsub.s32 %v801, %v803
        %v805 = vrot.slane %v797, %v804
        %v807 = vunpack.c.l.s4 1934713408
        %v808 = vunpack.c.0.s8 %v807
        %v809 = vlaneseq
        %v810 = vshrl.u32 %v809, 7
        %v811 = vsub.s32 %v808, %v810
        %v812 = vrot.slane %v798, %v811
        %v813 = vcombine.high %v805, 0
        %v814 = vcombine.high %v812, 0
        %v815 = vcombine.low %v761, %v773
        %v817 = vunpack.c.l.s4 1983009808
        %v818 = vunpack.c.0.s8 %v817
        %v819 = vlaneseq
        %v820 = vshrl.u32 %v819, 7
        %v821 = vsub.s32 %v818, %v820
        %v822 = vrot.slane %v815, %v821
        %v823 = vcombine.low %v767, %v779
        %v825 = vunpack.c.l.s4 1983009808
        %v826 = vunpack.c.0.s8 %v825
        %v827 = vlaneseq
        %v828 = vshrl.u32 %v827, 7
        %v829 = vsub.s32 %v826, %v828
        %v830 = vrot.slane %v823, %v829
        %v831 = vcombine.low %v822, %v830
        %v832 = vcombine.high %v822, %v830
        %v834 = vunpack.c.l.s4 1934713408
        %v835 = vunpack.c.0.s8 %v834
        %v836 = vlaneseq
        %v837 = vshrl.u32 %v836, 7
        %v838 = vsub.s32 %v835, %v837
        %v839 = vrot.slane %v831, %v838
        %v841 = vunpack.c.l.s4 1934713408
        %v842 = vunpack.c.0.s8 %v841
        %v843 = vlaneseq
        %v844 = vshrl.u32 %v843, 7
        %v845 = vsub.s32 %v842, %v844
        %v846 = vrot.slane %v832, %v845
        %v847 = vcombine.high %v839, 0
        %v848 = vcombine.high %v846, 0
        %v851 = vpack.i.b16 %v839, %v805
        %v853 = vshrl.u32 %v805, 16
        %v854 = vshrl.u32 %v839, 16
        %v855 = vpack.i.b16 %v854, %v853
        %v859 = vpack.i.b16 %v847, %v813
        %v861 = vshrl.u32 %v813, 16
        %v862 = vshrl.u32 %v847, 16
        %v863 = vpack.i.b16 %v862, %v861
        %v867 = vpack.i.b16 %v846, %v812
        %v869 = vshrl.u32 %v812, 16
        %v870 = vshrl.u32 %v846, 16
        %v871 = vpack.i.b16 %v870, %v869
        %v875 = vpack.i.b16 %v848, %v814
        %v877 = vshrl.u32 %v814, 16
        %v878 = vshrl.u32 %v848, 16
        %v879 = vpack.i.b16 %v878, %v877
        %v881 = vld [vmem:[#allocation2] sm:$0xf]
        %v882 = vld [vmem:[#allocation2 + $0x4] sm:$0xf]
        %v883 = vld [vmem:[#allocation2 + $0x8] sm:$0xf]
        %v884 = vld [vmem:[#allocation2 + $0xc] sm:$0xf]
        %v885 = vld [vmem:[#allocation2 + $0x10] sm:$0xf]
        %v886 = vld [vmem:[#allocation2 + $0x14] sm:$0xf]
        %v887 = vld [vmem:[#allocation2 + $0x18] sm:$0xf]
        %v888 = vld [vmem:[#allocation2 + $0x1c] sm:$0xf]
        %v889 = vld [vmem:[#allocation2 + $0x20] sm:$0xf]
        %v890 = vld [vmem:[#allocation2 + $0x24] sm:$0xf]
        %v891 = vld [vmem:[#allocation2 + $0x28] sm:$0xf]
        %v892 = vld [vmem:[#allocation2 + $0x2c] sm:$0xf]
        %v893 = vld [vmem:[#allocation2 + $0x30] sm:$0xf]
        %v894 = vld [vmem:[#allocation2 + $0x34] sm:$0xf]
        %v895 = vld [vmem:[#allocation2 + $0x38] sm:$0xf]
        %v896 = vld [vmem:[#allocation2 + $0x3c] sm:$0xf]
        %v897 = vcombine.low %v881, %v885
        %v899 = vunpack.c.l.s4 1983009808
        %v900 = vunpack.c.0.s8 %v899
        %v901 = vlaneseq
        %v902 = vshrl.u32 %v901, 7
        %v903 = vsub.s32 %v900, %v902
        %v904 = vrot.slane %v897, %v903
        %v905 = vcombine.low %v883, %v887
        %v907 = vunpack.c.l.s4 1983009808
        %v908 = vunpack.c.0.s8 %v907
        %v909 = vlaneseq
        %v910 = vshrl.u32 %v909, 7
        %v911 = vsub.s32 %v908, %v910
        %v912 = vrot.slane %v905, %v911
        %v913 = vcombine.low %v904, %v912
        %v914 = vcombine.high %v904, %v912
        %v916 = vunpack.c.l.s4 1934713408
        %v917 = vunpack.c.0.s8 %v916
        %v918 = vlaneseq
        %v919 = vshrl.u32 %v918, 7
        %v920 = vsub.s32 %v917, %v919
        %v921 = vrot.slane %v913, %v920
        %v923 = vunpack.c.l.s4 1934713408
        %v924 = vunpack.c.0.s8 %v923
        %v925 = vlaneseq
        %v926 = vshrl.u32 %v925, 7
        %v927 = vsub.s32 %v924, %v926
        %v928 = vrot.slane %v914, %v927
        %v929 = vcombine.high %v921, 0
        %v930 = vcombine.high %v928, 0
        %v931 = vcombine.low %v882, %v886
        %v933 = vunpack.c.l.s4 1983009808
        %v934 = vunpack.c.0.s8 %v933
        %v935 = vlaneseq
        %v936 = vshrl.u32 %v935, 7
        %v937 = vsub.s32 %v934, %v936
        %v938 = vrot.slane %v931, %v937
        %v939 = vcombine.low %v884, %v888
        %v941 = vunpack.c.l.s4 1983009808
        %v942 = vunpack.c.0.s8 %v941
        %v943 = vlaneseq
        %v944 = vshrl.u32 %v943, 7
        %v945 = vsub.s32 %v942, %v944
        %v946 = vrot.slane %v939, %v945
        %v947 = vcombine.low %v938, %v946
        %v948 = vcombine.high %v938, %v946
        %v950 = vunpack.c.l.s4 1934713408
        %v951 = vunpack.c.0.s8 %v950
        %v952 = vlaneseq
        %v953 = vshrl.u32 %v952, 7
        %v954 = vsub.s32 %v951, %v953
        %v955 = vrot.slane %v947, %v954
        %v957 = vunpack.c.l.s4 1934713408
        %v958 = vunpack.c.0.s8 %v957
        %v959 = vlaneseq
        %v960 = vshrl.u32 %v959, 7
        %v961 = vsub.s32 %v958, %v960
        %v962 = vrot.slane %v948, %v961
        %v963 = vcombine.high %v955, 0
        %v964 = vcombine.high %v962, 0
        %v965 = vcombine.low %v889, %v893
        %v967 = vunpack.c.l.s4 1983009808
        %v968 = vunpack.c.0.s8 %v967
        %v969 = vlaneseq
        %v970 = vshrl.u32 %v969, 7
        %v971 = vsub.s32 %v968, %v970
        %v972 = vrot.slane %v965, %v971
        %v973 = vcombine.low %v891, %v895
        %v975 = vunpack.c.l.s4 1983009808
        %v976 = vunpack.c.0.s8 %v975
        %v977 = vlaneseq
        %v978 = vshrl.u32 %v977, 7
        %v979 = vsub.s32 %v976, %v978
        %v980 = vrot.slane %v973, %v979
        %v981 = vcombine.low %v972, %v980
        %v982 = vcombine.high %v972, %v980
        %v984 = vunpack.c.l.s4 1934713408
        %v985 = vunpack.c.0.s8 %v984
        %v986 = vlaneseq
        %v987 = vshrl.u32 %v986, 7
        %v988 = vsub.s32 %v985, %v987
        %v989 = vrot.slane %v981, %v988
        %v991 = vunpack.c.l.s4 1934713408
        %v992 = vunpack.c.0.s8 %v991
        %v993 = vlaneseq
        %v994 = vshrl.u32 %v993, 7
        %v995 = vsub.s32 %v992, %v994
        %v996 = vrot.slane %v982, %v995
        %v997 = vcombine.high %v989, 0
        %v998 = vcombine.high %v996, 0
        %v999 = vcombine.low %v890, %v894
        %v1001 = vunpack.c.l.s4 1983009808
        %v1002 = vunpack.c.0.s8 %v1001
        %v1003 = vlaneseq
        %v1004 = vshrl.u32 %v1003, 7
        %v1005 = vsub.s32 %v1002, %v1004
        %v1006 = vrot.slane %v999, %v1005
        %v1007 = vcombine.low %v892, %v896
        %v1009 = vunpack.c.l.s4 1983009808
        %v1010 = vunpack.c.0.s8 %v1009
        %v1011 = vlaneseq
        %v1012 = vshrl.u32 %v1011, 7
        %v1013 = vsub.s32 %v1010, %v1012
        %v1014 = vrot.slane %v1007, %v1013
        %v1015 = vcombine.low %v1006, %v1014
        %v1016 = vcombine.high %v1006, %v1014
        %v1018 = vunpack.c.l.s4 1934713408
        %v1019 = vunpack.c.0.s8 %v1018
        %v1020 = vlaneseq
        %v1021 = vshrl.u32 %v1020, 7
        %v1022 = vsub.s32 %v1019, %v1021
        %v1023 = vrot.slane %v1015, %v1022
        %v1025 = vunpack.c.l.s4 1934713408
        %v1026 = vunpack.c.0.s8 %v1025
        %v1027 = vlaneseq
        %v1028 = vshrl.u32 %v1027, 7
        %v1029 = vsub.s32 %v1026, %v1028
        %v1030 = vrot.slane %v1016, %v1029
        %v1031 = vcombine.high %v1023, 0
        %v1032 = vcombine.high %v1030, 0
        %v1035 = vpack.i.b16 %v955, %v921
        %v1036 = vshrl.u32 %v921, 16
        %v1037 = vshrl.u32 %v955, 16
        %v1038 = vpack.i.b16 %v1037, %v1036
        %v1041 = vpack.i.b16 %v963, %v929
        %v1042 = vshrl.u32 %v929, 16
        %v1043 = vshrl.u32 %v963, 16
        %v1044 = vpack.i.b16 %v1043, %v1042
        %v1047 = vpack.i.b16 %v962, %v928
        %v1048 = vshrl.u32 %v928, 16
        %v1049 = vshrl.u32 %v962, 16
        %v1050 = vpack.i.b16 %v1049, %v1048
        %v1053 = vpack.i.b16 %v964, %v930
        %v1054 = vshrl.u32 %v930, 16
        %v1055 = vshrl.u32 %v964, 16
        %v1056 = vpack.i.b16 %v1055, %v1054
        %v1059 = vpack.i.b16 %v1023, %v989
        %v1060 = vshrl.u32 %v989, 16
        %v1061 = vshrl.u32 %v1023, 16
        %v1062 = vpack.i.b16 %v1061, %v1060
        %v1065 = vpack.i.b16 %v1031, %v997
        %v1066 = vshrl.u32 %v997, 16
        %v1067 = vshrl.u32 %v1031, 16
        %v1068 = vpack.i.b16 %v1067, %v1066
        %v1071 = vpack.i.b16 %v1030, %v996
        %v1072 = vshrl.u32 %v996, 16
        %v1073 = vshrl.u32 %v1030, 16
        %v1074 = vpack.i.b16 %v1073, %v1072
        %v1077 = vpack.i.b16 %v1032, %v998
        %v1078 = vshrl.u32 %v998, 16
        %v1079 = vshrl.u32 %v1032, 16
        %v1080 = vpack.i.b16 %v1079, %v1078
        %1081 = vxpose.xlu0.c.b16.start [1/8] %v728, 128
        %1082 = vxpose.xlu0.c.b16.cont [2/8] 0, 128
        %1083 = vxpose.xlu0.c.b16.cont [3/8] 0, 128
        %1084 = vxpose.xlu0.c.b16.cont [4/8] 0, 128
        %1085 = vxpose.xlu0.c.b16.cont [5/8] 0, 128
        %1086 = vxpose.xlu0.c.b16.cont [6/8] 0, 128
        %1087 = vxpose.xlu0.c.b16.cont [7/8] 0, 128
        %1088 = vxpose.xlu0.c.b16.end [8/8] 0, 128
        %v1089 = vpop.trf.xlu0
        %v1090 = vpop.trf.xlu0
        %v1091 = vpop.trf.xlu0
        %v1092 = vpop.trf.xlu0
        %v1093 = vpop.trf.xlu0
        %v1094 = vpop.trf.xlu0
        %v1095 = vpop.trf.xlu0
        %v1096 = vpop.trf.xlu0
        %1097 = vxpose.xlu0.c.b16.start [1/8] %v732, 128
        %1098 = vxpose.xlu0.c.b16.cont [2/8] 0, 128
        %1099 = vxpose.xlu0.c.b16.cont [3/8] 0, 128
        %1100 = vxpose.xlu0.c.b16.cont [4/8] 0, 128
        %1101 = vxpose.xlu0.c.b16.cont [5/8] 0, 128
        %1102 = vxpose.xlu0.c.b16.cont [6/8] 0, 128
        %1103 = vxpose.xlu0.c.b16.cont [7/8] 0, 128
        %1104 = vxpose.xlu0.c.b16.end [8/8] 0, 128
        %v1105 = vpop.trf.xlu0
        %v1106 = vpop.trf.xlu0
        %v1107 = vpop.trf.xlu0
        %v1108 = vpop.trf.xlu0
        %v1109 = vpop.trf.xlu0
        %v1110 = vpop.trf.xlu0
        %v1111 = vpop.trf.xlu0
        %v1112 = vpop.trf.xlu0
        %1113 = vxpose.xlu0.c.b16.start [1/8] %v736, 128
        %1114 = vxpose.xlu0.c.b16.cont [2/8] 0, 128
        %1115 = vxpose.xlu0.c.b16.cont [3/8] 0, 128
        %1116 = vxpose.xlu0.c.b16.cont [4/8] 0, 128
        %1117 = vxpose.xlu0.c.b16.cont [5/8] 0, 128
        %1118 = vxpose.xlu0.c.b16.cont [6/8] 0, 128
        %1119 = vxpose.xlu0.c.b16.cont [7/8] 0, 128
        %1120 = vxpose.xlu0.c.b16.end [8/8] 0, 128
        %v1121 = vpop.trf.xlu0
        %v1122 = vpop.trf.xlu0
        %v1123 = vpop.trf.xlu0
        %v1124 = vpop.trf.xlu0
        %v1125 = vpop.trf.xlu0
        %v1126 = vpop.trf.xlu0
        %v1127 = vpop.trf.xlu0
        %v1128 = vpop.trf.xlu0
        %1129 = vxpose.xlu0.c.b16.start [1/8] %v740, 128
        %1130 = vxpose.xlu0.c.b16.cont [2/8] 0, 128
        %1131 = vxpose.xlu0.c.b16.cont [3/8] 0, 128
        %1132 = vxpose.xlu0.c.b16.cont [4/8] 0, 128
        %1133 = vxpose.xlu0.c.b16.cont [5/8] 0, 128
        %1134 = vxpose.xlu0.c.b16.cont [6/8] 0, 128
        %1135 = vxpose.xlu0.c.b16.cont [7/8] 0, 128
        %1136 = vxpose.xlu0.c.b16.end [8/8] 0, 128
        %v1137 = vpop.trf.xlu0
        %v1138 = vpop.trf.xlu0
        %v1139 = vpop.trf.xlu0
        %v1140 = vpop.trf.xlu0
        %v1141 = vpop.trf.xlu0
        %v1142 = vpop.trf.xlu0
        %v1143 = vpop.trf.xlu0
        %v1144 = vpop.trf.xlu0
        %1145 = vxpose.xlu0.c.b16.start [1/8] %v744, 128
        %1146 = vxpose.xlu0.c.b16.cont [2/8] 0, 128
        %1147 = vxpose.xlu0.c.b16.cont [3/8] 0, 128
        %1148 = vxpose.xlu0.c.b16.cont [4/8] 0, 128
        %1149 = vxpose.xlu0.c.b16.cont [5/8] 0, 128
        %1150 = vxpose.xlu0.c.b16.cont [6/8] 0, 128
        %1151 = vxpose.xlu0.c.b16.cont [7/8] 0, 128
        %1152 = vxpose.xlu0.c.b16.end [8/8] 0, 128
        %v1153 = vpop.trf.xlu0
        %v1154 = vpop.trf.xlu0
        %v1155 = vpop.trf.xlu0
        %v1156 = vpop.trf.xlu0
        %v1157 = vpop.trf.xlu0
        %v1158 = vpop.trf.xlu0
        %v1159 = vpop.trf.xlu0
        %v1160 = vpop.trf.xlu0
        %1161 = vxpose.xlu0.c.b16.start [1/8] %v748, 128
        %1162 = vxpose.xlu0.c.b16.cont [2/8] 0, 128
        %1163 = vxpose.xlu0.c.b16.cont [3/8] 0, 128
        %1164 = vxpose.xlu0.c.b16.cont [4/8] 0, 128
        %1165 = vxpose.xlu0.c.b16.cont [5/8] 0, 128
        %1166 = vxpose.xlu0.c.b16.cont [6/8] 0, 128
        %1167 = vxpose.xlu0.c.b16.cont [7/8] 0, 128
        %1168 = vxpose.xlu0.c.b16.end [8/8] 0, 128
        %v1169 = vpop.trf.xlu0
        %v1170 = vpop.trf.xlu0
        %v1171 = vpop.trf.xlu0
        %v1172 = vpop.trf.xlu0
        %v1173 = vpop.trf.xlu0
        %v1174 = vpop.trf.xlu0
        %v1175 = vpop.trf.xlu0
        %v1176 = vpop.trf.xlu0
        %1177 = vxpose.xlu0.c.b16.start [1/8] %v752, 128
        %1178 = vxpose.xlu0.c.b16.cont [2/8] 0, 128
        %1179 = vxpose.xlu0.c.b16.cont [3/8] 0, 128
        %1180 = vxpose.xlu0.c.b16.cont [4/8] 0, 128
        %1181 = vxpose.xlu0.c.b16.cont [5/8] 0, 128
        %1182 = vxpose.xlu0.c.b16.cont [6/8] 0, 128
        %1183 = vxpose.xlu0.c.b16.cont [7/8] 0, 128
        %1184 = vxpose.xlu0.c.b16.end [8/8] 0, 128
        %v1185 = vpop.trf.xlu0
        %v1186 = vpop.trf.xlu0
        %v1187 = vpop.trf.xlu0
        %v1188 = vpop.trf.xlu0
        %v1189 = vpop.trf.xlu0
        %v1190 = vpop.trf.xlu0
        %v1191 = vpop.trf.xlu0
        %v1192 = vpop.trf.xlu0
        %1193 = vxpose.xlu0.c.b16.start [1/8] %v756, 128
        %1194 = vxpose.xlu0.c.b16.cont [2/8] 0, 128
        %1195 = vxpose.xlu0.c.b16.cont [3/8] 0, 128
        %1196 = vxpose.xlu0.c.b16.cont [4/8] 0, 128
        %1197 = vxpose.xlu0.c.b16.cont [5/8] 0, 128
        %1198 = vxpose.xlu0.c.b16.cont [6/8] 0, 128
        %1199 = vxpose.xlu0.c.b16.cont [7/8] 0, 128
        %1200 = vxpose.xlu0.c.b16.end [8/8] 0, 128
        %v1201 = vpop.trf.xlu0
        %v1202 = vpop.trf.xlu0
        %v1203 = vpop.trf.xlu0
        %v1204 = vpop.trf.xlu0
        %v1205 = vpop.trf.xlu0
        %v1206 = vpop.trf.xlu0
        %v1207 = vpop.trf.xlu0
        %v1208 = vpop.trf.xlu0
        %v1211 = vpack.i.b16 %v1105, %v1089
        %v1213 = vshrl.u32 %v1089, 16
        %v1214 = vshrl.u32 %v1105, 16
        %v1215 = vpack.i.b16 %v1214, %v1213
        %v1219 = vpack.i.b16 %v1137, %v1121
        %v1221 = vshrl.u32 %v1121, 16
        %v1222 = vshrl.u32 %v1137, 16
        %v1223 = vpack.i.b16 %v1222, %v1221
        %v1227 = vpack.i.b16 %v1169, %v1153
        %v1229 = vshrl.u32 %v1153, 16
        %v1230 = vshrl.u32 %v1169, 16
        %v1231 = vpack.i.b16 %v1230, %v1229
        %v1235 = vpack.i.b16 %v1201, %v1185
        %v1237 = vshrl.u32 %v1185, 16
        %v1238 = vshrl.u32 %v1201, 16
        %v1239 = vpack.i.b16 %v1238, %v1237
        %v1241 = vcombine.low %v1211, %v1227
        %v1242 = vcombine.high %v1211, %v1227
        %v1244 = vunpack.c.l.s4 1983009808
        %v1245 = vunpack.c.0.s8 %v1244
        %v1246 = vlaneseq
        %v1247 = vshrl.u32 %v1246, 7
        %v1248 = vsub.s32 %v1245, %v1247
        %v1249 = vrot.slane %v1241, %v1248
        %v1251 = vunpack.c.l.s4 1983009808
        %v1252 = vunpack.c.0.s8 %v1251
        %v1253 = vlaneseq
        %v1254 = vshrl.u32 %v1253, 7
        %v1255 = vsub.s32 %v1252, %v1254
        %v1256 = vrot.slane %v1242, %v1255
        %v1257 = vcombine.low %v1219, %v1235
        %v1258 = vcombine.high %v1219, %v1235
        %v1260 = vunpack.c.l.s4 1983009808
        %v1261 = vunpack.c.0.s8 %v1260
        %v1262 = vlaneseq
        %v1263 = vshrl.u32 %v1262, 7
        %v1264 = vsub.s32 %v1261, %v1263
        %v1265 = vrot.slane %v1257, %v1264
        %v1267 = vunpack.c.l.s4 1983009808
        %v1268 = vunpack.c.0.s8 %v1267
        %v1269 = vlaneseq
        %v1270 = vshrl.u32 %v1269, 7
        %v1271 = vsub.s32 %v1268, %v1270
        %v1272 = vrot.slane %v1258, %v1271
        %v1273 = vcombine.low %v1249, %v1265
        %v1274 = vcombine.high %v1249, %v1265
        %v1276 = vunpack.c.l.s4 1934713408
        %v1277 = vunpack.c.0.s8 %v1276
        %v1278 = vlaneseq
        %v1279 = vshrl.u32 %v1278, 7
        %v1280 = vsub.s32 %v1277, %v1279
        %v1281 = vrot.slane %v1273, %v1280
        %v1283 = vunpack.c.l.s4 1934713408
        %v1284 = vunpack.c.0.s8 %v1283
        %v1285 = vlaneseq
        %v1286 = vshrl.u32 %v1285, 7
        %v1287 = vsub.s32 %v1284, %v1286
        %v1288 = vrot.slane %v1274, %v1287
        %v1289 = vcombine.low %v1256, %v1272
        %v1290 = vcombine.high %v1256, %v1272
        %v1292 = vunpack.c.l.s4 1934713408
        %v1293 = vunpack.c.0.s8 %v1292
        %v1294 = vlaneseq
        %v1295 = vshrl.u32 %v1294, 7
        %v1296 = vsub.s32 %v1293, %v1295
        %v1297 = vrot.slane %v1289, %v1296
        %v1299 = vunpack.c.l.s4 1934713408
        %v1300 = vunpack.c.0.s8 %v1299
        %v1301 = vlaneseq
        %v1302 = vshrl.u32 %v1301, 7
        %v1303 = vsub.s32 %v1300, %v1302
        %v1304 = vrot.slane %v1290, %v1303
        %v1305 = vcombine.high %v1281, 0
        %v1306 = vcombine.high %v1288, 0
        %v1307 = vcombine.high %v1297, 0
        %v1308 = vcombine.high %v1304, 0
        %v1309 = vcombine.low %v1215, %v1231
        %v1310 = vcombine.high %v1215, %v1231
        %v1312 = vunpack.c.l.s4 1983009808
        %v1313 = vunpack.c.0.s8 %v1312
        %v1314 = vlaneseq
        %v1315 = vshrl.u32 %v1314, 7
        %v1316 = vsub.s32 %v1313, %v1315
        %v1317 = vrot.slane %v1309, %v1316
        %v1319 = vunpack.c.l.s4 1983009808
        %v1320 = vunpack.c.0.s8 %v1319
        %v1321 = vlaneseq
        %v1322 = vshrl.u32 %v1321, 7
        %v1323 = vsub.s32 %v1320, %v1322
        %v1324 = vrot.slane %v1310, %v1323
        %v1325 = vcombine.low %v1223, %v1239
        %v1326 = vcombine.high %v1223, %v1239
        %v1328 = vunpack.c.l.s4 1983009808
        %v1329 = vunpack.c.0.s8 %v1328
        %v1330 = vlaneseq
        %v1331 = vshrl.u32 %v1330, 7
        %v1332 = vsub.s32 %v1329, %v1331
        %v1333 = vrot.slane %v1325, %v1332
        %v1335 = vunpack.c.l.s4 1983009808
        %v1336 = vunpack.c.0.s8 %v1335
        %v1337 = vlaneseq
        %v1338 = vshrl.u32 %v1337, 7
        %v1339 = vsub.s32 %v1336, %v1338
        %v1340 = vrot.slane %v1326, %v1339
        %v1341 = vcombine.low %v1317, %v1333
        %v1342 = vcombine.high %v1317, %v1333
        %v1344 = vunpack.c.l.s4 1934713408
        %v1345 = vunpack.c.0.s8 %v1344
        %v1346 = vlaneseq
        %v1347 = vshrl.u32 %v1346, 7
        %v1348 = vsub.s32 %v1345, %v1347
        %v1349 = vrot.slane %v1341, %v1348
        %v1351 = vunpack.c.l.s4 1934713408
        %v1352 = vunpack.c.0.s8 %v1351
        %v1353 = vlaneseq
        %v1354 = vshrl.u32 %v1353, 7
        %v1355 = vsub.s32 %v1352, %v1354
        %v1356 = vrot.slane %v1342, %v1355
        %v1357 = vcombine.low %v1324, %v1340
        %v1358 = vcombine.high %v1324, %v1340
        %v1360 = vunpack.c.l.s4 1934713408
        %v1361 = vunpack.c.0.s8 %v1360
        %v1362 = vlaneseq
        %v1363 = vshrl.u32 %v1362, 7
        %v1364 = vsub.s32 %v1361, %v1363
        %v1365 = vrot.slane %v1357, %v1364
        %v1367 = vunpack.c.l.s4 1934713408
        %v1368 = vunpack.c.0.s8 %v1367
        %v1369 = vlaneseq
        %v1370 = vshrl.u32 %v1369, 7
        %v1371 = vsub.s32 %v1368, %v1370
        %v1372 = vrot.slane %v1358, %v1371
        %v1373 = vcombine.high %v1349, 0
        %v1374 = vcombine.high %v1356, 0
        %v1375 = vcombine.high %v1365, 0
        %v1376 = vcombine.high %v1372, 0
        %1377 = vxpose.xlu0.c.b16.start [1/8] %v1281, 128
        %1378 = vxpose.xlu0.c.b16.cont [2/8] 0, 128
        %1379 = vxpose.xlu0.c.b16.cont [3/8] 0, 128
        %1380 = vxpose.xlu0.c.b16.cont [4/8] 0, 128
        %1381 = vxpose.xlu0.c.b16.cont [5/8] 0, 128
        %1382 = vxpose.xlu0.c.b16.cont [6/8] 0, 128
        %1383 = vxpose.xlu0.c.b16.cont [7/8] 0, 128
        %1384 = vxpose.xlu0.c.b16.end [8/8] 0, 128
        %v1385 = vpop.trf.xlu0
        %v1386 = vpop.trf.xlu0
        %v1387 = vpop.trf.xlu0
        %v1388 = vpop.trf.xlu0
        %v1389 = vpop.trf.xlu0
        %v1390 = vpop.trf.xlu0
        %v1391 = vpop.trf.xlu0
        %v1392 = vpop.trf.xlu0
        %1393 = vxpose.xlu0.c.b16.start [1/8] %v1349, 128
        %1394 = vxpose.xlu0.c.b16.cont [2/8] 0, 128
        %1395 = vxpose.xlu0.c.b16.cont [3/8] 0, 128
        %1396 = vxpose.xlu0.c.b16.cont [4/8] 0, 128
        %1397 = vxpose.xlu0.c.b16.cont [5/8] 0, 128
        %1398 = vxpose.xlu0.c.b16.cont [6/8] 0, 128
        %1399 = vxpose.xlu0.c.b16.cont [7/8] 0, 128
        %1400 = vxpose.xlu0.c.b16.end [8/8] 0, 128
        %v1401 = vpop.trf.xlu0
        %v1402 = vpop.trf.xlu0
        %v1403 = vpop.trf.xlu0
        %v1404 = vpop.trf.xlu0
        %v1405 = vpop.trf.xlu0
        %v1406 = vpop.trf.xlu0
        %v1407 = vpop.trf.xlu0
        %v1408 = vpop.trf.xlu0
        %1409 = vxpose.xlu0.c.b16.start [1/8] %v1305, 128
        %1410 = vxpose.xlu0.c.b16.cont [2/8] 0, 128
        %1411 = vxpose.xlu0.c.b16.cont [3/8] 0, 128
        %1412 = vxpose.xlu0.c.b16.cont [4/8] 0, 128
        %1413 = vxpose.xlu0.c.b16.cont [5/8] 0, 128
        %1414 = vxpose.xlu0.c.b16.cont [6/8] 0, 128
        %1415 = vxpose.xlu0.c.b16.cont [7/8] 0, 128
        %1416 = vxpose.xlu0.c.b16.end [8/8] 0, 128
        %v1417 = vpop.trf.xlu0
        %v1418 = vpop.trf.xlu0
        %v1419 = vpop.trf.xlu0
        %v1420 = vpop.trf.xlu0
        %v1421 = vpop.trf.xlu0
        %v1422 = vpop.trf.xlu0
        %v1423 = vpop.trf.xlu0
        %v1424 = vpop.trf.xlu0
        %1425 = vxpose.xlu0.c.b16.start [1/8] %v1373, 128
        %1426 = vxpose.xlu0.c.b16.cont [2/8] 0, 128
        %1427 = vxpose.xlu0.c.b16.cont [3/8] 0, 128
        %1428 = vxpose.xlu0.c.b16.cont [4/8] 0, 128
        %1429 = vxpose.xlu0.c.b16.cont [5/8] 0, 128
        %1430 = vxpose.xlu0.c.b16.cont [6/8] 0, 128
        %1431 = vxpose.xlu0.c.b16.cont [7/8] 0, 128
        %1432 = vxpose.xlu0.c.b16.end [8/8] 0, 128
        %v1433 = vpop.trf.xlu0
        %v1434 = vpop.trf.xlu0
        %v1435 = vpop.trf.xlu0
        %v1436 = vpop.trf.xlu0
        %v1437 = vpop.trf.xlu0
        %v1438 = vpop.trf.xlu0
        %v1439 = vpop.trf.xlu0
        %v1440 = vpop.trf.xlu0
        %1441 = vxpose.xlu0.c.b16.start [1/8] %v1288, 128
        %1442 = vxpose.xlu0.c.b16.cont [2/8] 0, 128
        %1443 = vxpose.xlu0.c.b16.cont [3/8] 0, 128
        %1444 = vxpose.xlu0.c.b16.cont [4/8] 0, 128
        %1445 = vxpose.xlu0.c.b16.cont [5/8] 0, 128
        %1446 = vxpose.xlu0.c.b16.cont [6/8] 0, 128
        %1447 = vxpose.xlu0.c.b16.cont [7/8] 0, 128
        %1448 = vxpose.xlu0.c.b16.end [8/8] 0, 128
        %v1449 = vpop.trf.xlu0
        %v1450 = vpop.trf.xlu0
        %v1451 = vpop.trf.xlu0
        %v1452 = vpop.trf.xlu0
        %v1453 = vpop.trf.xlu0
        %v1454 = vpop.trf.xlu0
        %v1455 = vpop.trf.xlu0
        %v1456 = vpop.trf.xlu0
        %1457 = vxpose.xlu0.c.b16.start [1/8] %v1356, 128
        %1458 = vxpose.xlu0.c.b16.cont [2/8] 0, 128
        %1459 = vxpose.xlu0.c.b16.cont [3/8] 0, 128
        %1460 = vxpose.xlu0.c.b16.cont [4/8] 0, 128
        %1461 = vxpose.xlu0.c.b16.cont [5/8] 0, 128
        %1462 = vxpose.xlu0.c.b16.cont [6/8] 0, 128
        %1463 = vxpose.xlu0.c.b16.cont [7/8] 0, 128
        %1464 = vxpose.xlu0.c.b16.end [8/8] 0, 128
        %v1465 = vpop.trf.xlu0
        %v1466 = vpop.trf.xlu0
        %v1467 = vpop.trf.xlu0
        %v1468 = vpop.trf.xlu0
        %v1469 = vpop.trf.xlu0
        %v1470 = vpop.trf.xlu0
        %v1471 = vpop.trf.xlu0
        %v1472 = vpop.trf.xlu0
        %1473 = vxpose.xlu0.c.b16.start [1/8] %v1306, 128
        %1474 = vxpose.xlu0.c.b16.cont [2/8] 0, 128
        %1475 = vxpose.xlu0.c.b16.cont [3/8] 0, 128
        %1476 = vxpose.xlu0.c.b16.cont [4/8] 0, 128
        %1477 = vxpose.xlu0.c.b16.cont [5/8] 0, 128
        %1478 = vxpose.xlu0.c.b16.cont [6/8] 0, 128
        %1479 = vxpose.xlu0.c.b16.cont [7/8] 0, 128
        %1480 = vxpose.xlu0.c.b16.end [8/8] 0, 128
        %v1481 = vpop.trf.xlu0
        %v1482 = vpop.trf.xlu0
        %v1483 = vpop.trf.xlu0
        %v1484 = vpop.trf.xlu0
        %v1485 = vpop.trf.xlu0
        %v1486 = vpop.trf.xlu0
        %v1487 = vpop.trf.xlu0
        %v1488 = vpop.trf.xlu0
        %1489 = vxpose.xlu0.c.b16.start [1/8] %v1374, 128
        %1490 = vxpose.xlu0.c.b16.cont [2/8] 0, 128
        %1491 = vxpose.xlu0.c.b16.cont [3/8] 0, 128
        %1492 = vxpose.xlu0.c.b16.cont [4/8] 0, 128
        %1493 = vxpose.xlu0.c.b16.cont [5/8] 0, 128
        %1494 = vxpose.xlu0.c.b16.cont [6/8] 0, 128
        %1495 = vxpose.xlu0.c.b16.cont [7/8] 0, 128
        %1496 = vxpose.xlu0.c.b16.end [8/8] 0, 128
        %v1497 = vpop.trf.xlu0
        %v1498 = vpop.trf.xlu0
        %v1499 = vpop.trf.xlu0
        %v1500 = vpop.trf.xlu0
        %v1501 = vpop.trf.xlu0
        %v1502 = vpop.trf.xlu0
        %v1503 = vpop.trf.xlu0
        %v1504 = vpop.trf.xlu0
        %1505 = vxpose.xlu0.c.b16.start [1/8] %v1297, 128
        %1506 = vxpose.xlu0.c.b16.cont [2/8] 0, 128
        %1507 = vxpose.xlu0.c.b16.cont [3/8] 0, 128
        %1508 = vxpose.xlu0.c.b16.cont [4/8] 0, 128
        %1509 = vxpose.xlu0.c.b16.cont [5/8] 0, 128
        %1510 = vxpose.xlu0.c.b16.cont [6/8] 0, 128
        %1511 = vxpose.xlu0.c.b16.cont [7/8] 0, 128
        %1512 = vxpose.xlu0.c.b16.end [8/8] 0, 128
        %v1513 = vpop.trf.xlu0
        %v1514 = vpop.trf.xlu0
        %v1515 = vpop.trf.xlu0
        %v1516 = vpop.trf.xlu0
        %v1517 = vpop.trf.xlu0
        %v1518 = vpop.trf.xlu0
        %v1519 = vpop.trf.xlu0
        %v1520 = vpop.trf.xlu0
        %1521 = vxpose.xlu0.c.b16.start [1/8] %v1365, 128
        %1522 = vxpose.xlu0.c.b16.cont [2/8] 0, 128
        %1523 = vxpose.xlu0.c.b16.cont [3/8] 0, 128
        %1524 = vxpose.xlu0.c.b16.cont [4/8] 0, 128
        %1525 = vxpose.xlu0.c.b16.cont [5/8] 0, 128
        %1526 = vxpose.xlu0.c.b16.cont [6/8] 0, 128
        %1527 = vxpose.xlu0.c.b16.cont [7/8] 0, 128
        %1528 = vxpose.xlu0.c.b16.end [8/8] 0, 128
        %v1529 = vpop.trf.xlu0
        %v1530 = vpop.trf.xlu0
        %v1531 = vpop.trf.xlu0
        %v1532 = vpop.trf.xlu0
        %v1533 = vpop.trf.xlu0
        %v1534 = vpop.trf.xlu0
        %v1535 = vpop.trf.xlu0
        %v1536 = vpop.trf.xlu0
        %1537 = vxpose.xlu0.c.b16.start [1/8] %v1307, 128
        %1538 = vxpose.xlu0.c.b16.cont [2/8] 0, 128
        %1539 = vxpose.xlu0.c.b16.cont [3/8] 0, 128
        %1540 = vxpose.xlu0.c.b16.cont [4/8] 0, 128
        %1541 = vxpose.xlu0.c.b16.cont [5/8] 0, 128
        %1542 = vxpose.xlu0.c.b16.cont [6/8] 0, 128
        %1543 = vxpose.xlu0.c.b16.cont [7/8] 0, 128
        %1544 = vxpose.xlu0.c.b16.end [8/8] 0, 128
        %v1545 = vpop.trf.xlu0
        %v1546 = vpop.trf.xlu0
        %v1547 = vpop.trf.xlu0
        %v1548 = vpop.trf.xlu0
        %v1549 = vpop.trf.xlu0
        %v1550 = vpop.trf.xlu0
        %v1551 = vpop.trf.xlu0
        %v1552 = vpop.trf.xlu0
        %1553 = vxpose.xlu0.c.b16.start [1/8] %v1375, 128
        %1554 = vxpose.xlu0.c.b16.cont [2/8] 0, 128
        %1555 = vxpose.xlu0.c.b16.cont [3/8] 0, 128
        %1556 = vxpose.xlu0.c.b16.cont [4/8] 0, 128
        %1557 = vxpose.xlu0.c.b16.cont [5/8] 0, 128
        %1558 = vxpose.xlu0.c.b16.cont [6/8] 0, 128
        %1559 = vxpose.xlu0.c.b16.cont [7/8] 0, 128
        %1560 = vxpose.xlu0.c.b16.end [8/8] 0, 128
        %v1561 = vpop.trf.xlu0
        %v1562 = vpop.trf.xlu0
        %v1563 = vpop.trf.xlu0
        %v1564 = vpop.trf.xlu0
        %v1565 = vpop.trf.xlu0
        %v1566 = vpop.trf.xlu0
        %v1567 = vpop.trf.xlu0
        %v1568 = vpop.trf.xlu0
        %1569 = vxpose.xlu0.c.b16.start [1/8] %v1304, 128
        %1570 = vxpose.xlu0.c.b16.cont [2/8] 0, 128
        %1571 = vxpose.xlu0.c.b16.cont [3/8] 0, 128
        %1572 = vxpose.xlu0.c.b16.cont [4/8] 0, 128
        %1573 = vxpose.xlu0.c.b16.cont [5/8] 0, 128
        %1574 = vxpose.xlu0.c.b16.cont [6/8] 0, 128
        %1575 = vxpose.xlu0.c.b16.cont [7/8] 0, 128
        %1576 = vxpose.xlu0.c.b16.end [8/8] 0, 128
        %v1577 = vpop.trf.xlu0
        %v1578 = vpop.trf.xlu0
        %v1579 = vpop.trf.xlu0
        %v1580 = vpop.trf.xlu0
        %v1581 = vpop.trf.xlu0
        %v1582 = vpop.trf.xlu0
        %v1583 = vpop.trf.xlu0
        %v1584 = vpop.trf.xlu0
        %1585 = vxpose.xlu0.c.b16.start [1/8] %v1372, 128
        %1586 = vxpose.xlu0.c.b16.cont [2/8] 0, 128
        %1587 = vxpose.xlu0.c.b16.cont [3/8] 0, 128
        %1588 = vxpose.xlu0.c.b16.cont [4/8] 0, 128
        %1589 = vxpose.xlu0.c.b16.cont [5/8] 0, 128
        %1590 = vxpose.xlu0.c.b16.cont [6/8] 0, 128
        %1591 = vxpose.xlu0.c.b16.cont [7/8] 0, 128
        %1592 = vxpose.xlu0.c.b16.end [8/8] 0, 128
        %v1593 = vpop.trf.xlu0
        %v1594 = vpop.trf.xlu0
        %v1595 = vpop.trf.xlu0
        %v1596 = vpop.trf.xlu0
        %v1597 = vpop.trf.xlu0
        %v1598 = vpop.trf.xlu0
        %v1599 = vpop.trf.xlu0
        %v1600 = vpop.trf.xlu0
        %1601 = vxpose.xlu0.c.b16.start [1/8] %v1308, 128
        %1602 = vxpose.xlu0.c.b16.cont [2/8] 0, 128
        %1603 = vxpose.xlu0.c.b16.cont [3/8] 0, 128
        %1604 = vxpose.xlu0.c.b16.cont [4/8] 0, 128
        %1605 = vxpose.xlu0.c.b16.cont [5/8] 0, 128
        %1606 = vxpose.xlu0.c.b16.cont [6/8] 0, 128
        %1607 = vxpose.xlu0.c.b16.cont [7/8] 0, 128
        %1608 = vxpose.xlu0.c.b16.end [8/8] 0, 128
        %v1609 = vpop.trf.xlu0
        %v1610 = vpop.trf.xlu0
        %v1611 = vpop.trf.xlu0
        %v1612 = vpop.trf.xlu0
        %v1613 = vpop.trf.xlu0
        %v1614 = vpop.trf.xlu0
        %v1615 = vpop.trf.xlu0
        %v1616 = vpop.trf.xlu0
        %1617 = vxpose.xlu0.c.b16.start [1/8] %v1376, 128
        %1618 = vxpose.xlu0.c.b16.cont [2/8] 0, 128
        %1619 = vxpose.xlu0.c.b16.cont [3/8] 0, 128
        %1620 = vxpose.xlu0.c.b16.cont [4/8] 0, 128
        %1621 = vxpose.xlu0.c.b16.cont [5/8] 0, 128
        %1622 = vxpose.xlu0.c.b16.cont [6/8] 0, 128
        %1623 = vxpose.xlu0.c.b16.cont [7/8] 0, 128
        %1624 = vxpose.xlu0.c.b16.end [8/8] 0, 128
        %v1625 = vpop.trf.xlu0
        %v1626 = vpop.trf.xlu0
        %v1627 = vpop.trf.xlu0
        %v1628 = vpop.trf.xlu0
        %v1629 = vpop.trf.xlu0
        %v1630 = vpop.trf.xlu0
        %v1631 = vpop.trf.xlu0
        %v1632 = vpop.trf.xlu0
        %v1633 = vcombine.low %v1385, %v1449
        %v1635 = vunpack.c.l.s4 1983009808
        %v1636 = vunpack.c.0.s8 %v1635
        %v1637 = vlaneseq
        %v1638 = vshrl.u32 %v1637, 7
        %v1639 = vsub.s32 %v1636, %v1638
        %v1640 = vrot.slane %v1633, %v1639
        %v1641 = vcombine.low %v1417, %v1481
        %v1643 = vunpack.c.l.s4 1983009808
        %v1644 = vunpack.c.0.s8 %v1643
        %v1645 = vlaneseq
        %v1646 = vshrl.u32 %v1645, 7
        %v1647 = vsub.s32 %v1644, %v1646
        %v1648 = vrot.slane %v1641, %v1647
        %v1649 = vcombine.low %v1513, %v1577
        %v1651 = vunpack.c.l.s4 1983009808
        %v1652 = vunpack.c.0.s8 %v1651
        %v1653 = vlaneseq
        %v1654 = vshrl.u32 %v1653, 7
        %v1655 = vsub.s32 %v1652, %v1654
        %v1656 = vrot.slane %v1649, %v1655
        %v1657 = vcombine.low %v1545, %v1609
        %v1659 = vunpack.c.l.s4 1983009808
        %v1660 = vunpack.c.0.s8 %v1659
        %v1661 = vlaneseq
        %v1662 = vshrl.u32 %v1661, 7
        %v1663 = vsub.s32 %v1660, %v1662
        %v1664 = vrot.slane %v1657, %v1663
        %v1665 = vcombine.low %v1640, %v1648
        %v1666 = vcombine.high %v1640, %v1648
        %v1668 = vunpack.c.l.s4 1934713408
        %v1669 = vunpack.c.0.s8 %v1668
        %v1670 = vlaneseq
        %v1671 = vshrl.u32 %v1670, 7
        %v1672 = vsub.s32 %v1669, %v1671
        %v1673 = vrot.slane %v1665, %v1672
        %v1675 = vunpack.c.l.s4 1934713408
        %v1676 = vunpack.c.0.s8 %v1675
        %v1677 = vlaneseq
        %v1678 = vshrl.u32 %v1677, 7
        %v1679 = vsub.s32 %v1676, %v1678
        %v1680 = vrot.slane %v1666, %v1679
        %v1681 = vcombine.low %v1656, %v1664
        %v1682 = vcombine.high %v1656, %v1664
        %v1684 = vunpack.c.l.s4 1934713408
        %v1685 = vunpack.c.0.s8 %v1684
        %v1686 = vlaneseq
        %v1687 = vshrl.u32 %v1686, 7
        %v1688 = vsub.s32 %v1685, %v1687
        %v1689 = vrot.slane %v1681, %v1688
        %v1691 = vunpack.c.l.s4 1934713408
        %v1692 = vunpack.c.0.s8 %v1691
        %v1693 = vlaneseq
        %v1694 = vshrl.u32 %v1693, 7
        %v1695 = vsub.s32 %v1692, %v1694
        %v1696 = vrot.slane %v1682, %v1695
        %v1697 = vcombine.low %v1673, %v1689
        %v1698 = vcombine.high %v1673, %v1689
        %v1699 = vcombine.low %v1680, %v1696
        %v1700 = vcombine.high %v1680, %v1696
        %v1701 = vcombine.low %v1401, %v1465
        %v1703 = vunpack.c.l.s4 1983009808
        %v1704 = vunpack.c.0.s8 %v1703
        %v1705 = vlaneseq
        %v1706 = vshrl.u32 %v1705, 7
        %v1707 = vsub.s32 %v1704, %v1706
        %v1708 = vrot.slane %v1701, %v1707
        %v1709 = vcombine.low %v1433, %v1497
        %v1711 = vunpack.c.l.s4 1983009808
        %v1712 = vunpack.c.0.s8 %v1711
        %v1713 = vlaneseq
        %v1714 = vshrl.u32 %v1713, 7
        %v1715 = vsub.s32 %v1712, %v1714
        %v1716 = vrot.slane %v1709, %v1715
        %v1717 = vcombine.low %v1529, %v1593
        %v1719 = vunpack.c.l.s4 1983009808
        %v1720 = vunpack.c.0.s8 %v1719
        %v1721 = vlaneseq
        %v1722 = vshrl.u32 %v1721, 7
        %v1723 = vsub.s32 %v1720, %v1722
        %v1724 = vrot.slane %v1717, %v1723
        %v1725 = vcombine.low %v1561, %v1625
        %v1727 = vunpack.c.l.s4 1983009808
        %v1728 = vunpack.c.0.s8 %v1727
        %v1729 = vlaneseq
        %v1730 = vshrl.u32 %v1729, 7
        %v1731 = vsub.s32 %v1728, %v1730
        %v1732 = vrot.slane %v1725, %v1731
        %v1733 = vcombine.low %v1708, %v1716
        %v1734 = vcombine.high %v1708, %v1716
        %v1736 = vunpack.c.l.s4 1934713408
        %v1737 = vunpack.c.0.s8 %v1736
        %v1738 = vlaneseq
        %v1739 = vshrl.u32 %v1738, 7
        %v1740 = vsub.s32 %v1737, %v1739
        %v1741 = vrot.slane %v1733, %v1740
        %v1743 = vunpack.c.l.s4 1934713408
        %v1744 = vunpack.c.0.s8 %v1743
        %v1745 = vlaneseq
        %v1746 = vshrl.u32 %v1745, 7
        %v1747 = vsub.s32 %v1744, %v1746
        %v1748 = vrot.slane %v1734, %v1747
        %v1749 = vcombine.low %v1724, %v1732
        %v1750 = vcombine.high %v1724, %v1732
        %v1752 = vunpack.c.l.s4 1934713408
        %v1753 = vunpack.c.0.s8 %v1752
        %v1754 = vlaneseq
        %v1755 = vshrl.u32 %v1754, 7
        %v1756 = vsub.s32 %v1753, %v1755
        %v1757 = vrot.slane %v1749, %v1756
        %v1759 = vunpack.c.l.s4 1934713408
        %v1760 = vunpack.c.0.s8 %v1759
        %v1761 = vlaneseq
        %v1762 = vshrl.u32 %v1761, 7
        %v1763 = vsub.s32 %v1760, %v1762
        %v1764 = vrot.slane %v1750, %v1763
        %v1765 = vcombine.low %v1741, %v1757
        %v1766 = vcombine.high %v1741, %v1757
        %v1767 = vcombine.low %v1748, %v1764
        %v1768 = vcombine.high %v1748, %v1764
        %v1771 = vpack.i.b16 %v1765, %v1697
        %v1773 = vshrl.u32 %v1697, 16
        %v1774 = vshrl.u32 %v1765, 16
        %v1775 = vpack.i.b16 %v1774, %v1773
        %v1779 = vpack.i.b16 %v1766, %v1698
        %v1781 = vshrl.u32 %v1698, 16
        %v1782 = vshrl.u32 %v1766, 16
        %v1783 = vpack.i.b16 %v1782, %v1781
        %v1787 = vpack.i.b16 %v1767, %v1699
        %v1789 = vshrl.u32 %v1699, 16
        %v1790 = vshrl.u32 %v1767, 16
        %v1791 = vpack.i.b16 %v1790, %v1789
        %v1795 = vpack.i.b16 %v1768, %v1700
        %v1797 = vshrl.u32 %v1700, 16
        %v1798 = vshrl.u32 %v1768, 16
        %v1799 = vpack.i.b16 %v1798, %v1797
        %v1801 = vunpack.c.l.b16 %v1035
        %v1802 = vunpack.c.l.b16 %v1059
        %v1803 = vpack.c.b16 %v1802, %v1801
        %vm1804 = vcmask 130048
        %v1806 = vsel %vm1804, %v1803, 0
        %1808 = vmatprep.subr.bf16.mxu0 0
        %1809 = vmatpush1.bf16.msra.mxu0 0
        %1810 = vmatprep.subr.bf16.mxu0 0
        %1811 = vmatpush1.bf16.msra.mxu0 0
        %1812 = vmatprep.subr.bf16.mxu0 0
        %1813 = vmatpush1.bf16.msra.mxu0 0
        %1814 = vmatprep.subr.bf16.mxu0 0
        %1815 = vmatpush1.bf16.msra.mxu0 0
        %1816 = vmatprep.subr.bf16.mxu0 0
        %1817 = vmatpush1.bf16.msra.mxu0 0
        %1818 = vmatprep.subr.bf16.mxu0 0
        %1819 = vmatpush1.bf16.msra.mxu0 0
        %1820 = vmatprep.subr.bf16.mxu0 0
        %1821 = vmatpush1.bf16.msra.mxu0 0
        %1822 = vmatprep.subr.bf16.mxu0 0
        %1823 = vmatpush1.bf16.msra.mxu0 %v1771
        %1824 = vmatprep.subr.bf16.mxu0 0
        %1825 = vmatpush2.bf16.msra.mxu0 0
        %1826 = vmatprep.subr.bf16.mxu0 0
        %1827 = vmatpush2.bf16.msra.mxu0 0
        %1828 = vmatprep.subr.bf16.mxu0 0
        %1829 = vmatpush2.bf16.msra.mxu0 0
        %1830 = vmatprep.subr.bf16.mxu0 0
        %1831 = vmatpush2.bf16.msra.mxu0 0
        %1832 = vmatprep.subr.bf16.mxu0 0
        %1833 = vmatpush2.bf16.msra.mxu0 0
        %1834 = vmatprep.subr.bf16.mxu0 0
        %1835 = vmatpush2.bf16.msra.mxu0 0
        %1836 = vmatprep.subr.bf16.mxu0 0
        %1837 = vmatpush2.bf16.msra.mxu0 0
        %1838 = vmatprep.subr.bf16.mxu0 0
        %1839 = vmatpush2.bf16.msra.mxu0 0
        %1840 = vmatprep.mubr.bf16.mxu0 0
        %1841 = vmatmul.mubr.bf16.gmra.mxu0 %v1806
        %v1842 = vpop.f32.mrf.mxu0
        %v1843 = vadd.f32 0.0, %v1842
        %v1844 = vpop.f32.mrf.mxu0
        %v1845 = vpop.f32.mrf.mxu0
        %v1846 = vadd.f32 0.0, %v1845
        %v1847 = vpop.f32.mrf.mxu0
        %1848 = vdwg.mxu0
        %v1849 = vunpack.c.l.b16 %v1038
        %v1850 = vunpack.c.l.b16 %v1062
        %v1851 = vpack.c.b16 %v1850, %v1849
        %v1853 = vsel %vm1804, %v1851, 0
        %1855 = vmatprep.subr.bf16.mxu0 0
        %1856 = vmatpush1.bf16.msra.mxu0 0
        %1857 = vmatprep.subr.bf16.mxu0 0
        %1858 = vmatpush1.bf16.msra.mxu0 0
        %1859 = vmatprep.subr.bf16.mxu0 0
        %1860 = vmatpush1.bf16.msra.mxu0 0
        %1861 = vmatprep.subr.bf16.mxu0 0
        %1862 = vmatpush1.bf16.msra.mxu0 0
        %1863 = vmatprep.subr.bf16.mxu0 0
        %1864 = vmatpush1.bf16.msra.mxu0 0
        %1865 = vmatprep.subr.bf16.mxu0 0
        %1866 = vmatpush1.bf16.msra.mxu0 0
        %1867 = vmatprep.subr.bf16.mxu0 0
        %1868 = vmatpush1.bf16.msra.mxu0 0
        %1869 = vmatprep.subr.bf16.mxu0 0
        %1870 = vmatpush1.bf16.msra.mxu0 %v1775
        %1871 = vmatprep.subr.bf16.mxu0 0
        %1872 = vmatpush2.bf16.msra.mxu0 0
        %1873 = vmatprep.subr.bf16.mxu0 0
        %1874 = vmatpush2.bf16.msra.mxu0 0
        %1875 = vmatprep.subr.bf16.mxu0 0
        %1876 = vmatpush2.bf16.msra.mxu0 0
        %1877 = vmatprep.subr.bf16.mxu0 0
        %1878 = vmatpush2.bf16.msra.mxu0 0
        %1879 = vmatprep.subr.bf16.mxu0 0
        %1880 = vmatpush2.bf16.msra.mxu0 0
        %1881 = vmatprep.subr.bf16.mxu0 0
        %1882 = vmatpush2.bf16.msra.mxu0 0
        %1883 = vmatprep.subr.bf16.mxu0 0
        %1884 = vmatpush2.bf16.msra.mxu0 0
        %1885 = vmatprep.subr.bf16.mxu0 0
        %1886 = vmatpush2.bf16.msra.mxu0 0
        %1887 = vmatprep.mubr.bf16.mxu0 0
        %1888 = vmatmul.mubr.bf16.gmra.mxu0 %v1853
        %v1889 = vpop.f32.mrf.mxu0
        %v1890 = vadd.f32 0.0, %v1889
        %v1891 = vpop.f32.mrf.mxu0
        %v1892 = vpop.f32.mrf.mxu0
        %v1893 = vadd.f32 0.0, %v1892
        %v1894 = vpop.f32.mrf.mxu0
        %1895 = vdwg.mxu0
        %v1896 = vunpack.c.l.b16 %v1041
        %v1897 = vunpack.c.l.b16 %v1065
        %v1898 = vpack.c.b16 %v1897, %v1896
        %v1900 = vsel %vm1804, %v1898, 0
        %1902 = vmatprep.subr.bf16.mxu0 0
        %1903 = vmatpush1.bf16.msra.mxu0 0
        %1904 = vmatprep.subr.bf16.mxu0 0
        %1905 = vmatpush1.bf16.msra.mxu0 0
        %1906 = vmatprep.subr.bf16.mxu0 0
        %1907 = vmatpush1.bf16.msra.mxu0 0
        %1908 = vmatprep.subr.bf16.mxu0 0
        %1909 = vmatpush1.bf16.msra.mxu0 0
        %1910 = vmatprep.subr.bf16.mxu0 0
        %1911 = vmatpush1.bf16.msra.mxu0 0
        %1912 = vmatprep.subr.bf16.mxu0 0
        %1913 = vmatpush1.bf16.msra.mxu0 0
        %1914 = vmatprep.subr.bf16.mxu0 0
        %1915 = vmatpush1.bf16.msra.mxu0 0
        %1916 = vmatprep.subr.bf16.mxu0 0
        %1917 = vmatpush1.bf16.msra.mxu0 %v1779
        %1918 = vmatprep.subr.bf16.mxu0 0
        %1919 = vmatpush2.bf16.msra.mxu0 0
        %1920 = vmatprep.subr.bf16.mxu0 0
        %1921 = vmatpush2.bf16.msra.mxu0 0
        %1922 = vmatprep.subr.bf16.mxu0 0
        %1923 = vmatpush2.bf16.msra.mxu0 0
        %1924 = vmatprep.subr.bf16.mxu0 0
        %1925 = vmatpush2.bf16.msra.mxu0 0
        %1926 = vmatprep.subr.bf16.mxu0 0
        %1927 = vmatpush2.bf16.msra.mxu0 0
        %1928 = vmatprep.subr.bf16.mxu0 0
        %1929 = vmatpush2.bf16.msra.mxu0 0
        %1930 = vmatprep.subr.bf16.mxu0 0
        %1931 = vmatpush2.bf16.msra.mxu0 0
        %1932 = vmatprep.subr.bf16.mxu0 0
        %1933 = vmatpush2.bf16.msra.mxu0 0
        %1934 = vmatprep.mubr.bf16.mxu0 0
        %1935 = vmatmul.mubr.bf16.gmra.mxu0 %v1900
        %v1936 = vpop.f32.mrf.mxu0
        %v1937 = vadd.f32 0.0, %v1936
        %v1938 = vpop.f32.mrf.mxu0
        %v1939 = vpop.f32.mrf.mxu0
        %v1940 = vadd.f32 0.0, %v1939
        %v1941 = vpop.f32.mrf.mxu0
        %1942 = vdwg.mxu0
        %v1943 = vunpack.c.l.b16 %v1044
        %v1944 = vunpack.c.l.b16 %v1068
        %v1945 = vpack.c.b16 %v1944, %v1943
        %v1947 = vsel %vm1804, %v1945, 0
        %1949 = vmatprep.subr.bf16.mxu0 0
        %1950 = vmatpush1.bf16.msra.mxu0 0
        %1951 = vmatprep.subr.bf16.mxu0 0
        %1952 = vmatpush1.bf16.msra.mxu0 0
        %1953 = vmatprep.subr.bf16.mxu0 0
        %1954 = vmatpush1.bf16.msra.mxu0 0
        %1955 = vmatprep.subr.bf16.mxu0 0
        %1956 = vmatpush1.bf16.msra.mxu0 0
        %1957 = vmatprep.subr.bf16.mxu0 0
        %1958 = vmatpush1.bf16.msra.mxu0 0
        %1959 = vmatprep.subr.bf16.mxu0 0
        %1960 = vmatpush1.bf16.msra.mxu0 0
        %1961 = vmatprep.subr.bf16.mxu0 0
        %1962 = vmatpush1.bf16.msra.mxu0 0
        %1963 = vmatprep.subr.bf16.mxu0 0
        %1964 = vmatpush1.bf16.msra.mxu0 %v1783
        %1965 = vmatprep.subr.bf16.mxu0 0
        %1966 = vmatpush2.bf16.msra.mxu0 0
        %1967 = vmatprep.subr.bf16.mxu0 0
        %1968 = vmatpush2.bf16.msra.mxu0 0
        %1969 = vmatprep.subr.bf16.mxu0 0
        %1970 = vmatpush2.bf16.msra.mxu0 0
        %1971 = vmatprep.subr.bf16.mxu0 0
        %1972 = vmatpush2.bf16.msra.mxu0 0
        %1973 = vmatprep.subr.bf16.mxu0 0
        %1974 = vmatpush2.bf16.msra.mxu0 0
        %1975 = vmatprep.subr.bf16.mxu0 0
        %1976 = vmatpush2.bf16.msra.mxu0 0
        %1977 = vmatprep.subr.bf16.mxu0 0
        %1978 = vmatpush2.bf16.msra.mxu0 0
        %1979 = vmatprep.subr.bf16.mxu0 0
        %1980 = vmatpush2.bf16.msra.mxu0 0
        %1981 = vmatprep.mubr.bf16.mxu0 0
        %1982 = vmatmul.mubr.bf16.gmra.mxu0 %v1947
        %v1983 = vpop.f32.mrf.mxu0
        %v1984 = vadd.f32 0.0, %v1983
        %v1985 = vpop.f32.mrf.mxu0
        %v1986 = vpop.f32.mrf.mxu0
        %v1987 = vadd.f32 0.0, %v1986
        %v1988 = vpop.f32.mrf.mxu0
        %1989 = vdwg.mxu0
        %v1990 = vunpack.c.l.b16 %v1047
        %v1991 = vunpack.c.l.b16 %v1071
        %v1992 = vpack.c.b16 %v1991, %v1990
        %v1994 = vsel %vm1804, %v1992, 0
        %1996 = vmatprep.subr.bf16.mxu0 0
        %1997 = vmatpush1.bf16.msra.mxu0 0
        %1998 = vmatprep.subr.bf16.mxu0 0
        %1999 = vmatpush1.bf16.msra.mxu0 0
        %2000 = vmatprep.subr.bf16.mxu0 0
        %2001 = vmatpush1.bf16.msra.mxu0 0
        %2002 = vmatprep.subr.bf16.mxu0 0
        %2003 = vmatpush1.bf16.msra.mxu0 0
        %2004 = vmatprep.subr.bf16.mxu0 0
        %2005 = vmatpush1.bf16.msra.mxu0 0
        %2006 = vmatprep.subr.bf16.mxu0 0
        %2007 = vmatpush1.bf16.msra.mxu0 0
        %2008 = vmatprep.subr.bf16.mxu0 0
        %2009 = vmatpush1.bf16.msra.mxu0 0
        %2010 = vmatprep.subr.bf16.mxu0 0
        %2011 = vmatpush1.bf16.msra.mxu0 %v1787
        %2012 = vmatprep.subr.bf16.mxu0 0
        %2013 = vmatpush2.bf16.msra.mxu0 0
        %2014 = vmatprep.subr.bf16.mxu0 0
        %2015 = vmatpush2.bf16.msra.mxu0 0
        %2016 = vmatprep.subr.bf16.mxu0 0
        %2017 = vmatpush2.bf16.msra.mxu0 0
        %2018 = vmatprep.subr.bf16.mxu0 0
        %2019 = vmatpush2.bf16.msra.mxu0 0
        %2020 = vmatprep.subr.bf16.mxu0 0
        %2021 = vmatpush2.bf16.msra.mxu0 0
        %2022 = vmatprep.subr.bf16.mxu0 0
        %2023 = vmatpush2.bf16.msra.mxu0 0
        %2024 = vmatprep.subr.bf16.mxu0 0
        %2025 = vmatpush2.bf16.msra.mxu0 0
        %2026 = vmatprep.subr.bf16.mxu0 0
        %2027 = vmatpush2.bf16.msra.mxu0 0
        %2028 = vmatprep.mubr.bf16.mxu0 0
        %2029 = vmatmul.mubr.bf16.gmra.mxu0 %v1994
        %v2030 = vpop.f32.mrf.mxu0
        %v2031 = vadd.f32 0.0, %v2030
        %v2032 = vpop.f32.mrf.mxu0
        %v2033 = vpop.f32.mrf.mxu0
        %v2034 = vadd.f32 0.0, %v2033
        %v2035 = vpop.f32.mrf.mxu0
        %2036 = vdwg.mxu0
        %v2037 = vunpack.c.l.b16 %v1050
        %v2038 = vunpack.c.l.b16 %v1074
        %v2039 = vpack.c.b16 %v2038, %v2037
        %v2041 = vsel %vm1804, %v2039, 0
        %2043 = vmatprep.subr.bf16.mxu0 0
        %2044 = vmatpush1.bf16.msra.mxu0 0
        %2045 = vmatprep.subr.bf16.mxu0 0
        %2046 = vmatpush1.bf16.msra.mxu0 0
        %2047 = vmatprep.subr.bf16.mxu0 0
        %2048 = vmatpush1.bf16.msra.mxu0 0
        %2049 = vmatprep.subr.bf16.mxu0 0
        %2050 = vmatpush1.bf16.msra.mxu0 0
        %2051 = vmatprep.subr.bf16.mxu0 0
        %2052 = vmatpush1.bf16.msra.mxu0 0
        %2053 = vmatprep.subr.bf16.mxu0 0
        %2054 = vmatpush1.bf16.msra.mxu0 0
        %2055 = vmatprep.subr.bf16.mxu0 0
        %2056 = vmatpush1.bf16.msra.mxu0 0
        %2057 = vmatprep.subr.bf16.mxu0 0
        %2058 = vmatpush1.bf16.msra.mxu0 %v1791
        %2059 = vmatprep.subr.bf16.mxu0 0
        %2060 = vmatpush2.bf16.msra.mxu0 0
        %2061 = vmatprep.subr.bf16.mxu0 0
        %2062 = vmatpush2.bf16.msra.mxu0 0
        %2063 = vmatprep.subr.bf16.mxu0 0
        %2064 = vmatpush2.bf16.msra.mxu0 0
        %2065 = vmatprep.subr.bf16.mxu0 0
        %2066 = vmatpush2.bf16.msra.mxu0 0
        %2067 = vmatprep.subr.bf16.mxu0 0
        %2068 = vmatpush2.bf16.msra.mxu0 0
        %2069 = vmatprep.subr.bf16.mxu0 0
        %2070 = vmatpush2.bf16.msra.mxu0 0
        %2071 = vmatprep.subr.bf16.mxu0 0
        %2072 = vmatpush2.bf16.msra.mxu0 0
        %2073 = vmatprep.subr.bf16.mxu0 0
        %2074 = vmatpush2.bf16.msra.mxu0 0
        %2075 = vmatprep.mubr.bf16.mxu0 0
        %2076 = vmatmul.mubr.bf16.gmra.mxu0 %v2041
        %v2077 = vpop.f32.mrf.mxu0
        %v2078 = vadd.f32 0.0, %v2077
        %v2079 = vpop.f32.mrf.mxu0
        %v2080 = vpop.f32.mrf.mxu0
        %v2081 = vadd.f32 0.0, %v2080
        %v2082 = vpop.f32.mrf.mxu0
        %2083 = vdwg.mxu0
        %v2084 = vunpack.c.l.b16 %v1053
        %v2085 = vunpack.c.l.b16 %v1077
        %v2086 = vpack.c.b16 %v2085, %v2084
        %v2088 = vsel %vm1804, %v2086, 0
        %2090 = vmatprep.subr.bf16.mxu0 0
        %2091 = vmatpush1.bf16.msra.mxu0 0
        %2092 = vmatprep.subr.bf16.mxu0 0
        %2093 = vmatpush1.bf16.msra.mxu0 0
        %2094 = vmatprep.subr.bf16.mxu0 0
        %2095 = vmatpush1.bf16.msra.mxu0 0
        %2096 = vmatprep.subr.bf16.mxu0 0
        %2097 = vmatpush1.bf16.msra.mxu0 0
        %2098 = vmatprep.subr.bf16.mxu0 0
        %2099 = vmatpush1.bf16.msra.mxu0 0
        %2100 = vmatprep.subr.bf16.mxu0 0
        %2101 = vmatpush1.bf16.msra.mxu0 0
        %2102 = vmatprep.subr.bf16.mxu0 0
        %2103 = vmatpush1.bf16.msra.mxu0 0
        %2104 = vmatprep.subr.bf16.mxu0 0
        %2105 = vmatpush1.bf16.msra.mxu0 %v1795
        %2106 = vmatprep.subr.bf16.mxu0 0
        %2107 = vmatpush2.bf16.msra.mxu0 0
        %2108 = vmatprep.subr.bf16.mxu0 0
        %2109 = vmatpush2.bf16.msra.mxu0 0
        %2110 = vmatprep.subr.bf16.mxu0 0
        %2111 = vmatpush2.bf16.msra.mxu0 0
        %2112 = vmatprep.subr.bf16.mxu0 0
        %2113 = vmatpush2.bf16.msra.mxu0 0
        %2114 = vmatprep.subr.bf16.mxu0 0
        %2115 = vmatpush2.bf16.msra.mxu0 0
        %2116 = vmatprep.subr.bf16.mxu0 0
        %2117 = vmatpush2.bf16.msra.mxu0 0
        %2118 = vmatprep.subr.bf16.mxu0 0
        %2119 = vmatpush2.bf16.msra.mxu0 0
        %2120 = vmatprep.subr.bf16.mxu0 0
        %2121 = vmatpush2.bf16.msra.mxu0 0
        %2122 = vmatprep.mubr.bf16.mxu0 0
        %2123 = vmatmul.mubr.bf16.gmra.mxu0 %v2088
        %v2124 = vpop.f32.mrf.mxu0
        %v2125 = vadd.f32 0.0, %v2124
        %v2126 = vpop.f32.mrf.mxu0
        %v2127 = vpop.f32.mrf.mxu0
        %v2128 = vadd.f32 0.0, %v2127
        %v2129 = vpop.f32.mrf.mxu0
        %2130 = vdwg.mxu0
        %v2131 = vunpack.c.l.b16 %v1056
        %v2132 = vunpack.c.l.b16 %v1080
        %v2133 = vpack.c.b16 %v2132, %v2131
        %v2135 = vsel %vm1804, %v2133, 0
        %2137 = vmatprep.subr.bf16.mxu0 0
        %2138 = vmatpush1.bf16.msra.mxu0 0
        %2139 = vmatprep.subr.bf16.mxu0 0
        %2140 = vmatpush1.bf16.msra.mxu0 0
        %2141 = vmatprep.subr.bf16.mxu0 0
        %2142 = vmatpush1.bf16.msra.mxu0 0
        %2143 = vmatprep.subr.bf16.mxu0 0
        %2144 = vmatpush1.bf16.msra.mxu0 0
        %2145 = vmatprep.subr.bf16.mxu0 0
        %2146 = vmatpush1.bf16.msra.mxu0 0
        %2147 = vmatprep.subr.bf16.mxu0 0
        %2148 = vmatpush1.bf16.msra.mxu0 0
        %2149 = vmatprep.subr.bf16.mxu0 0
        %2150 = vmatpush1.bf16.msra.mxu0 0
        %2151 = vmatprep.subr.bf16.mxu0 0
        %2152 = vmatpush1.bf16.msra.mxu0 %v1799
        %2153 = vmatprep.subr.bf16.mxu0 0
        %2154 = vmatpush2.bf16.msra.mxu0 0
        %2155 = vmatprep.subr.bf16.mxu0 0
        %2156 = vmatpush2.bf16.msra.mxu0 0
        %2157 = vmatprep.subr.bf16.mxu0 0
        %2158 = vmatpush2.bf16.msra.mxu0 0
        %2159 = vmatprep.subr.bf16.mxu0 0
        %2160 = vmatpush2.bf16.msra.mxu0 0
        %2161 = vmatprep.subr.bf16.mxu0 0
        %2162 = vmatpush2.bf16.msra.mxu0 0
        %2163 = vmatprep.subr.bf16.mxu0 0
        %2164 = vmatpush2.bf16.msra.mxu0 0
        %2165 = vmatprep.subr.bf16.mxu0 0
        %2166 = vmatpush2.bf16.msra.mxu0 0
        %2167 = vmatprep.subr.bf16.mxu0 0
        %2168 = vmatpush2.bf16.msra.mxu0 0
        %2169 = vmatprep.mubr.bf16.mxu0 0
        %2170 = vmatmul.mubr.bf16.gmra.mxu0 %v2135
        %v2171 = vpop.f32.mrf.mxu0
        %v2172 = vadd.f32 0.0, %v2171
        %v2173 = vpop.f32.mrf.mxu0
        %v2174 = vpop.f32.mrf.mxu0
        %v2175 = vadd.f32 0.0, %v2174
        %v2176 = vpop.f32.mrf.mxu0
        %2177 = vdwg.mxu0
        %v2178 = vld [vmem:[#allocation3] sm:$0xff]
        %v2179 = vld [vmem:[#allocation3 + $0x8] sm:$0xff]
        %v2180 = vld [vmem:[#allocation3 + $0x10] sm:$0xff]
        %v2181 = vld [vmem:[#allocation3 + $0x18] sm:$0xff]
        %v2182 = vld [vmem:[#allocation3 + $0x20] sm:$0xff]
        %v2183 = vld [vmem:[#allocation3 + $0x28] sm:$0xff]
        %v2184 = vld [vmem:[#allocation3 + $0x30] sm:$0xff]
        %v2185 = vld [vmem:[#allocation3 + $0x38] sm:$0xff]
        %v2186 = vld [vmem:[#allocation3 + $0x40] sm:$0xff]
        %v2187 = vld [vmem:[#allocation3 + $0x48] sm:$0xff]
        %v2188 = vld [vmem:[#allocation3 + $0x50] sm:$0xff]
        %v2189 = vld [vmem:[#allocation3 + $0x58] sm:$0xff]
        %v2190 = vld [vmem:[#allocation3 + $0x60] sm:$0xff]
        %v2191 = vld [vmem:[#allocation3 + $0x68] sm:$0xff]
        %v2192 = vld [vmem:[#allocation3 + $0x70] sm:$0xff]
        %v2193 = vld [vmem:[#allocation3 + $0x78] sm:$0xff]
        %vm2194 = vcmask 64512
        %v2195 = vsel %vm2194, %v1843, -inf
        %2196 = vmax.xlane.f32.xlu0 %v2195
        %v2197 = vpop.xlane.xlu0 %2196
        %v2198 = vsel %vm2194, %v1846, -inf
        %2199 = vmax.xlane.f32.xlu0 %v2198
        %v2200 = vpop.xlane.xlu0 %2199
        %v2201 = vsel %vm2194, %v1890, -inf
        %2202 = vmax.xlane.f32.xlu0 %v2201
        %v2203 = vpop.xlane.xlu0 %2202
        %v2204 = vsel %vm2194, %v1893, -inf
        %2205 = vmax.xlane.f32.xlu0 %v2204
        %v2206 = vpop.xlane.xlu0 %2205
        %v2207 = vsel %vm2194, %v1937, -inf
        %2208 = vmax.xlane.f32.xlu0 %v2207
        %v2209 = vpop.xlane.xlu0 %2208
        %v2210 = vsel %vm2194, %v1940, -inf
        %2211 = vmax.xlane.f32.xlu0 %v2210
        %v2212 = vpop.xlane.xlu0 %2211
        %v2213 = vsel %vm2194, %v1984, -inf
        %2214 = vmax.xlane.f32.xlu0 %v2213
        %v2215 = vpop.xlane.xlu0 %2214
        %v2216 = vsel %vm2194, %v1987, -inf
        %2217 = vmax.xlane.f32.xlu0 %v2216
        %v2218 = vpop.xlane.xlu0 %2217
        %v2219 = vsel %vm2194, %v2031, -inf
        %2220 = vmax.xlane.f32.xlu0 %v2219
        %v2221 = vpop.xlane.xlu0 %2220
        %v2222 = vsel %vm2194, %v2034, -inf
        %2223 = vmax.xlane.f32.xlu0 %v2222
        %v2224 = vpop.xlane.xlu0 %2223
        %v2225 = vsel %vm2194, %v2078, -inf
        %2226 = vmax.xlane.f32.xlu0 %v2225
        %v2227 = vpop.xlane.xlu0 %2226
        %v2228 = vsel %vm2194, %v2081, -inf
        %2229 = vmax.xlane.f32.xlu0 %v2228
        %v2230 = vpop.xlane.xlu0 %2229
        %v2231 = vsel %vm2194, %v2125, -inf
        %2232 = vmax.xlane.f32.xlu0 %v2231
        %v2233 = vpop.xlane.xlu0 %2232
        %v2234 = vsel %vm2194, %v2128, -inf
        %2235 = vmax.xlane.f32.xlu0 %v2234
        %v2236 = vpop.xlane.xlu0 %2235
        %v2237 = vsel %vm2194, %v2172, -inf
        %2238 = vmax.xlane.f32.xlu0 %v2237
        %v2239 = vpop.xlane.xlu0 %2238
        %v2240 = vsel %vm2194, %v2175, -inf
        %2241 = vmax.xlane.f32.xlu0 %v2240
        %v2242 = vpop.xlane.xlu0 %2241
        %v2243 = vmax.f32 %v2178, %v2197
        %v2244 = vmax.f32 %v2179, %v2200
        %v2245 = vmax.f32 %v2180, %v2203
        %v2246 = vmax.f32 %v2181, %v2206
        %v2247 = vmax.f32 %v2182, %v2209
        %v2248 = vmax.f32 %v2183, %v2212
        %v2249 = vmax.f32 %v2184, %v2215
        %v2250 = vmax.f32 %v2185, %v2218
        %v2251 = vmax.f32 %v2186, %v2221
        %v2252 = vmax.f32 %v2187, %v2224
        %v2253 = vmax.f32 %v2188, %v2227
        %v2254 = vmax.f32 %v2189, %v2230
        %v2255 = vmax.f32 %v2190, %v2233
        %v2256 = vmax.f32 %v2191, %v2236
        %v2257 = vmax.f32 %v2192, %v2239
        %v2258 = vmax.f32 %v2193, %v2242
        %v2259 = vsub.f32 %v2178, %v2243
        %v2260 = vsub.f32 %v2179, %v2244
        %v2261 = vsub.f32 %v2180, %v2245
        %v2262 = vsub.f32 %v2181, %v2246
        %v2263 = vsub.f32 %v2182, %v2247
        %v2264 = vsub.f32 %v2183, %v2248
        %v2265 = vsub.f32 %v2184, %v2249
        %v2266 = vsub.f32 %v2185, %v2250
        %v2267 = vsub.f32 %v2186, %v2251
        %v2268 = vsub.f32 %v2187, %v2252
        %v2269 = vsub.f32 %v2188, %v2253
        %v2270 = vsub.f32 %v2189, %v2254
        %v2271 = vsub.f32 %v2190, %v2255
        %v2272 = vsub.f32 %v2191, %v2256
        %v2273 = vsub.f32 %v2192, %v2257
        %v2274 = vsub.f32 %v2193, %v2258
        %v2275 = vmul.f32 %v2259, 1.442695
        %v2276 = vpow.pop %v2275
        %v2277 = vmul.f32 %v2260, 1.442695
        %v2278 = vpow.pop %v2277
        %v2279 = vmul.f32 %v2261, 1.442695
        %v2280 = vpow.pop %v2279
        %v2281 = vmul.f32 %v2262, 1.442695
        %v2282 = vpow.pop %v2281
        %v2283 = vmul.f32 %v2263, 1.442695
        %v2284 = vpow.pop %v2283
        %v2285 = vmul.f32 %v2264, 1.442695
        %v2286 = vpow.pop %v2285
        %v2287 = vmul.f32 %v2265, 1.442695
        %v2288 = vpow.pop %v2287
        %v2289 = vmul.f32 %v2266, 1.442695
        %v2290 = vpow.pop %v2289
        %v2291 = vmul.f32 %v2267, 1.442695
        %v2292 = vpow.pop %v2291
        %v2293 = vmul.f32 %v2268, 1.442695
        %v2294 = vpow.pop %v2293
        %v2295 = vmul.f32 %v2269, 1.442695
        %v2296 = vpow.pop %v2295
        %v2297 = vmul.f32 %v2270, 1.442695
        %v2298 = vpow.pop %v2297
        %v2299 = vmul.f32 %v2271, 1.442695
        %v2300 = vpow.pop %v2299
        %v2301 = vmul.f32 %v2272, 1.442695
        %v2302 = vpow.pop %v2301
        %v2303 = vmul.f32 %v2273, 1.442695
        %v2304 = vpow.pop %v2303
        %v2305 = vmul.f32 %v2274, 1.442695
        %v2306 = vpow.pop %v2305
        %2308 = vset.pattern.permute.xlu0 0
        %2309 = vperm.xlu0 %2308, %v2243
        %v2310 = vpop.permute.xlu0 %2309
        %2313 = vset.pattern.permute.xlu0 0
        %2314 = vperm.xlu0 %2313, %v2244
        %v2315 = vpop.permute.xlu0 %2314
        %2318 = vset.pattern.permute.xlu0 0
        %2319 = vperm.xlu0 %2318, %v2245
        %v2320 = vpop.permute.xlu0 %2319
        %2323 = vset.pattern.permute.xlu0 0
        %2324 = vperm.xlu0 %2323, %v2246
        %v2325 = vpop.permute.xlu0 %2324
        %2328 = vset.pattern.permute.xlu0 0
        %2329 = vperm.xlu0 %2328, %v2247
        %v2330 = vpop.permute.xlu0 %2329
        %2333 = vset.pattern.permute.xlu0 0
        %2334 = vperm.xlu0 %2333, %v2248
        %v2335 = vpop.permute.xlu0 %2334
        %2338 = vset.pattern.permute.xlu0 0
        %2339 = vperm.xlu0 %2338, %v2249
        %v2340 = vpop.permute.xlu0 %2339
        %2343 = vset.pattern.permute.xlu0 0
        %2344 = vperm.xlu0 %2343, %v2250
        %v2345 = vpop.permute.xlu0 %2344
        %2348 = vset.pattern.permute.xlu0 0
        %2349 = vperm.xlu0 %2348, %v2251
        %v2350 = vpop.permute.xlu0 %2349
        %2353 = vset.pattern.permute.xlu0 0
        %2354 = vperm.xlu0 %2353, %v2252
        %v2355 = vpop.permute.xlu0 %2354
        %2358 = vset.pattern.permute.xlu0 0
        %2359 = vperm.xlu0 %2358, %v2253
        %v2360 = vpop.permute.xlu0 %2359
        %2363 = vset.pattern.permute.xlu0 0
        %2364 = vperm.xlu0 %2363, %v2254
        %v2365 = vpop.permute.xlu0 %2364
        %2368 = vset.pattern.permute.xlu0 0
        %2369 = vperm.xlu0 %2368, %v2255
        %v2370 = vpop.permute.xlu0 %2369
        %2373 = vset.pattern.permute.xlu0 0
        %2374 = vperm.xlu0 %2373, %v2256
        %v2375 = vpop.permute.xlu0 %2374
        %2378 = vset.pattern.permute.xlu0 0
        %2379 = vperm.xlu0 %2378, %v2257
        %v2380 = vpop.permute.xlu0 %2379
        %2383 = vset.pattern.permute.xlu0 0
        %2384 = vperm.xlu0 %2383, %v2258
        %v2385 = vpop.permute.xlu0 %2384
        %v2387 = vsub.f32 %v1843, %v2310
        %v2388 = vsub.f32 %v1846, %v2315
        %v2389 = vsub.f32 %v1890, %v2320
        %v2390 = vsub.f32 %v1893, %v2325
        %v2391 = vsub.f32 %v1937, %v2330
        %v2392 = vsub.f32 %v1940, %v2335
        %v2393 = vsub.f32 %v1984, %v2340
        %v2394 = vsub.f32 %v1987, %v2345
        %v2395 = vsub.f32 %v2031, %v2350
        %v2396 = vsub.f32 %v2034, %v2355
        %v2397 = vsub.f32 %v2078, %v2360
        %v2398 = vsub.f32 %v2081, %v2365
        %v2399 = vsub.f32 %v2125, %v2370
        %v2400 = vsub.f32 %v2128, %v2375
        %v2401 = vsub.f32 %v2172, %v2380
        %v2402 = vsub.f32 %v2175, %v2385
        %v2403 = vmul.f32 %v2387, 1.442695
        %v2404 = vpow.pop %v2403
        %v2405 = vmul.f32 %v2388, 1.442695
        %v2406 = vpow.pop %v2405
        %v2407 = vmul.f32 %v2389, 1.442695
        %v2408 = vpow.pop %v2407
        %v2409 = vmul.f32 %v2390, 1.442695
        %v2410 = vpow.pop %v2409
        %v2411 = vmul.f32 %v2391, 1.442695
        %v2412 = vpow.pop %v2411
        %v2413 = vmul.f32 %v2392, 1.442695
        %v2414 = vpow.pop %v2413
        %v2415 = vmul.f32 %v2393, 1.442695
        %v2416 = vpow.pop %v2415
        %v2417 = vmul.f32 %v2394, 1.442695
        %v2418 = vpow.pop %v2417
        %v2419 = vmul.f32 %v2395, 1.442695
        %v2420 = vpow.pop %v2419
        %v2421 = vmul.f32 %v2396, 1.442695
        %v2422 = vpow.pop %v2421
        %v2423 = vmul.f32 %v2397, 1.442695
        %v2424 = vpow.pop %v2423
        %v2425 = vmul.f32 %v2398, 1.442695
        %v2426 = vpow.pop %v2425
        %v2427 = vmul.f32 %v2399, 1.442695
        %v2428 = vpow.pop %v2427
        %v2429 = vmul.f32 %v2400, 1.442695
        %v2430 = vpow.pop %v2429
        %v2431 = vmul.f32 %v2401, 1.442695
        %v2432 = vpow.pop %v2431
        %v2433 = vmul.f32 %v2402, 1.442695
        %v2434 = vpow.pop %v2433
        %v2435 = vld [vmem:[#allocation4] sm:$0xff]
        %v2436 = vld [vmem:[#allocation4 + $0x8] sm:$0xff]
        %v2437 = vld [vmem:[#allocation4 + $0x10] sm:$0xff]
        %v2438 = vld [vmem:[#allocation4 + $0x18] sm:$0xff]
        %v2439 = vld [vmem:[#allocation4 + $0x20] sm:$0xff]
        %v2440 = vld [vmem:[#allocation4 + $0x28] sm:$0xff]
        %v2441 = vld [vmem:[#allocation4 + $0x30] sm:$0xff]
        %v2442 = vld [vmem:[#allocation4 + $0x38] sm:$0xff]
        %v2443 = vld [vmem:[#allocation4 + $0x40] sm:$0xff]
        %v2444 = vld [vmem:[#allocation4 + $0x48] sm:$0xff]
        %v2445 = vld [vmem:[#allocation4 + $0x50] sm:$0xff]
        %v2446 = vld [vmem:[#allocation4 + $0x58] sm:$0xff]
        %v2447 = vld [vmem:[#allocation4 + $0x60] sm:$0xff]
        %v2448 = vld [vmem:[#allocation4 + $0x68] sm:$0xff]
        %v2449 = vld [vmem:[#allocation4 + $0x70] sm:$0xff]
        %v2450 = vld [vmem:[#allocation4 + $0x78] sm:$0xff]
        %v2451 = vmul.f32 %v2276, %v2435
        %v2452 = vmul.f32 %v2278, %v2436
        %v2453 = vmul.f32 %v2280, %v2437
        %v2454 = vmul.f32 %v2282, %v2438
        %v2455 = vmul.f32 %v2284, %v2439
        %v2456 = vmul.f32 %v2286, %v2440
        %v2457 = vmul.f32 %v2288, %v2441
        %v2458 = vmul.f32 %v2290, %v2442
        %v2459 = vmul.f32 %v2292, %v2443
        %v2460 = vmul.f32 %v2294, %v2444
        %v2461 = vmul.f32 %v2296, %v2445
        %v2462 = vmul.f32 %v2298, %v2446
        %v2463 = vmul.f32 %v2300, %v2447
        %v2464 = vmul.f32 %v2302, %v2448
        %v2465 = vmul.f32 %v2304, %v2449
        %v2466 = vmul.f32 %v2306, %v2450
        %v2467 = vsel %vm2194, %v2404, 0.0
        %2468 = vadd.xlane.f32.xlu0 %v2467
        %v2469 = vpop.xlane.xlu0 %2468
        %v2470 = vsel %vm2194, %v2406, 0.0
        %2471 = vadd.xlane.f32.xlu0 %v2470
        %v2472 = vpop.xlane.xlu0 %2471
        %v2473 = vsel %vm2194, %v2408, 0.0
        %2474 = vadd.xlane.f32.xlu0 %v2473
        %v2475 = vpop.xlane.xlu0 %2474
        %v2476 = vsel %vm2194, %v2410, 0.0
        %2477 = vadd.xlane.f32.xlu0 %v2476
        %v2478 = vpop.xlane.xlu0 %2477
        %v2479 = vsel %vm2194, %v2412, 0.0
        %2480 = vadd.xlane.f32.xlu0 %v2479
        %v2481 = vpop.xlane.xlu0 %2480
        %v2482 = vsel %vm2194, %v2414, 0.0
        %2483 = vadd.xlane.f32.xlu0 %v2482
        %v2484 = vpop.xlane.xlu0 %2483
        %v2485 = vsel %vm2194, %v2416, 0.0
        %2486 = vadd.xlane.f32.xlu0 %v2485
        %v2487 = vpop.xlane.xlu0 %2486
        %v2488 = vsel %vm2194, %v2418, 0.0
        %2489 = vadd.xlane.f32.xlu0 %v2488
        %v2490 = vpop.xlane.xlu0 %2489
        %v2491 = vsel %vm2194, %v2420, 0.0
        %2492 = vadd.xlane.f32.xlu0 %v2491
        %v2493 = vpop.xlane.xlu0 %2492
        %v2494 = vsel %vm2194, %v2422, 0.0
        %2495 = vadd.xlane.f32.xlu0 %v2494
        %v2496 = vpop.xlane.xlu0 %2495
        %v2497 = vsel %vm2194, %v2424, 0.0
        %2498 = vadd.xlane.f32.xlu0 %v2497
        %v2499 = vpop.xlane.xlu0 %2498
        %v2500 = vsel %vm2194, %v2426, 0.0
        %2501 = vadd.xlane.f32.xlu0 %v2500
        %v2502 = vpop.xlane.xlu0 %2501
        %v2503 = vsel %vm2194, %v2428, 0.0
        %2504 = vadd.xlane.f32.xlu0 %v2503
        %v2505 = vpop.xlane.xlu0 %2504
        %v2506 = vsel %vm2194, %v2430, 0.0
        %2507 = vadd.xlane.f32.xlu0 %v2506
        %v2508 = vpop.xlane.xlu0 %2507
        %v2509 = vsel %vm2194, %v2432, 0.0
        %2510 = vadd.xlane.f32.xlu0 %v2509
        %v2511 = vpop.xlane.xlu0 %2510
        %v2512 = vsel %vm2194, %v2434, 0.0
        %2513 = vadd.xlane.f32.xlu0 %v2512
        %v2514 = vpop.xlane.xlu0 %2513
        %v2515 = vadd.f32 %v2451, %v2469
        %v2516 = vadd.f32 %v2452, %v2472
        %v2517 = vadd.f32 %v2453, %v2475
        %v2518 = vadd.f32 %v2454, %v2478
        %v2519 = vadd.f32 %v2455, %v2481
        %v2520 = vadd.f32 %v2456, %v2484
        %v2521 = vadd.f32 %v2457, %v2487
        %v2522 = vadd.f32 %v2458, %v2490
        %v2523 = vadd.f32 %v2459, %v2493
        %v2524 = vadd.f32 %v2460, %v2496
        %v2525 = vadd.f32 %v2461, %v2499
        %v2526 = vadd.f32 %v2462, %v2502
        %v2527 = vadd.f32 %v2463, %v2505
        %v2528 = vadd.f32 %v2464, %v2508
        %v2529 = vadd.f32 %v2465, %v2511
        %v2530 = vadd.f32 %v2466, %v2514
        %vm2531 = vcmask 7168
        %2532 = vst.msk [vmem:[#allocation4] sm:$0xff] %vm2531, %v2515
        %2533 = vst.msk [vmem:[#allocation4 + $0x8] sm:$0xff] %vm2531, %v2516
        %2534 = vst.msk [vmem:[#allocation4 + $0x10] sm:$0xff] %vm2531, %v2517
        %2535 = vst.msk [vmem:[#allocation4 + $0x18] sm:$0xff] %vm2531, %v2518
        %2536 = vst.msk [vmem:[#allocation4 + $0x20] sm:$0xff] %vm2531, %v2519
        %2537 = vst.msk [vmem:[#allocation4 + $0x28] sm:$0xff] %vm2531, %v2520
        %2538 = vst.msk [vmem:[#allocation4 + $0x30] sm:$0xff] %vm2531, %v2521
        %2539 = vst.msk [vmem:[#allocation4 + $0x38] sm:$0xff] %vm2531, %v2522
        %2540 = vst.msk [vmem:[#allocation4 + $0x40] sm:$0xff] %vm2531, %v2523
        %2541 = vst.msk [vmem:[#allocation4 + $0x48] sm:$0xff] %vm2531, %v2524
        %2542 = vst.msk [vmem:[#allocation4 + $0x50] sm:$0xff] %vm2531, %v2525
        %2543 = vst.msk [vmem:[#allocation4 + $0x58] sm:$0xff] %vm2531, %v2526
        %2544 = vst.msk [vmem:[#allocation4 + $0x60] sm:$0xff] %vm2531, %v2527
        %2545 = vst.msk [vmem:[#allocation4 + $0x68] sm:$0xff] %vm2531, %v2528
        %2546 = vst.msk [vmem:[#allocation4 + $0x70] sm:$0xff] %vm2531, %v2529
        %2547 = vst.msk [vmem:[#allocation4 + $0x78] sm:$0xff] %vm2531, %v2530
        %v2548 = vpack.c.bf16 %v2406, %v2404
        %v2549 = vpack.c.bf16 %v2410, %v2408
        %v2550 = vpack.c.bf16 %v2414, %v2412
        %v2551 = vpack.c.bf16 %v2418, %v2416
        %v2552 = vpack.c.bf16 %v2422, %v2420
        %v2553 = vpack.c.bf16 %v2426, %v2424
        %v2554 = vpack.c.bf16 %v2430, %v2428
        %v2555 = vpack.c.bf16 %v2434, %v2432
        %v2556 = vcombine.low %v851, %v867
        %v2558 = vunpack.c.l.s4 1983009808
        %v2559 = vunpack.c.0.s8 %v2558
        %v2560 = vlaneseq
        %v2561 = vshrl.u32 %v2560, 7
        %v2562 = vsub.s32 %v2559, %v2561
        %v2563 = vrot.slane %v2556, %v2562
        %v2564 = vcombine.low %v859, %v875
        %v2566 = vunpack.c.l.s4 1983009808
        %v2567 = vunpack.c.0.s8 %v2566
        %v2568 = vlaneseq
        %v2569 = vshrl.u32 %v2568, 7
        %v2570 = vsub.s32 %v2567, %v2569
        %v2571 = vrot.slane %v2564, %v2570
        %v2572 = vcombine.low %v2563, %v2571
        %v2573 = vcombine.high %v2563, %v2571
        %v2575 = vunpack.c.l.s4 1934713408
        %v2576 = vunpack.c.0.s8 %v2575
        %v2577 = vlaneseq
        %v2578 = vshrl.u32 %v2577, 7
        %v2579 = vsub.s32 %v2576, %v2578
        %v2580 = vrot.slane %v2572, %v2579
        %v2582 = vunpack.c.l.s4 1934713408
        %v2583 = vunpack.c.0.s8 %v2582
        %v2584 = vlaneseq
        %v2585 = vshrl.u32 %v2584, 7
        %v2586 = vsub.s32 %v2583, %v2585
        %v2587 = vrot.slane %v2573, %v2586
        %v2588 = vcombine.high %v2580, 0
        %v2589 = vcombine.high %v2587, 0
        %v2590 = vcombine.low %v855, %v871
        %v2592 = vunpack.c.l.s4 1983009808
        %v2593 = vunpack.c.0.s8 %v2592
        %v2594 = vlaneseq
        %v2595 = vshrl.u32 %v2594, 7
        %v2596 = vsub.s32 %v2593, %v2595
        %v2597 = vrot.slane %v2590, %v2596
        %v2598 = vcombine.low %v863, %v879
        %v2600 = vunpack.c.l.s4 1983009808
        %v2601 = vunpack.c.0.s8 %v2600
        %v2602 = vlaneseq
        %v2603 = vshrl.u32 %v2602, 7
        %v2604 = vsub.s32 %v2601, %v2603
        %v2605 = vrot.slane %v2598, %v2604
        %v2606 = vcombine.low %v2597, %v2605
        %v2607 = vcombine.high %v2597, %v2605
        %v2609 = vunpack.c.l.s4 1934713408
        %v2610 = vunpack.c.0.s8 %v2609
        %v2611 = vlaneseq
        %v2612 = vshrl.u32 %v2611, 7
        %v2613 = vsub.s32 %v2610, %v2612
        %v2614 = vrot.slane %v2606, %v2613
        %v2616 = vunpack.c.l.s4 1934713408
        %v2617 = vunpack.c.0.s8 %v2616
        %v2618 = vlaneseq
        %v2619 = vshrl.u32 %v2618, 7
        %v2620 = vsub.s32 %v2617, %v2619
        %v2621 = vrot.slane %v2607, %v2620
        %v2622 = vcombine.high %v2614, 0
        %v2623 = vcombine.high %v2621, 0
        %v2626 = vpack.i.b16 %v2614, %v2580
        %v2627 = vshrl.u32 %v2580, 16
        %v2628 = vshrl.u32 %v2614, 16
        %v2629 = vpack.i.b16 %v2628, %v2627
        %v2632 = vpack.i.b16 %v2622, %v2588
        %v2633 = vshrl.u32 %v2588, 16
        %v2634 = vshrl.u32 %v2622, 16
        %v2635 = vpack.i.b16 %v2634, %v2633
        %v2638 = vpack.i.b16 %v2621, %v2587
        %v2639 = vshrl.u32 %v2587, 16
        %v2640 = vshrl.u32 %v2621, 16
        %v2641 = vpack.i.b16 %v2640, %v2639
        %v2644 = vpack.i.b16 %v2623, %v2589
        %v2645 = vshrl.u32 %v2589, 16
        %v2646 = vshrl.u32 %v2623, 16
        %v2647 = vpack.i.b16 %v2646, %v2645
        %v2649 = vsel %vm2194, %v2548, 0
        %vm2651 = vcmask 1043456
        %v2653 = vsel %vm2651, %v2626, 0
        %2655 = vmatprep.subr.bf16.mxu0 0
        %2656 = vmatpush1.bf16.msra.mxu0 0
        %2657 = vmatprep.subr.bf16.mxu0 0
        %2658 = vmatpush1.bf16.msra.mxu0 0
        %2659 = vmatprep.subr.bf16.mxu0 0
        %2660 = vmatpush1.bf16.msra.mxu0 0
        %2661 = vmatprep.subr.bf16.mxu0 0
        %2662 = vmatpush1.bf16.msra.mxu0 0
        %2663 = vmatprep.subr.bf16.mxu0 0
        %2664 = vmatpush1.bf16.msra.mxu0 0
        %2665 = vmatprep.subr.bf16.mxu0 0
        %2666 = vmatpush1.bf16.msra.mxu0 0
        %2667 = vmatprep.subr.bf16.mxu0 0
        %2668 = vmatpush1.bf16.msra.mxu0 0
        %2669 = vmatprep.subr.bf16.mxu0 0
        %2670 = vmatpush1.bf16.msra.mxu0 %v2653
        %2671 = vmatprep.subr.bf16.mxu0 0
        %2672 = vmatpush2.bf16.msra.mxu0 0
        %2673 = vmatprep.subr.bf16.mxu0 0
        %2674 = vmatpush2.bf16.msra.mxu0 0
        %2675 = vmatprep.subr.bf16.mxu0 0
        %2676 = vmatpush2.bf16.msra.mxu0 0
        %2677 = vmatprep.subr.bf16.mxu0 0
        %2678 = vmatpush2.bf16.msra.mxu0 0
        %2679 = vmatprep.subr.bf16.mxu0 0
        %2680 = vmatpush2.bf16.msra.mxu0 0
        %2681 = vmatprep.subr.bf16.mxu0 0
        %2682 = vmatpush2.bf16.msra.mxu0 0
        %2683 = vmatprep.subr.bf16.mxu0 0
        %2684 = vmatpush2.bf16.msra.mxu0 0
        %2685 = vmatprep.subr.bf16.mxu0 0
        %2686 = vmatpush2.bf16.msra.mxu0 0
        %2687 = vmatprep.mubr.bf16.mxu0 0
        %2688 = vmatmul.mubr.bf16.gmra.mxu0 %v2649
        %v2689 = vpop.f32.mrf.mxu0
        %v2690 = vadd.f32 0.0, %v2689
        %v2691 = vpop.f32.mrf.mxu0
        %v2692 = vpop.f32.mrf.mxu0
        %v2693 = vadd.f32 0.0, %v2692
        %v2694 = vpop.f32.mrf.mxu0
        %2695 = vdwg.mxu0
        %v2697 = vsel %vm2194, %v2549, 0
        %v2700 = vsel %vm2651, %v2629, 0
        %2702 = vmatprep.subr.bf16.mxu0 0
        %2703 = vmatpush1.bf16.msra.mxu0 0
        %2704 = vmatprep.subr.bf16.mxu0 0
        %2705 = vmatpush1.bf16.msra.mxu0 0
        %2706 = vmatprep.subr.bf16.mxu0 0
        %2707 = vmatpush1.bf16.msra.mxu0 0
        %2708 = vmatprep.subr.bf16.mxu0 0
        %2709 = vmatpush1.bf16.msra.mxu0 0
        %2710 = vmatprep.subr.bf16.mxu0 0
        %2711 = vmatpush1.bf16.msra.mxu0 0
        %2712 = vmatprep.subr.bf16.mxu0 0
        %2713 = vmatpush1.bf16.msra.mxu0 0
        %2714 = vmatprep.subr.bf16.mxu0 0
        %2715 = vmatpush1.bf16.msra.mxu0 0
        %2716 = vmatprep.subr.bf16.mxu0 0
        %2717 = vmatpush1.bf16.msra.mxu0 %v2700
        %2718 = vmatprep.subr.bf16.mxu0 0
        %2719 = vmatpush2.bf16.msra.mxu0 0
        %2720 = vmatprep.subr.bf16.mxu0 0
        %2721 = vmatpush2.bf16.msra.mxu0 0
        %2722 = vmatprep.subr.bf16.mxu0 0
        %2723 = vmatpush2.bf16.msra.mxu0 0
        %2724 = vmatprep.subr.bf16.mxu0 0
        %2725 = vmatpush2.bf16.msra.mxu0 0
        %2726 = vmatprep.subr.bf16.mxu0 0
        %2727 = vmatpush2.bf16.msra.mxu0 0
        %2728 = vmatprep.subr.bf16.mxu0 0
        %2729 = vmatpush2.bf16.msra.mxu0 0
        %2730 = vmatprep.subr.bf16.mxu0 0
        %2731 = vmatpush2.bf16.msra.mxu0 0
        %2732 = vmatprep.subr.bf16.mxu0 0
        %2733 = vmatpush2.bf16.msra.mxu0 0
        %2734 = vmatprep.mubr.bf16.mxu0 0
        %2735 = vmatmul.mubr.bf16.gmra.mxu0 %v2697
        %v2736 = vpop.f32.mrf.mxu0
        %v2737 = vadd.f32 0.0, %v2736
        %v2738 = vpop.f32.mrf.mxu0
        %v2739 = vpop.f32.mrf.mxu0
        %v2740 = vadd.f32 0.0, %v2739
        %v2741 = vpop.f32.mrf.mxu0
        %2742 = vdwg.mxu0
        %v2744 = vsel %vm2194, %v2550, 0
        %v2747 = vsel %vm2651, %v2632, 0
        %2749 = vmatprep.subr.bf16.mxu0 0
        %2750 = vmatpush1.bf16.msra.mxu0 0
        %2751 = vmatprep.subr.bf16.mxu0 0
        %2752 = vmatpush1.bf16.msra.mxu0 0
        %2753 = vmatprep.subr.bf16.mxu0 0
        %2754 = vmatpush1.bf16.msra.mxu0 0
        %2755 = vmatprep.subr.bf16.mxu0 0
        %2756 = vmatpush1.bf16.msra.mxu0 0
        %2757 = vmatprep.subr.bf16.mxu0 0
        %2758 = vmatpush1.bf16.msra.mxu0 0
        %2759 = vmatprep.subr.bf16.mxu0 0
        %2760 = vmatpush1.bf16.msra.mxu0 0
        %2761 = vmatprep.subr.bf16.mxu0 0
        %2762 = vmatpush1.bf16.msra.mxu0 0
        %2763 = vmatprep.subr.bf16.mxu0 0
        %2764 = vmatpush1.bf16.msra.mxu0 %v2747
        %2765 = vmatprep.subr.bf16.mxu0 0
        %2766 = vmatpush2.bf16.msra.mxu0 0
        %2767 = vmatprep.subr.bf16.mxu0 0
        %2768 = vmatpush2.bf16.msra.mxu0 0
        %2769 = vmatprep.subr.bf16.mxu0 0
        %2770 = vmatpush2.bf16.msra.mxu0 0
        %2771 = vmatprep.subr.bf16.mxu0 0
        %2772 = vmatpush2.bf16.msra.mxu0 0
        %2773 = vmatprep.subr.bf16.mxu0 0
        %2774 = vmatpush2.bf16.msra.mxu0 0
        %2775 = vmatprep.subr.bf16.mxu0 0
        %2776 = vmatpush2.bf16.msra.mxu0 0
        %2777 = vmatprep.subr.bf16.mxu0 0
        %2778 = vmatpush2.bf16.msra.mxu0 0
        %2779 = vmatprep.subr.bf16.mxu0 0
        %2780 = vmatpush2.bf16.msra.mxu0 0
        %2781 = vmatprep.mubr.bf16.mxu0 0
        %2782 = vmatmul.mubr.bf16.gmra.mxu0 %v2744
        %v2783 = vpop.f32.mrf.mxu0
        %v2784 = vadd.f32 0.0, %v2783
        %v2785 = vpop.f32.mrf.mxu0
        %v2786 = vpop.f32.mrf.mxu0
        %v2787 = vadd.f32 0.0, %v2786
        %v2788 = vpop.f32.mrf.mxu0
        %2789 = vdwg.mxu0
        %v2791 = vsel %vm2194, %v2551, 0
        %v2794 = vsel %vm2651, %v2635, 0
        %2796 = vmatprep.subr.bf16.mxu0 0
        %2797 = vmatpush1.bf16.msra.mxu0 0
        %2798 = vmatprep.subr.bf16.mxu0 0
        %2799 = vmatpush1.bf16.msra.mxu0 0
        %2800 = vmatprep.subr.bf16.mxu0 0
        %2801 = vmatpush1.bf16.msra.mxu0 0
        %2802 = vmatprep.subr.bf16.mxu0 0
        %2803 = vmatpush1.bf16.msra.mxu0 0
        %2804 = vmatprep.subr.bf16.mxu0 0
        %2805 = vmatpush1.bf16.msra.mxu0 0
        %2806 = vmatprep.subr.bf16.mxu0 0
        %2807 = vmatpush1.bf16.msra.mxu0 0
        %2808 = vmatprep.subr.bf16.mxu0 0
        %2809 = vmatpush1.bf16.msra.mxu0 0
        %2810 = vmatprep.subr.bf16.mxu0 0
        %2811 = vmatpush1.bf16.msra.mxu0 %v2794
        %2812 = vmatprep.subr.bf16.mxu0 0
        %2813 = vmatpush2.bf16.msra.mxu0 0
        %2814 = vmatprep.subr.bf16.mxu0 0
        %2815 = vmatpush2.bf16.msra.mxu0 0
        %2816 = vmatprep.subr.bf16.mxu0 0
        %2817 = vmatpush2.bf16.msra.mxu0 0
        %2818 = vmatprep.subr.bf16.mxu0 0
        %2819 = vmatpush2.bf16.msra.mxu0 0
        %2820 = vmatprep.subr.bf16.mxu0 0
        %2821 = vmatpush2.bf16.msra.mxu0 0
        %2822 = vmatprep.subr.bf16.mxu0 0
        %2823 = vmatpush2.bf16.msra.mxu0 0
        %2824 = vmatprep.subr.bf16.mxu0 0
        %2825 = vmatpush2.bf16.msra.mxu0 0
        %2826 = vmatprep.subr.bf16.mxu0 0
        %2827 = vmatpush2.bf16.msra.mxu0 0
        %2828 = vmatprep.mubr.bf16.mxu0 0
        %2829 = vmatmul.mubr.bf16.gmra.mxu0 %v2791
        %v2830 = vpop.f32.mrf.mxu0
        %v2831 = vadd.f32 0.0, %v2830
        %v2832 = vpop.f32.mrf.mxu0
        %v2833 = vpop.f32.mrf.mxu0
        %v2834 = vadd.f32 0.0, %v2833
        %v2835 = vpop.f32.mrf.mxu0
        %2836 = vdwg.mxu0
        %v2838 = vsel %vm2194, %v2552, 0
        %v2841 = vsel %vm2651, %v2638, 0
        %2843 = vmatprep.subr.bf16.mxu0 0
        %2844 = vmatpush1.bf16.msra.mxu0 0
        %2845 = vmatprep.subr.bf16.mxu0 0
        %2846 = vmatpush1.bf16.msra.mxu0 0
        %2847 = vmatprep.subr.bf16.mxu0 0
        %2848 = vmatpush1.bf16.msra.mxu0 0
        %2849 = vmatprep.subr.bf16.mxu0 0
        %2850 = vmatpush1.bf16.msra.mxu0 0
        %2851 = vmatprep.subr.bf16.mxu0 0
        %2852 = vmatpush1.bf16.msra.mxu0 0
        %2853 = vmatprep.subr.bf16.mxu0 0
        %2854 = vmatpush1.bf16.msra.mxu0 0
        %2855 = vmatprep.subr.bf16.mxu0 0
        %2856 = vmatpush1.bf16.msra.mxu0 0
        %2857 = vmatprep.subr.bf16.mxu0 0
        %2858 = vmatpush1.bf16.msra.mxu0 %v2841
        %2859 = vmatprep.subr.bf16.mxu0 0
        %2860 = vmatpush2.bf16.msra.mxu0 0
        %2861 = vmatprep.subr.bf16.mxu0 0
        %2862 = vmatpush2.bf16.msra.mxu0 0
        %2863 = vmatprep.subr.bf16.mxu0 0
        %2864 = vmatpush2.bf16.msra.mxu0 0
        %2865 = vmatprep.subr.bf16.mxu0 0
        %2866 = vmatpush2.bf16.msra.mxu0 0
        %2867 = vmatprep.subr.bf16.mxu0 0
        %2868 = vmatpush2.bf16.msra.mxu0 0
        %2869 = vmatprep.subr.bf16.mxu0 0
        %2870 = vmatpush2.bf16.msra.mxu0 0
        %2871 = vmatprep.subr.bf16.mxu0 0
        %2872 = vmatpush2.bf16.msra.mxu0 0
        %2873 = vmatprep.subr.bf16.mxu0 0
        %2874 = vmatpush2.bf16.msra.mxu0 0
        %2875 = vmatprep.mubr.bf16.mxu0 0
        %2876 = vmatmul.mubr.bf16.gmra.mxu0 %v2838
        %v2877 = vpop.f32.mrf.mxu0
        %v2878 = vadd.f32 0.0, %v2877
        %v2879 = vpop.f32.mrf.mxu0
        %v2880 = vpop.f32.mrf.mxu0
        %v2881 = vadd.f32 0.0, %v2880
        %v2882 = vpop.f32.mrf.mxu0
        %2883 = vdwg.mxu0
        %v2885 = vsel %vm2194, %v2553, 0
        %v2888 = vsel %vm2651, %v2641, 0
        %2890 = vmatprep.subr.bf16.mxu0 0
        %2891 = vmatpush1.bf16.msra.mxu0 0
        %2892 = vmatprep.subr.bf16.mxu0 0
        %2893 = vmatpush1.bf16.msra.mxu0 0
        %2894 = vmatprep.subr.bf16.mxu0 0
        %2895 = vmatpush1.bf16.msra.mxu0 0
        %2896 = vmatprep.subr.bf16.mxu0 0
        %2897 = vmatpush1.bf16.msra.mxu0 0
        %2898 = vmatprep.subr.bf16.mxu0 0
        %2899 = vmatpush1.bf16.msra.mxu0 0
        %2900 = vmatprep.subr.bf16.mxu0 0
        %2901 = vmatpush1.bf16.msra.mxu0 0
        %2902 = vmatprep.subr.bf16.mxu0 0
        %2903 = vmatpush1.bf16.msra.mxu0 0
        %2904 = vmatprep.subr.bf16.mxu0 0
        %2905 = vmatpush1.bf16.msra.mxu0 %v2888
        %2906 = vmatprep.subr.bf16.mxu0 0
        %2907 = vmatpush2.bf16.msra.mxu0 0
        %2908 = vmatprep.subr.bf16.mxu0 0
        %2909 = vmatpush2.bf16.msra.mxu0 0
        %2910 = vmatprep.subr.bf16.mxu0 0
        %2911 = vmatpush2.bf16.msra.mxu0 0
        %2912 = vmatprep.subr.bf16.mxu0 0
        %2913 = vmatpush2.bf16.msra.mxu0 0
        %2914 = vmatprep.subr.bf16.mxu0 0
        %2915 = vmatpush2.bf16.msra.mxu0 0
        %2916 = vmatprep.subr.bf16.mxu0 0
        %2917 = vmatpush2.bf16.msra.mxu0 0
        %2918 = vmatprep.subr.bf16.mxu0 0
        %2919 = vmatpush2.bf16.msra.mxu0 0
        %2920 = vmatprep.subr.bf16.mxu0 0
        %2921 = vmatpush2.bf16.msra.mxu0 0
        %2922 = vmatprep.mubr.bf16.mxu0 0
        %2923 = vmatmul.mubr.bf16.gmra.mxu0 %v2885
        %v2924 = vpop.f32.mrf.mxu0
        %v2925 = vadd.f32 0.0, %v2924
        %v2926 = vpop.f32.mrf.mxu0
        %v2927 = vpop.f32.mrf.mxu0
        %v2928 = vadd.f32 0.0, %v2927
        %v2929 = vpop.f32.mrf.mxu0
        %2930 = vdwg.mxu0
        %v2932 = vsel %vm2194, %v2554, 0
        %v2935 = vsel %vm2651, %v2644, 0
        %2937 = vmatprep.subr.bf16.mxu0 0
        %2938 = vmatpush1.bf16.msra.mxu0 0
        %2939 = vmatprep.subr.bf16.mxu0 0
        %2940 = vmatpush1.bf16.msra.mxu0 0
        %2941 = vmatprep.subr.bf16.mxu0 0
        %2942 = vmatpush1.bf16.msra.mxu0 0
        %2943 = vmatprep.subr.bf16.mxu0 0
        %2944 = vmatpush1.bf16.msra.mxu0 0
        %2945 = vmatprep.subr.bf16.mxu0 0
        %2946 = vmatpush1.bf16.msra.mxu0 0
        %2947 = vmatprep.subr.bf16.mxu0 0
        %2948 = vmatpush1.bf16.msra.mxu0 0
        %2949 = vmatprep.subr.bf16.mxu0 0
        %2950 = vmatpush1.bf16.msra.mxu0 0
        %2951 = vmatprep.subr.bf16.mxu0 0
        %2952 = vmatpush1.bf16.msra.mxu0 %v2935
        %2953 = vmatprep.subr.bf16.mxu0 0
        %2954 = vmatpush2.bf16.msra.mxu0 0
        %2955 = vmatprep.subr.bf16.mxu0 0
        %2956 = vmatpush2.bf16.msra.mxu0 0
        %2957 = vmatprep.subr.bf16.mxu0 0
        %2958 = vmatpush2.bf16.msra.mxu0 0
        %2959 = vmatprep.subr.bf16.mxu0 0
        %2960 = vmatpush2.bf16.msra.mxu0 0
        %2961 = vmatprep.subr.bf16.mxu0 0
        %2962 = vmatpush2.bf16.msra.mxu0 0
        %2963 = vmatprep.subr.bf16.mxu0 0
        %2964 = vmatpush2.bf16.msra.mxu0 0
        %2965 = vmatprep.subr.bf16.mxu0 0
        %2966 = vmatpush2.bf16.msra.mxu0 0
        %2967 = vmatprep.subr.bf16.mxu0 0
        %2968 = vmatpush2.bf16.msra.mxu0 0
        %2969 = vmatprep.mubr.bf16.mxu0 0
        %2970 = vmatmul.mubr.bf16.gmra.mxu0 %v2932
        %v2971 = vpop.f32.mrf.mxu0
        %v2972 = vadd.f32 0.0, %v2971
        %v2973 = vpop.f32.mrf.mxu0
        %v2974 = vpop.f32.mrf.mxu0
        %v2975 = vadd.f32 0.0, %v2974
        %v2976 = vpop.f32.mrf.mxu0
        %2977 = vdwg.mxu0
        %v2979 = vsel %vm2194, %v2555, 0
        %v2982 = vsel %vm2651, %v2647, 0
        %2984 = vmatprep.subr.bf16.mxu0 0
        %2985 = vmatpush1.bf16.msra.mxu0 0
        %2986 = vmatprep.subr.bf16.mxu0 0
        %2987 = vmatpush1.bf16.msra.mxu0 0
        %2988 = vmatprep.subr.bf16.mxu0 0
        %2989 = vmatpush1.bf16.msra.mxu0 0
        %2990 = vmatprep.subr.bf16.mxu0 0
        %2991 = vmatpush1.bf16.msra.mxu0 0
        %2992 = vmatprep.subr.bf16.mxu0 0
        %2993 = vmatpush1.bf16.msra.mxu0 0
        %2994 = vmatprep.subr.bf16.mxu0 0
        %2995 = vmatpush1.bf16.msra.mxu0 0
        %2996 = vmatprep.subr.bf16.mxu0 0
        %2997 = vmatpush1.bf16.msra.mxu0 0
        %2998 = vmatprep.subr.bf16.mxu0 0
        %2999 = vmatpush1.bf16.msra.mxu0 %v2982
        %3000 = vmatprep.subr.bf16.mxu0 0
        %3001 = vmatpush2.bf16.msra.mxu0 0
        %3002 = vmatprep.subr.bf16.mxu0 0
        %3003 = vmatpush2.bf16.msra.mxu0 0
        %3004 = vmatprep.subr.bf16.mxu0 0
        %3005 = vmatpush2.bf16.msra.mxu0 0
        %3006 = vmatprep.subr.bf16.mxu0 0
        %3007 = vmatpush2.bf16.msra.mxu0 0
        %3008 = vmatprep.subr.bf16.mxu0 0
        %3009 = vmatpush2.bf16.msra.mxu0 0
        %3010 = vmatprep.subr.bf16.mxu0 0
        %3011 = vmatpush2.bf16.msra.mxu0 0
        %3012 = vmatprep.subr.bf16.mxu0 0
        %3013 = vmatpush2.bf16.msra.mxu0 0
        %3014 = vmatprep.subr.bf16.mxu0 0
        %3015 = vmatpush2.bf16.msra.mxu0 0
        %3016 = vmatprep.mubr.bf16.mxu0 0
        %3017 = vmatmul.mubr.bf16.gmra.mxu0 %v2979
        %v3018 = vpop.f32.mrf.mxu0
        %v3019 = vadd.f32 0.0, %v3018
        %v3020 = vpop.f32.mrf.mxu0
        %v3021 = vpop.f32.mrf.mxu0
        %v3022 = vadd.f32 0.0, %v3021
        %v3023 = vpop.f32.mrf.mxu0
        %3024 = vdwg.mxu0
        %v3025 = vld [vmem:[#allocation5] sm:$0xff]
        %v3026 = vld [vmem:[#allocation5 + $0x8] sm:$0xff]
        %v3027 = vld [vmem:[#allocation5 + $0x10] sm:$0xff]
        %v3028 = vld [vmem:[#allocation5 + $0x18] sm:$0xff]
        %v3029 = vld [vmem:[#allocation5 + $0x20] sm:$0xff]
        %v3030 = vld [vmem:[#allocation5 + $0x28] sm:$0xff]
        %v3031 = vld [vmem:[#allocation5 + $0x30] sm:$0xff]
        %v3032 = vld [vmem:[#allocation5 + $0x38] sm:$0xff]
        %v3033 = vld [vmem:[#allocation5 + $0x40] sm:$0xff]
        %v3034 = vld [vmem:[#allocation5 + $0x48] sm:$0xff]
        %v3035 = vld [vmem:[#allocation5 + $0x50] sm:$0xff]
        %v3036 = vld [vmem:[#allocation5 + $0x58] sm:$0xff]
        %v3037 = vld [vmem:[#allocation5 + $0x60] sm:$0xff]
        %v3038 = vld [vmem:[#allocation5 + $0x68] sm:$0xff]
        %v3039 = vld [vmem:[#allocation5 + $0x70] sm:$0xff]
        %v3040 = vld [vmem:[#allocation5 + $0x78] sm:$0xff]
        %3042 = vset.pattern.permute.xlu0 0
        %3043 = vperm.xlu0 %3042, %v2276
        %v3044 = vpop.permute.xlu0 %3043
        %3047 = vset.pattern.permute.xlu0 0
        %3048 = vperm.xlu0 %3047, %v2278
        %v3049 = vpop.permute.xlu0 %3048
        %3052 = vset.pattern.permute.xlu0 0
        %3053 = vperm.xlu0 %3052, %v2280
        %v3054 = vpop.permute.xlu0 %3053
        %3057 = vset.pattern.permute.xlu0 0
        %3058 = vperm.xlu0 %3057, %v2282
        %v3059 = vpop.permute.xlu0 %3058
        %3062 = vset.pattern.permute.xlu0 0
        %3063 = vperm.xlu0 %3062, %v2284
        %v3064 = vpop.permute.xlu0 %3063
        %3067 = vset.pattern.permute.xlu0 0
        %3068 = vperm.xlu0 %3067, %v2286
        %v3069 = vpop.permute.xlu0 %3068
        %3072 = vset.pattern.permute.xlu0 0
        %3073 = vperm.xlu0 %3072, %v2288
        %v3074 = vpop.permute.xlu0 %3073
        %3077 = vset.pattern.permute.xlu0 0
        %3078 = vperm.xlu0 %3077, %v2290
        %v3079 = vpop.permute.xlu0 %3078
        %3082 = vset.pattern.permute.xlu0 0
        %3083 = vperm.xlu0 %3082, %v2292
        %v3084 = vpop.permute.xlu0 %3083
        %3087 = vset.pattern.permute.xlu0 0
        %3088 = vperm.xlu0 %3087, %v2294
        %v3089 = vpop.permute.xlu0 %3088
        %3092 = vset.pattern.permute.xlu0 0
        %3093 = vperm.xlu0 %3092, %v2296
        %v3094 = vpop.permute.xlu0 %3093
        %3097 = vset.pattern.permute.xlu0 0
        %3098 = vperm.xlu0 %3097, %v2298
        %v3099 = vpop.permute.xlu0 %3098
        %3102 = vset.pattern.permute.xlu0 0
        %3103 = vperm.xlu0 %3102, %v2300
        %v3104 = vpop.permute.xlu0 %3103
        %3107 = vset.pattern.permute.xlu0 0
        %3108 = vperm.xlu0 %3107, %v2302
        %v3109 = vpop.permute.xlu0 %3108
        %3112 = vset.pattern.permute.xlu0 0
        %3113 = vperm.xlu0 %3112, %v2304
        %v3114 = vpop.permute.xlu0 %3113
        %3117 = vset.pattern.permute.xlu0 0
        %3118 = vperm.xlu0 %3117, %v2306
        %v3119 = vpop.permute.xlu0 %3118
        %v3121 = vmul.f32 %v3044, %v3025
        %v3122 = vmul.f32 %v3049, %v3026
        %v3123 = vmul.f32 %v3054, %v3027
        %v3124 = vmul.f32 %v3059, %v3028
        %v3125 = vmul.f32 %v3064, %v3029
        %v3126 = vmul.f32 %v3069, %v3030
        %v3127 = vmul.f32 %v3074, %v3031
        %v3128 = vmul.f32 %v3079, %v3032
        %v3129 = vmul.f32 %v3084, %v3033
        %v3130 = vmul.f32 %v3089, %v3034
        %v3131 = vmul.f32 %v3094, %v3035
        %v3132 = vmul.f32 %v3099, %v3036
        %v3133 = vmul.f32 %v3104, %v3037
        %v3134 = vmul.f32 %v3109, %v3038
        %v3135 = vmul.f32 %v3114, %v3039
        %v3136 = vmul.f32 %v3119, %v3040
        %v3137 = vadd.f32 %v3121, %v2690
        %v3138 = vadd.f32 %v3122, %v2693
        %v3139 = vadd.f32 %v3123, %v2737
        %v3140 = vadd.f32 %v3124, %v2740
        %v3141 = vadd.f32 %v3125, %v2784
        %v3142 = vadd.f32 %v3126, %v2787
        %v3143 = vadd.f32 %v3127, %v2831
        %v3144 = vadd.f32 %v3128, %v2834
        %v3145 = vadd.f32 %v3129, %v2878
        %v3146 = vadd.f32 %v3130, %v2881
        %v3147 = vadd.f32 %v3131, %v2925
        %v3148 = vadd.f32 %v3132, %v2928
        %v3149 = vadd.f32 %v3133, %v2972
        %v3150 = vadd.f32 %v3134, %v2975
        %v3151 = vadd.f32 %v3135, %v3019
        %v3152 = vadd.f32 %v3136, %v3022
        %3153 = vst.msk [vmem:[#allocation5] sm:$0xff] %vm1804, %v3137
        %3154 = vst.msk [vmem:[#allocation5 + $0x8] sm:$0xff] %vm1804, %v3138
        %3155 = vst.msk [vmem:[#allocation5 + $0x10] sm:$0xff] %vm1804, %v3139
        %3156 = vst.msk [vmem:[#allocation5 + $0x18] sm:$0xff] %vm1804, %v3140
        %3157 = vst.msk [vmem:[#allocation5 + $0x20] sm:$0xff] %vm1804, %v3141
        %3158 = vst.msk [vmem:[#allocation5 + $0x28] sm:$0xff] %vm1804, %v3142
        %3159 = vst.msk [vmem:[#allocation5 + $0x30] sm:$0xff] %vm1804, %v3143
        %3160 = vst.msk [vmem:[#allocation5 + $0x38] sm:$0xff] %vm1804, %v3144
        %3161 = vst.msk [vmem:[#allocation5 + $0x40] sm:$0xff] %vm1804, %v3145
        %3162 = vst.msk [vmem:[#allocation5 + $0x48] sm:$0xff] %vm1804, %v3146
        %3163 = vst.msk [vmem:[#allocation5 + $0x50] sm:$0xff] %vm1804, %v3147
        %3164 = vst.msk [vmem:[#allocation5 + $0x58] sm:$0xff] %vm1804, %v3148
        %3165 = vst.msk [vmem:[#allocation5 + $0x60] sm:$0xff] %vm1804, %v3149
        %3166 = vst.msk [vmem:[#allocation5 + $0x68] sm:$0xff] %vm1804, %v3150
        %3167 = vst.msk [vmem:[#allocation5 + $0x70] sm:$0xff] %vm1804, %v3151
        %3168 = vst.msk [vmem:[#allocation5 + $0x78] sm:$0xff] %vm1804, %v3152
        %3169 = vst.msk [vmem:[#allocation3] sm:$0xff] %vm2531, %v2243
        %3170 = vst.msk [vmem:[#allocation3 + $0x8] sm:$0xff] %vm2531, %v2244
        %3171 = vst.msk [vmem:[#allocation3 + $0x10] sm:$0xff] %vm2531, %v2245
        %3172 = vst.msk [vmem:[#allocation3 + $0x18] sm:$0xff] %vm2531, %v2246
        %3173 = vst.msk [vmem:[#allocation3 + $0x20] sm:$0xff] %vm2531, %v2247
        %3174 = vst.msk [vmem:[#allocation3 + $0x28] sm:$0xff] %vm2531, %v2248
        %3175 = vst.msk [vmem:[#allocation3 + $0x30] sm:$0xff] %vm2531, %v2249
        %3176 = vst.msk [vmem:[#allocation3 + $0x38] sm:$0xff] %vm2531, %v2250
        %3177 = vst.msk [vmem:[#allocation3 + $0x40] sm:$0xff] %vm2531, %v2251
        %3178 = vst.msk [vmem:[#allocation3 + $0x48] sm:$0xff] %vm2531, %v2252
        %3179 = vst.msk [vmem:[#allocation3 + $0x50] sm:$0xff] %vm2531, %v2253
        %3180 = vst.msk [vmem:[#allocation3 + $0x58] sm:$0xff] %vm2531, %v2254
        %3181 = vst.msk [vmem:[#allocation3 + $0x60] sm:$0xff] %vm2531, %v2255
        %3182 = vst.msk [vmem:[#allocation3 + $0x68] sm:$0xff] %vm2531, %v2256
        %3183 = vst.msk [vmem:[#allocation3 + $0x70] sm:$0xff] %vm2531, %v2257
        %3184 = vst.msk [vmem:[#allocation3 + $0x78] sm:$0xff] %vm2531, %v2258
        // Predicated region
        $region45: #{cross_attention.7} parent=39 // pred_check
          %p3185 = pneg %p318
        $region46: #{cross_attention.7} parent=39 // pred_check_branch
          %3187 = sbr.rel (%p3185) target = $region48
        $region47: #{cross_attention.7} parent=39 // pred_region
          %v3188 = vld [vmem:[#allocation5] sm:$0xff]
          %v3189 = vld [vmem:[#allocation5 + $0x8] sm:$0xff]
          %v3190 = vld [vmem:[#allocation5 + $0x10] sm:$0xff]
          %v3191 = vld [vmem:[#allocation5 + $0x18] sm:$0xff]
          %v3192 = vld [vmem:[#allocation5 + $0x20] sm:$0xff]
          %v3193 = vld [vmem:[#allocation5 + $0x28] sm:$0xff]
          %v3194 = vld [vmem:[#allocation5 + $0x30] sm:$0xff]
          %v3195 = vld [vmem:[#allocation5 + $0x38] sm:$0xff]
          %v3196 = vld [vmem:[#allocation5 + $0x40] sm:$0xff]
          %v3197 = vld [vmem:[#allocation5 + $0x48] sm:$0xff]
          %v3198 = vld [vmem:[#allocation5 + $0x50] sm:$0xff]
          %v3199 = vld [vmem:[#allocation5 + $0x58] sm:$0xff]
          %v3200 = vld [vmem:[#allocation5 + $0x60] sm:$0xff]
          %v3201 = vld [vmem:[#allocation5 + $0x68] sm:$0xff]
          %v3202 = vld [vmem:[#allocation5 + $0x70] sm:$0xff]
          %v3203 = vld [vmem:[#allocation5 + $0x78] sm:$0xff]
          %v3204 = vld [vmem:[#allocation4] sm:$0xff]
          %v3205 = vld [vmem:[#allocation4 + $0x8] sm:$0xff]
          %v3206 = vld [vmem:[#allocation4 + $0x10] sm:$0xff]
          %v3207 = vld [vmem:[#allocation4 + $0x18] sm:$0xff]
          %v3208 = vld [vmem:[#allocation4 + $0x20] sm:$0xff]
          %v3209 = vld [vmem:[#allocation4 + $0x28] sm:$0xff]
          %v3210 = vld [vmem:[#allocation4 + $0x30] sm:$0xff]
          %v3211 = vld [vmem:[#allocation4 + $0x38] sm:$0xff]
          %v3212 = vld [vmem:[#allocation4 + $0x40] sm:$0xff]
          %v3213 = vld [vmem:[#allocation4 + $0x48] sm:$0xff]
          %v3214 = vld [vmem:[#allocation4 + $0x50] sm:$0xff]
          %v3215 = vld [vmem:[#allocation4 + $0x58] sm:$0xff]
          %v3216 = vld [vmem:[#allocation4 + $0x60] sm:$0xff]
          %v3217 = vld [vmem:[#allocation4 + $0x68] sm:$0xff]
          %v3218 = vld [vmem:[#allocation4 + $0x70] sm:$0xff]
          %v3219 = vld [vmem:[#allocation4 + $0x78] sm:$0xff]
          %v3220 = vrcp.pop %v3204
          %v3221 = vrcp.pop %v3205
          %v3222 = vrcp.pop %v3206
          %v3223 = vrcp.pop %v3207
          %v3224 = vrcp.pop %v3208
          %v3225 = vrcp.pop %v3209
          %v3226 = vrcp.pop %v3210
          %v3227 = vrcp.pop %v3211
          %v3228 = vrcp.pop %v3212
          %v3229 = vrcp.pop %v3213
          %v3230 = vrcp.pop %v3214
          %v3231 = vrcp.pop %v3215
          %v3232 = vrcp.pop %v3216
          %v3233 = vrcp.pop %v3217
          %v3234 = vrcp.pop %v3218
          %v3235 = vrcp.pop %v3219
          %3237 = vset.pattern.permute.xlu0 0
          %3238 = vperm.xlu0 %3237, %v3220
          %v3239 = vpop.permute.xlu0 %3238
          %3242 = vset.pattern.permute.xlu0 0
          %3243 = vperm.xlu0 %3242, %v3221
          %v3244 = vpop.permute.xlu0 %3243
          %3247 = vset.pattern.permute.xlu0 0
          %3248 = vperm.xlu0 %3247, %v3222
          %v3249 = vpop.permute.xlu0 %3248
          %3252 = vset.pattern.permute.xlu0 0
          %3253 = vperm.xlu0 %3252, %v3223
          %v3254 = vpop.permute.xlu0 %3253
          %3257 = vset.pattern.permute.xlu0 0
          %3258 = vperm.xlu0 %3257, %v3224
          %v3259 = vpop.permute.xlu0 %3258
          %3262 = vset.pattern.permute.xlu0 0
          %3263 = vperm.xlu0 %3262, %v3225
          %v3264 = vpop.permute.xlu0 %3263
          %3267 = vset.pattern.permute.xlu0 0
          %3268 = vperm.xlu0 %3267, %v3226
          %v3269 = vpop.permute.xlu0 %3268
          %3272 = vset.pattern.permute.xlu0 0
          %3273 = vperm.xlu0 %3272, %v3227
          %v3274 = vpop.permute.xlu0 %3273
          %3277 = vset.pattern.permute.xlu0 0
          %3278 = vperm.xlu0 %3277, %v3228
          %v3279 = vpop.permute.xlu0 %3278
          %3282 = vset.pattern.permute.xlu0 0
          %3283 = vperm.xlu0 %3282, %v3229
          %v3284 = vpop.permute.xlu0 %3283
          %3287 = vset.pattern.permute.xlu0 0
          %3288 = vperm.xlu0 %3287, %v3230
          %v3289 = vpop.permute.xlu0 %3288
          %3292 = vset.pattern.permute.xlu0 0
          %3293 = vperm.xlu0 %3292, %v3231
          %v3294 = vpop.permute.xlu0 %3293
          %3297 = vset.pattern.permute.xlu0 0
          %3298 = vperm.xlu0 %3297, %v3232
          %v3299 = vpop.permute.xlu0 %3298
          %3302 = vset.pattern.permute.xlu0 0
          %3303 = vperm.xlu0 %3302, %v3233
          %v3304 = vpop.permute.xlu0 %3303
          %3307 = vset.pattern.permute.xlu0 0
          %3308 = vperm.xlu0 %3307, %v3234
          %v3309 = vpop.permute.xlu0 %3308
          %3312 = vset.pattern.permute.xlu0 0
          %3313 = vperm.xlu0 %3312, %v3235
          %v3314 = vpop.permute.xlu0 %3313
          %v3316 = vmul.f32 %v3188, %v3239
          %v3317 = vmul.f32 %v3189, %v3244
          %v3318 = vmul.f32 %v3190, %v3249
          %v3319 = vmul.f32 %v3191, %v3254
          %v3320 = vmul.f32 %v3192, %v3259
          %v3321 = vmul.f32 %v3193, %v3264
          %v3322 = vmul.f32 %v3194, %v3269
          %v3323 = vmul.f32 %v3195, %v3274
          %v3324 = vmul.f32 %v3196, %v3279
          %v3325 = vmul.f32 %v3197, %v3284
          %v3326 = vmul.f32 %v3198, %v3289
          %v3327 = vmul.f32 %v3199, %v3294
          %v3328 = vmul.f32 %v3200, %v3299
          %v3329 = vmul.f32 %v3201, %v3304
          %v3330 = vmul.f32 %v3202, %v3309
          %v3331 = vmul.f32 %v3203, %v3314
          %v3332 = vcombine.low %v3316, %v3320
          %v3333 = vcombine.high %v3316, %v3320
          %v3335 = vunpack.c.l.s4 1983009808
          %v3336 = vunpack.c.0.s8 %v3335
          %v3337 = vlaneseq
          %v3338 = vshrl.u32 %v3337, 7
          %v3339 = vsub.s32 %v3336, %v3338
          %v3340 = vrot.slane %v3332, %v3339
          %v3342 = vunpack.c.l.s4 1983009808
          %v3343 = vunpack.c.0.s8 %v3342
          %v3344 = vlaneseq
          %v3345 = vshrl.u32 %v3344, 7
          %v3346 = vsub.s32 %v3343, %v3345
          %v3347 = vrot.slane %v3333, %v3346
          %v3348 = vcombine.low %v3318, %v3322
          %v3349 = vcombine.high %v3318, %v3322
          %v3351 = vunpack.c.l.s4 1983009808
          %v3352 = vunpack.c.0.s8 %v3351
          %v3353 = vlaneseq
          %v3354 = vshrl.u32 %v3353, 7
          %v3355 = vsub.s32 %v3352, %v3354
          %v3356 = vrot.slane %v3348, %v3355
          %v3358 = vunpack.c.l.s4 1983009808
          %v3359 = vunpack.c.0.s8 %v3358
          %v3360 = vlaneseq
          %v3361 = vshrl.u32 %v3360, 7
          %v3362 = vsub.s32 %v3359, %v3361
          %v3363 = vrot.slane %v3349, %v3362
          %v3364 = vcombine.low %v3324, %v3328
          %v3365 = vcombine.high %v3324, %v3328
          %v3367 = vunpack.c.l.s4 1983009808
          %v3368 = vunpack.c.0.s8 %v3367
          %v3369 = vlaneseq
          %v3370 = vshrl.u32 %v3369, 7
          %v3371 = vsub.s32 %v3368, %v3370
          %v3372 = vrot.slane %v3364, %v3371
          %v3374 = vunpack.c.l.s4 1983009808
          %v3375 = vunpack.c.0.s8 %v3374
          %v3376 = vlaneseq
          %v3377 = vshrl.u32 %v3376, 7
          %v3378 = vsub.s32 %v3375, %v3377
          %v3379 = vrot.slane %v3365, %v3378
          %v3380 = vcombine.low %v3326, %v3330
          %v3381 = vcombine.high %v3326, %v3330
          %v3383 = vunpack.c.l.s4 1983009808
          %v3384 = vunpack.c.0.s8 %v3383
          %v3385 = vlaneseq
          %v3386 = vshrl.u32 %v3385, 7
          %v3387 = vsub.s32 %v3384, %v3386
          %v3388 = vrot.slane %v3380, %v3387
          %v3390 = vunpack.c.l.s4 1983009808
          %v3391 = vunpack.c.0.s8 %v3390
          %v3392 = vlaneseq
          %v3393 = vshrl.u32 %v3392, 7
          %v3394 = vsub.s32 %v3391, %v3393
          %v3395 = vrot.slane %v3381, %v3394
          %v3396 = vcombine.low %v3340, %v3356
          %v3397 = vcombine.high %v3340, %v3356
          %v3399 = vunpack.c.l.s4 1934713408
          %v3400 = vunpack.c.0.s8 %v3399
          %v3401 = vlaneseq
          %v3402 = vshrl.u32 %v3401, 7
          %v3403 = vsub.s32 %v3400, %v3402
          %v3404 = vrot.slane %v3396, %v3403
          %v3406 = vunpack.c.l.s4 1934713408
          %v3407 = vunpack.c.0.s8 %v3406
          %v3408 = vlaneseq
          %v3409 = vshrl.u32 %v3408, 7
          %v3410 = vsub.s32 %v3407, %v3409
          %v3411 = vrot.slane %v3397, %v3410
          %v3412 = vcombine.low %v3347, %v3363
          %v3413 = vcombine.high %v3347, %v3363
          %v3415 = vunpack.c.l.s4 1934713408
          %v3416 = vunpack.c.0.s8 %v3415
          %v3417 = vlaneseq
          %v3418 = vshrl.u32 %v3417, 7
          %v3419 = vsub.s32 %v3416, %v3418
          %v3420 = vrot.slane %v3412, %v3419
          %v3422 = vunpack.c.l.s4 1934713408
          %v3423 = vunpack.c.0.s8 %v3422
          %v3424 = vlaneseq
          %v3425 = vshrl.u32 %v3424, 7
          %v3426 = vsub.s32 %v3423, %v3425
          %v3427 = vrot.slane %v3413, %v3426
          %v3428 = vcombine.low %v3372, %v3388
          %v3429 = vcombine.high %v3372, %v3388
          %v3431 = vunpack.c.l.s4 1934713408
          %v3432 = vunpack.c.0.s8 %v3431
          %v3433 = vlaneseq
          %v3434 = vshrl.u32 %v3433, 7
          %v3435 = vsub.s32 %v3432, %v3434
          %v3436 = vrot.slane %v3428, %v3435
          %v3438 = vunpack.c.l.s4 1934713408
          %v3439 = vunpack.c.0.s8 %v3438
          %v3440 = vlaneseq
          %v3441 = vshrl.u32 %v3440, 7
          %v3442 = vsub.s32 %v3439, %v3441
          %v3443 = vrot.slane %v3429, %v3442
          %v3444 = vcombine.low %v3379, %v3395
          %v3445 = vcombine.high %v3379, %v3395
          %v3447 = vunpack.c.l.s4 1934713408
          %v3448 = vunpack.c.0.s8 %v3447
          %v3449 = vlaneseq
          %v3450 = vshrl.u32 %v3449, 7
          %v3451 = vsub.s32 %v3448, %v3450
          %v3452 = vrot.slane %v3444, %v3451
          %v3454 = vunpack.c.l.s4 1934713408
          %v3455 = vunpack.c.0.s8 %v3454
          %v3456 = vlaneseq
          %v3457 = vshrl.u32 %v3456, 7
          %v3458 = vsub.s32 %v3455, %v3457
          %v3459 = vrot.slane %v3445, %v3458
          %v3460 = vcombine.low %v3404, %v3436
          %v3461 = vcombine.high %v3404, %v3436
          %v3462 = vcombine.low %v3411, %v3443
          %v3463 = vcombine.high %v3411, %v3443
          %v3464 = vcombine.low %v3420, %v3452
          %v3465 = vcombine.high %v3420, %v3452
          %v3466 = vcombine.low %v3427, %v3459
          %v3467 = vcombine.high %v3427, %v3459
          %v3468 = vcombine.low %v3317, %v3321
          %v3469 = vcombine.high %v3317, %v3321
          %v3471 = vunpack.c.l.s4 1983009808
          %v3472 = vunpack.c.0.s8 %v3471
          %v3473 = vlaneseq
          %v3474 = vshrl.u32 %v3473, 7
          %v3475 = vsub.s32 %v3472, %v3474
          %v3476 = vrot.slane %v3468, %v3475
          %v3478 = vunpack.c.l.s4 1983009808
          %v3479 = vunpack.c.0.s8 %v3478
          %v3480 = vlaneseq
          %v3481 = vshrl.u32 %v3480, 7
          %v3482 = vsub.s32 %v3479, %v3481
          %v3483 = vrot.slane %v3469, %v3482
          %v3484 = vcombine.low %v3319, %v3323
          %v3485 = vcombine.high %v3319, %v3323
          %v3487 = vunpack.c.l.s4 1983009808
          %v3488 = vunpack.c.0.s8 %v3487
          %v3489 = vlaneseq
          %v3490 = vshrl.u32 %v3489, 7
          %v3491 = vsub.s32 %v3488, %v3490
          %v3492 = vrot.slane %v3484, %v3491
          %v3494 = vunpack.c.l.s4 1983009808
          %v3495 = vunpack.c.0.s8 %v3494
          %v3496 = vlaneseq
          %v3497 = vshrl.u32 %v3496, 7
          %v3498 = vsub.s32 %v3495, %v3497
          %v3499 = vrot.slane %v3485, %v3498
          %v3500 = vcombine.low %v3325, %v3329
          %v3501 = vcombine.high %v3325, %v3329
          %v3503 = vunpack.c.l.s4 1983009808
          %v3504 = vunpack.c.0.s8 %v3503
          %v3505 = vlaneseq
          %v3506 = vshrl.u32 %v3505, 7
          %v3507 = vsub.s32 %v3504, %v3506
          %v3508 = vrot.slane %v3500, %v3507
          %v3510 = vunpack.c.l.s4 1983009808
          %v3511 = vunpack.c.0.s8 %v3510
          %v3512 = vlaneseq
          %v3513 = vshrl.u32 %v3512, 7
          %v3514 = vsub.s32 %v3511, %v3513
          %v3515 = vrot.slane %v3501, %v3514
          %v3516 = vcombine.low %v3327, %v3331
          %v3517 = vcombine.high %v3327, %v3331
          %v3519 = vunpack.c.l.s4 1983009808
          %v3520 = vunpack.c.0.s8 %v3519
          %v3521 = vlaneseq
          %v3522 = vshrl.u32 %v3521, 7
          %v3523 = vsub.s32 %v3520, %v3522
          %v3524 = vrot.slane %v3516, %v3523
          %v3526 = vunpack.c.l.s4 1983009808
          %v3527 = vunpack.c.0.s8 %v3526
          %v3528 = vlaneseq
          %v3529 = vshrl.u32 %v3528, 7
          %v3530 = vsub.s32 %v3527, %v3529
          %v3531 = vrot.slane %v3517, %v3530
          %v3532 = vcombine.low %v3476, %v3492
          %v3533 = vcombine.high %v3476, %v3492
          %v3535 = vunpack.c.l.s4 1934713408
          %v3536 = vunpack.c.0.s8 %v3535
          %v3537 = vlaneseq
          %v3538 = vshrl.u32 %v3537, 7
          %v3539 = vsub.s32 %v3536, %v3538
          %v3540 = vrot.slane %v3532, %v3539
          %v3542 = vunpack.c.l.s4 1934713408
          %v3543 = vunpack.c.0.s8 %v3542
          %v3544 = vlaneseq
          %v3545 = vshrl.u32 %v3544, 7
          %v3546 = vsub.s32 %v3543, %v3545
          %v3547 = vrot.slane %v3533, %v3546
          %v3548 = vcombine.low %v3483, %v3499
          %v3549 = vcombine.high %v3483, %v3499
          %v3551 = vunpack.c.l.s4 1934713408
          %v3552 = vunpack.c.0.s8 %v3551
          %v3553 = vlaneseq
          %v3554 = vshrl.u32 %v3553, 7
          %v3555 = vsub.s32 %v3552, %v3554
          %v3556 = vrot.slane %v3548, %v3555
          %v3558 = vunpack.c.l.s4 1934713408
          %v3559 = vunpack.c.0.s8 %v3558
          %v3560 = vlaneseq
          %v3561 = vshrl.u32 %v3560, 7
          %v3562 = vsub.s32 %v3559, %v3561
          %v3563 = vrot.slane %v3549, %v3562
          %v3564 = vcombine.low %v3508, %v3524
          %v3565 = vcombine.high %v3508, %v3524
          %v3567 = vunpack.c.l.s4 1934713408
          %v3568 = vunpack.c.0.s8 %v3567
          %v3569 = vlaneseq
          %v3570 = vshrl.u32 %v3569, 7
          %v3571 = vsub.s32 %v3568, %v3570
          %v3572 = vrot.slane %v3564, %v3571
          %v3574 = vunpack.c.l.s4 1934713408
          %v3575 = vunpack.c.0.s8 %v3574
          %v3576 = vlaneseq
          %v3577 = vshrl.u32 %v3576, 7
          %v3578 = vsub.s32 %v3575, %v3577
          %v3579 = vrot.slane %v3565, %v3578
          %v3580 = vcombine.low %v3515, %v3531
          %v3581 = vcombine.high %v3515, %v3531
          %v3583 = vunpack.c.l.s4 1934713408
          %v3584 = vunpack.c.0.s8 %v3583
          %v3585 = vlaneseq
          %v3586 = vshrl.u32 %v3585, 7
          %v3587 = vsub.s32 %v3584, %v3586
          %v3588 = vrot.slane %v3580, %v3587
          %v3590 = vunpack.c.l.s4 1934713408
          %v3591 = vunpack.c.0.s8 %v3590
          %v3592 = vlaneseq
          %v3593 = vshrl.u32 %v3592, 7
          %v3594 = vsub.s32 %v3591, %v3593
          %v3595 = vrot.slane %v3581, %v3594
          %v3596 = vcombine.low %v3540, %v3572
          %v3597 = vcombine.high %v3540, %v3572
          %v3598 = vcombine.low %v3547, %v3579
          %v3599 = vcombine.high %v3547, %v3579
          %v3600 = vcombine.low %v3556, %v3588
          %v3601 = vcombine.high %v3556, %v3588
          %v3602 = vcombine.low %v3563, %v3595
          %v3603 = vcombine.high %v3563, %v3595
          %v3604 = vcombine.low %v3460, %v3462
          %v3605 = vcombine.high %v3460, %v3462
          %v3607 = vunpack.c.l.s4 1983009808
          %v3608 = vunpack.c.0.s8 %v3607
          %v3609 = vlaneseq
          %v3610 = vshrl.u32 %v3609, 7
          %v3611 = vsub.s32 %v3608, %v3610
          %v3612 = vrot.slane %v3604, %v3611
          %v3614 = vunpack.c.l.s4 1983009808
          %v3615 = vunpack.c.0.s8 %v3614
          %v3616 = vlaneseq
          %v3617 = vshrl.u32 %v3616, 7
          %v3618 = vsub.s32 %v3615, %v3617
          %v3619 = vrot.slane %v3605, %v3618
          %v3620 = vcombine.low %v3461, %v3463
          %v3621 = vcombine.high %v3461, %v3463
          %v3623 = vunpack.c.l.s4 1983009808
          %v3624 = vunpack.c.0.s8 %v3623
          %v3625 = vlaneseq
          %v3626 = vshrl.u32 %v3625, 7
          %v3627 = vsub.s32 %v3624, %v3626
          %v3628 = vrot.slane %v3620, %v3627
          %v3630 = vunpack.c.l.s4 1983009808
          %v3631 = vunpack.c.0.s8 %v3630
          %v3632 = vlaneseq
          %v3633 = vshrl.u32 %v3632, 7
          %v3634 = vsub.s32 %v3631, %v3633
          %v3635 = vrot.slane %v3621, %v3634
          %v3636 = vcombine.low %v3464, %v3466
          %v3637 = vcombine.high %v3464, %v3466
          %v3639 = vunpack.c.l.s4 1983009808
          %v3640 = vunpack.c.0.s8 %v3639
          %v3641 = vlaneseq
          %v3642 = vshrl.u32 %v3641, 7
          %v3643 = vsub.s32 %v3640, %v3642
          %v3644 = vrot.slane %v3636, %v3643
          %v3646 = vunpack.c.l.s4 1983009808
          %v3647 = vunpack.c.0.s8 %v3646
          %v3648 = vlaneseq
          %v3649 = vshrl.u32 %v3648, 7
          %v3650 = vsub.s32 %v3647, %v3649
          %v3651 = vrot.slane %v3637, %v3650
          %v3652 = vcombine.low %v3465, %v3467
          %v3653 = vcombine.high %v3465, %v3467
          %v3655 = vunpack.c.l.s4 1983009808
          %v3656 = vunpack.c.0.s8 %v3655
          %v3657 = vlaneseq
          %v3658 = vshrl.u32 %v3657, 7
          %v3659 = vsub.s32 %v3656, %v3658
          %v3660 = vrot.slane %v3652, %v3659
          %v3662 = vunpack.c.l.s4 1983009808
          %v3663 = vunpack.c.0.s8 %v3662
          %v3664 = vlaneseq
          %v3665 = vshrl.u32 %v3664, 7
          %v3666 = vsub.s32 %v3663, %v3665
          %v3667 = vrot.slane %v3653, %v3666
          %v3668 = vcombine.low %v3612, %v3628
          %v3669 = vcombine.high %v3612, %v3628
          %v3671 = vunpack.c.l.s4 1934713408
          %v3672 = vunpack.c.0.s8 %v3671
          %v3673 = vlaneseq
          %v3674 = vshrl.u32 %v3673, 7
          %v3675 = vsub.s32 %v3672, %v3674
          %v3676 = vrot.slane %v3668, %v3675
          %v3678 = vunpack.c.l.s4 1934713408
          %v3679 = vunpack.c.0.s8 %v3678
          %v3680 = vlaneseq
          %v3681 = vshrl.u32 %v3680, 7
          %v3682 = vsub.s32 %v3679, %v3681
          %v3683 = vrot.slane %v3669, %v3682
          %v3684 = vcombine.low %v3619, %v3635
          %v3685 = vcombine.high %v3619, %v3635
          %v3687 = vunpack.c.l.s4 1934713408
          %v3688 = vunpack.c.0.s8 %v3687
          %v3689 = vlaneseq
          %v3690 = vshrl.u32 %v3689, 7
          %v3691 = vsub.s32 %v3688, %v3690
          %v3692 = vrot.slane %v3684, %v3691
          %v3694 = vunpack.c.l.s4 1934713408
          %v3695 = vunpack.c.0.s8 %v3694
          %v3696 = vlaneseq
          %v3697 = vshrl.u32 %v3696, 7
          %v3698 = vsub.s32 %v3695, %v3697
          %v3699 = vrot.slane %v3685, %v3698
          %v3700 = vcombine.low %v3644, %v3660
          %v3701 = vcombine.high %v3644, %v3660
          %v3703 = vunpack.c.l.s4 1934713408
          %v3704 = vunpack.c.0.s8 %v3703
          %v3705 = vlaneseq
          %v3706 = vshrl.u32 %v3705, 7
          %v3707 = vsub.s32 %v3704, %v3706
          %v3708 = vrot.slane %v3700, %v3707
          %v3710 = vunpack.c.l.s4 1934713408
          %v3711 = vunpack.c.0.s8 %v3710
          %v3712 = vlaneseq
          %v3713 = vshrl.u32 %v3712, 7
          %v3714 = vsub.s32 %v3711, %v3713
          %v3715 = vrot.slane %v3701, %v3714
          %v3716 = vcombine.low %v3651, %v3667
          %v3717 = vcombine.high %v3651, %v3667
          %v3719 = vunpack.c.l.s4 1934713408
          %v3720 = vunpack.c.0.s8 %v3719
          %v3721 = vlaneseq
          %v3722 = vshrl.u32 %v3721, 7
          %v3723 = vsub.s32 %v3720, %v3722
          %v3724 = vrot.slane %v3716, %v3723
          %v3726 = vunpack.c.l.s4 1934713408
          %v3727 = vunpack.c.0.s8 %v3726
          %v3728 = vlaneseq
          %v3729 = vshrl.u32 %v3728, 7
          %v3730 = vsub.s32 %v3727, %v3729
          %v3731 = vrot.slane %v3717, %v3730
          %v3732 = vcombine.low %v3676, %v3708
          %v3733 = vcombine.high %v3676, %v3708
          %v3734 = vcombine.low %v3683, %v3715
          %v3735 = vcombine.high %v3683, %v3715
          %v3736 = vcombine.low %v3692, %v3724
          %v3737 = vcombine.high %v3692, %v3724
          %v3738 = vcombine.low %v3699, %v3731
          %v3739 = vcombine.high %v3699, %v3731
          %v3740 = vcombine.low %v3596, %v3598
          %v3741 = vcombine.high %v3596, %v3598
          %v3743 = vunpack.c.l.s4 1983009808
          %v3744 = vunpack.c.0.s8 %v3743
          %v3745 = vlaneseq
          %v3746 = vshrl.u32 %v3745, 7
          %v3747 = vsub.s32 %v3744, %v3746
          %v3748 = vrot.slane %v3740, %v3747
          %v3750 = vunpack.c.l.s4 1983009808
          %v3751 = vunpack.c.0.s8 %v3750
          %v3752 = vlaneseq
          %v3753 = vshrl.u32 %v3752, 7
          %v3754 = vsub.s32 %v3751, %v3753
          %v3755 = vrot.slane %v3741, %v3754
          %v3756 = vcombine.low %v3597, %v3599
          %v3757 = vcombine.high %v3597, %v3599
          %v3759 = vunpack.c.l.s4 1983009808
          %v3760 = vunpack.c.0.s8 %v3759
          %v3761 = vlaneseq
          %v3762 = vshrl.u32 %v3761, 7
          %v3763 = vsub.s32 %v3760, %v3762
          %v3764 = vrot.slane %v3756, %v3763
          %v3766 = vunpack.c.l.s4 1983009808
          %v3767 = vunpack.c.0.s8 %v3766
          %v3768 = vlaneseq
          %v3769 = vshrl.u32 %v3768, 7
          %v3770 = vsub.s32 %v3767, %v3769
          %v3771 = vrot.slane %v3757, %v3770
          %v3772 = vcombine.low %v3600, %v3602
          %v3773 = vcombine.high %v3600, %v3602
          %v3775 = vunpack.c.l.s4 1983009808
          %v3776 = vunpack.c.0.s8 %v3775
          %v3777 = vlaneseq
          %v3778 = vshrl.u32 %v3777, 7
          %v3779 = vsub.s32 %v3776, %v3778
          %v3780 = vrot.slane %v3772, %v3779
          %v3782 = vunpack.c.l.s4 1983009808
          %v3783 = vunpack.c.0.s8 %v3782
          %v3784 = vlaneseq
          %v3785 = vshrl.u32 %v3784, 7
          %v3786 = vsub.s32 %v3783, %v3785
          %v3787 = vrot.slane %v3773, %v3786
          %v3788 = vcombine.low %v3601, %v3603
          %v3789 = vcombine.high %v3601, %v3603
          %v3791 = vunpack.c.l.s4 1983009808
          %v3792 = vunpack.c.0.s8 %v3791
          %v3793 = vlaneseq
          %v3794 = vshrl.u32 %v3793, 7
          %v3795 = vsub.s32 %v3792, %v3794
          %v3796 = vrot.slane %v3788, %v3795
          %v3798 = vunpack.c.l.s4 1983009808
          %v3799 = vunpack.c.0.s8 %v3798
          %v3800 = vlaneseq
          %v3801 = vshrl.u32 %v3800, 7
          %v3802 = vsub.s32 %v3799, %v3801
          %v3803 = vrot.slane %v3789, %v3802
          %v3804 = vcombine.low %v3748, %v3764
          %v3805 = vcombine.high %v3748, %v3764
          %v3807 = vunpack.c.l.s4 1934713408
          %v3808 = vunpack.c.0.s8 %v3807
          %v3809 = vlaneseq
          %v3810 = vshrl.u32 %v3809, 7
          %v3811 = vsub.s32 %v3808, %v3810
          %v3812 = vrot.slane %v3804, %v3811
          %v3814 = vunpack.c.l.s4 1934713408
          %v3815 = vunpack.c.0.s8 %v3814
          %v3816 = vlaneseq
          %v3817 = vshrl.u32 %v3816, 7
          %v3818 = vsub.s32 %v3815, %v3817
          %v3819 = vrot.slane %v3805, %v3818
          %v3820 = vcombine.low %v3755, %v3771
          %v3821 = vcombine.high %v3755, %v3771
          %v3823 = vunpack.c.l.s4 1934713408
          %v3824 = vunpack.c.0.s8 %v3823
          %v3825 = vlaneseq
          %v3826 = vshrl.u32 %v3825, 7
          %v3827 = vsub.s32 %v3824, %v3826
          %v3828 = vrot.slane %v3820, %v3827
          %v3830 = vunpack.c.l.s4 1934713408
          %v3831 = vunpack.c.0.s8 %v3830
          %v3832 = vlaneseq
          %v3833 = vshrl.u32 %v3832, 7
          %v3834 = vsub.s32 %v3831, %v3833
          %v3835 = vrot.slane %v3821, %v3834
          %v3836 = vcombine.low %v3780, %v3796
          %v3837 = vcombine.high %v3780, %v3796
          %v3839 = vunpack.c.l.s4 1934713408
          %v3840 = vunpack.c.0.s8 %v3839
          %v3841 = vlaneseq
          %v3842 = vshrl.u32 %v3841, 7
          %v3843 = vsub.s32 %v3840, %v3842
          %v3844 = vrot.slane %v3836, %v3843
          %v3846 = vunpack.c.l.s4 1934713408
          %v3847 = vunpack.c.0.s8 %v3846
          %v3848 = vlaneseq
          %v3849 = vshrl.u32 %v3848, 7
          %v3850 = vsub.s32 %v3847, %v3849
          %v3851 = vrot.slane %v3837, %v3850
          %v3852 = vcombine.low %v3787, %v3803
          %v3853 = vcombine.high %v3787, %v3803
          %v3855 = vunpack.c.l.s4 1934713408
          %v3856 = vunpack.c.0.s8 %v3855
          %v3857 = vlaneseq
          %v3858 = vshrl.u32 %v3857, 7
          %v3859 = vsub.s32 %v3856, %v3858
          %v3860 = vrot.slane %v3852, %v3859
          %v3862 = vunpack.c.l.s4 1934713408
          %v3863 = vunpack.c.0.s8 %v3862
          %v3864 = vlaneseq
          %v3865 = vshrl.u32 %v3864, 7
          %v3866 = vsub.s32 %v3863, %v3865
          %v3867 = vrot.slane %v3853, %v3866
          %v3868 = vcombine.low %v3812, %v3844
          %v3869 = vcombine.high %v3812, %v3844
          %v3870 = vcombine.low %v3819, %v3851
          %v3871 = vcombine.high %v3819, %v3851
          %v3872 = vcombine.low %v3828, %v3860
          %v3873 = vcombine.high %v3828, %v3860
          %v3874 = vcombine.low %v3835, %v3867
          %v3875 = vcombine.high %v3835, %v3867
          %3878 = vrot.lane.b32.xlu0 %v3733, 16
          %v3879 = vpop.permute.xlu0 %3878
          %3880 = vrot.lane.b32.xlu0 %v3869, 16
          %v3881 = vpop.permute.xlu0 %3880
          %3886 = vrot.lane.b32.xlu0 %v3734, 32
          %v3887 = vpop.permute.xlu0 %3886
          %3888 = vrot.lane.b32.xlu0 %v3870, 32
          %v3889 = vpop.permute.xlu0 %3888
          %3894 = vrot.lane.b32.xlu0 %v3735, 48
          %v3895 = vpop.permute.xlu0 %3894
          %3896 = vrot.lane.b32.xlu0 %v3871, 48
          %v3897 = vpop.permute.xlu0 %3896
          %3902 = vrot.lane.b32.xlu0 %v3736, 64
          %v3903 = vpop.permute.xlu0 %3902
          %3904 = vrot.lane.b32.xlu0 %v3872, 64
          %v3905 = vpop.permute.xlu0 %3904
          %3910 = vrot.lane.b32.xlu0 %v3737, 80
          %v3911 = vpop.permute.xlu0 %3910
          %3912 = vrot.lane.b32.xlu0 %v3873, 80
          %v3913 = vpop.permute.xlu0 %3912
          %3918 = vrot.lane.b32.xlu0 %v3738, 96
          %v3919 = vpop.permute.xlu0 %3918
          %3920 = vrot.lane.b32.xlu0 %v3874, 96
          %v3921 = vpop.permute.xlu0 %3920
          %3926 = vrot.lane.b32.xlu0 %v3739, 112
          %v3927 = vpop.permute.xlu0 %3926
          %3928 = vrot.lane.b32.xlu0 %v3875, 112
          %v3929 = vpop.permute.xlu0 %3928
          %v3932 = vsel %vm1804, %v3732, %v3879
          %v3933 = vsel %vm1804, %v3868, %v3881
          %vm3934 = vcmask 261120
          %v3935 = vsel %vm3934, %v3932, %v3887
          %v3936 = vsel %vm3934, %v3933, %v3889
          %vm3937 = vcmask 392192
          %v3938 = vsel %vm3937, %v3935, %v3895
          %v3939 = vsel %vm3937, %v3936, %v3897
          %vm3940 = vcmask 523264
          %v3941 = vsel %vm3940, %v3938, %v3903
          %v3942 = vsel %vm3940, %v3939, %v3905
          %vm3943 = vcmask 654336
          %v3944 = vsel %vm3943, %v3941, %v3911
          %v3945 = vsel %vm3943, %v3942, %v3913
          %vm3946 = vcmask 785408
          %v3947 = vsel %vm3946, %v3944, %v3919
          %v3948 = vsel %vm3946, %v3945, %v3921
          %vm3949 = vcmask 916480
          %v3950 = vsel %vm3949, %v3947, %v3927
          %v3951 = vsel %vm3949, %v3948, %v3929
          %v3952 = vpack.c.bf16 %v3951, %v3950
          %v3953 = vld [vmem:[%s3] sm:$0xf]
          %v3954 = vld [vmem:[%s3 + $0x4] sm:$0xf]
          %v3955 = vld [vmem:[%s3 + $0x8] sm:$0xf]
          %v3956 = vld [vmem:[%s3 + $0xc] sm:$0xf]
          %v3957 = vld [vmem:[%s3 + $0x10] sm:$0xf]
          %v3958 = vld [vmem:[%s3 + $0x14] sm:$0xf]
          %v3959 = vld [vmem:[%s3 + $0x18] sm:$0xf]
          %v3960 = vld [vmem:[%s3 + $0x1c] sm:$0xf]
          %v3961 = vld [vmem:[%s3 + $0x20] sm:$0xf]
          %v3962 = vld [vmem:[%s3 + $0x24] sm:$0xf]
          %v3963 = vld [vmem:[%s3 + $0x28] sm:$0xf]
          %v3964 = vld [vmem:[%s3 + $0x2c] sm:$0xf]
          %v3965 = vld [vmem:[%s3 + $0x30] sm:$0xf]
          %v3966 = vld [vmem:[%s3 + $0x34] sm:$0xf]
          %v3967 = vld [vmem:[%s3 + $0x38] sm:$0xf]
          %v3968 = vld [vmem:[%s3 + $0x3c] sm:$0xf]
          %v3969 = vld [vmem:[%s4] sm:$0x1]
          %v3971 = vlaneseq
          %v3972 = vshrl.u32 %v3971, 7
          %v3973 = vsub.s32 0, %v3972
          %v3974 = vrot.slane %v3969, %v3973
          %v3992 = vunpack.c.l.b16 %v3953
          %v3993 = vunpack.c.l.b16 %v3954
          %v3994 = vunpack.c.l.b16 %v3955
          %v3995 = vunpack.c.l.b16 %v3956
          %v3996 = vunpack.c.l.b16 %v3957
          %v3997 = vunpack.c.l.b16 %v3958
          %v3998 = vunpack.c.l.b16 %v3959
          %v3999 = vunpack.c.l.b16 %v3960
          %v4000 = vunpack.c.l.b16 %v3961
          %v4001 = vunpack.c.l.b16 %v3962
          %v4002 = vunpack.c.l.b16 %v3963
          %v4003 = vunpack.c.l.b16 %v3964
          %v4004 = vunpack.c.l.b16 %v3965
          %v4005 = vunpack.c.l.b16 %v3966
          %v4006 = vunpack.c.l.b16 %v3967
          %v4007 = vunpack.c.l.b16 %v3968
          %v4008 = vpack.c.b16 %v3993, %v3992
          %v4009 = vpack.c.b16 %v3995, %v3994
          %v4010 = vpack.c.b16 %v3997, %v3996
          %v4011 = vpack.c.b16 %v3999, %v3998
          %v4012 = vpack.c.b16 %v4001, %v4000
          %v4013 = vpack.c.b16 %v4003, %v4002
          %v4014 = vpack.c.b16 %v4005, %v4004
          %v4015 = vpack.c.b16 %v4007, %v4006
          %4024 = vmatprep.subr.bf16.mxu0 0
          %4025 = vmatpush1.bf16.msra.mxu0 %v4015
          %4026 = vmatprep.subr.bf16.mxu0 0
          %4027 = vmatpush1.bf16.msra.mxu0 %v4014
          %4028 = vmatprep.subr.bf16.mxu0 0
          %4029 = vmatpush1.bf16.msra.mxu0 %v4013
          %4030 = vmatprep.subr.bf16.mxu0 0
          %4031 = vmatpush1.bf16.msra.mxu0 %v4012
          %4032 = vmatprep.subr.bf16.mxu0 0
          %4033 = vmatpush1.bf16.msra.mxu0 %v4011
          %4034 = vmatprep.subr.bf16.mxu0 0
          %4035 = vmatpush1.bf16.msra.mxu0 %v4010
          %4036 = vmatprep.subr.bf16.mxu0 0
          %4037 = vmatpush1.bf16.msra.mxu0 %v4009
          %4038 = vmatprep.subr.bf16.mxu0 0
          %4039 = vmatpush1.bf16.msra.mxu0 %v4008
          %4040 = vmatprep.subr.bf16.mxu0 0
          %4041 = vmatpush2.bf16.msra.mxu0 0
          %4042 = vmatprep.subr.bf16.mxu0 0
          %4043 = vmatpush2.bf16.msra.mxu0 0
          %4044 = vmatprep.subr.bf16.mxu0 0
          %4045 = vmatpush2.bf16.msra.mxu0 0
          %4046 = vmatprep.subr.bf16.mxu0 0
          %4047 = vmatpush2.bf16.msra.mxu0 0
          %4048 = vmatprep.subr.bf16.mxu0 0
          %4049 = vmatpush2.bf16.msra.mxu0 0
          %4050 = vmatprep.subr.bf16.mxu0 0
          %4051 = vmatpush2.bf16.msra.mxu0 0
          %4052 = vmatprep.subr.bf16.mxu0 0
          %4053 = vmatpush2.bf16.msra.mxu0 0
          %4054 = vmatprep.subr.bf16.mxu0 0
          %4055 = vmatpush2.bf16.msra.mxu0 0
          %4056 = vmatprep.mubr.bf16.mxu0 0
          %4057 = vmatmul.mubr.bf16.gmra.mxu0 %v3952
          %v4058 = vpop.f32.mrf.mxu0
          %v4059 = vadd.f32 %v3974, %v4058
          %v4060 = vpop.f32.mrf.mxu0
          %v4061 = vpop.f32.mrf.mxu0
          %v4062 = vadd.f32 %v3974, %v4061
          %v4063 = vpop.f32.mrf.mxu0
          %4064 = vdwg.mxu0
          %4065 = vst [vmem:[%s291] sm:$0xff] %v4059
          %4066 = vst [vmem:[%s291 + $0x8] sm:$0xff] %v4062
        $region48: #{cross_attention.7} parent=39 // pred_fallthru
          _
        %s4067 = sand.u32 %s174, 1
        %s4068 = scalar_lea.sflag [#allocation7], %s4067
        %s4069 = sand.u32 %s174, 1
        %s4070 = smul.addr %s4069, 16
        %s4071 = scalar_lea.vmem [#allocation6], %s4070
        // Predicated region
        $region49: #{cross_attention.7} parent=39 // pred_check
          %p4072 = pneg %p184
        $region50: #{cross_attention.7} parent=39 // pred_check_branch
          %4074 = sbr.rel (%p4072) target = $region52
        $region51: #{cross_attention.7} parent=39 // pred_region
          %s4075 = smul.u32 2, %s25
          %s4077 = ssub.s32 256, 256
          %4078 = vsyncadd %s4068, %s4077
          %s4079 = smul.addr %s24, 2
          %s4080 = sadd.s32 %s4075, %s4079
          %s4081 = smul.addr %s4080, 128
          %s4082 = scalar_lea.hbm %s5, %s4081
          %s4083 = sshll.u32 %s4071, 4
          %s4084 = int_to_ptr.vmem [resolvable:$true] %s4083
          %4089 = dma.vmem_to_hbm [thread:$0]  %s4084, 256, %s4082, %s4068, 128, 128, 8
        $region52: #{cross_attention.7} parent=39 // pred_fallthru
          _
      $region40: #{cross_attention.7} parent=5 // pred_fallthru
        _
      %p4090 = scmp.le.s32.totalorder 2, %s14
      // Predicated region
      $region53: #{cross_attention.7} parent=5 // pred_check
        %p4091 = pneg %p4090
      $region54: #{cross_attention.7} parent=5 // pred_check_branch
        %4093 = sbr.rel (%p4091) target = $region56
      $region55: #{cross_attention.7} parent=5 // pred_region
        %s4094 = ssub.s32 %s14, 2
        // Predicated region
        $region57: #{cross_attention.7} parent=55 // pred_check
          %p4095 = pneg %p190
        $region58: #{cross_attention.7} parent=55 // pred_check_branch
          %4097 = sbr.rel (%p4095) target = $region60
        $region59: #{cross_attention.7} parent=55 // pred_region
          %s4098 = sand.u32 %s175, 1
          %s4099 = scalar_lea.sflag [#allocation7], %s4098
          %s4100 = sand.u32 %s175, 1
          %s4101 = smul.addr %s4100, 16
          %s4102 = scalar_lea.vmem [#allocation6], %s4101
          %4103 = dma.done %s4099, 256
        $region60: #{cross_attention.7} parent=55 // pred_fallthru
          _
      $region56: #{cross_attention.7} parent=5 // pred_fallthru
        _
    $region6: #{cross_attention.7} parent=1 // loop_footer
      %s18 = sadd.s32 1, %s14
    $region7: #{cross_attention.7} parent=1 // loop_footer_branch
      %13 = sbr.rel target = $region3
    $region8: #{cross_attention.7} parent=1 // loop_exit
      _
    %4104 = vsyncpa [#allocation7], 1
    %s4105 = scalar_lea.sflag [#allocation7], 1
    %4106 = vsyncpa %s4105, 1

</llo_original>
